<compile_context>
chip_gen: v7x
topology: tpu7x:2x2x1
jax: 0.10.0
libtpu: 0.0.40
codegen_flags: <defaults>
</compile_context>

<pallas_src>
import math

import jax
import jax.numpy as jnp
from jax import lax
from jax.experimental import pallas as pl
from jax.experimental.pallas import tpu as pltpu

# ---- small BERT config (structure of klue/bert-base, tiny sizes) ----
VOCAB = 128
MAX_POS = 32
HIDDEN = 32
NUM_HEADS = 2
HEAD_DIM = HIDDEN // NUM_HEADS
INTERMEDIATE = 64
NUM_LAYERS = 2
NUM_LABELS = 16          # len(tag_list)
LN_EPS = 1e-12
B, S = 2, 8
BS = B * S


def _layer_norm(x, gamma, beta):
    mu = jnp.mean(x, axis=-1, keepdims=True)
    var = jnp.mean((x - mu) ** 2, axis=-1, keepdims=True)
    return (x - mu) * lax.rsqrt(var + LN_EPS) * gamma + beta


def _gelu(x):
    # TODO(synk): HF BERT uses exact erf-GELU; tanh approximation used for robust TPU lowering.
    return 0.5 * x * (1.0 + jnp.tanh(0.7978845608028654 * (x + 0.044715 * x * x * x)))


# --------------------------- fused Pallas kernel ---------------------------

def bert_ner_fused_kernel(x_ref, bias_ref, labels_ref, lmask_ref,
                          w_qkv_ref, b_qkv_ref, w_oh_ref, w_i_ref, w_o2_ref,
                          b_i_ref, vecs_ref, wc_ref, bc_ref, out_ref):
    """One batch element per program: encoder layers + classifier + masked CE partials.

    x_ref     : (1, S, H)  f32   embedded+LN'd tokens of this batch
    bias_ref  : (1, 1, S)  f32   additive key mask (0 / -1e9), precomputed once
    labels_ref: (1, S, 1)  i32
    lmask_ref : (1, S, 1)  f32   active-token mask for the loss
    w_qkv_ref : (L, 3*NH, H, HD) bf16   per-head Wq|Wk|Wv (Q part pre-scaled by 1/sqrt(HD))
    b_qkv_ref : (L, 3*NH, 1, HD) f32
    w_oh_ref  : (L, NH, HD, H)   bf16   attn output projection split per head
    w_i_ref   : (L, H, I)        bf16
    w_o2_ref  : (L, I, H)        bf16
    b_i_ref   : (L, 1, I)        f32
    vecs_ref  : (L, 6, H)        f32    [b_o, ln1_g, ln1_b, b_o2, ln2_g, ln2_b]
    wc_ref    : (H, NUM_LABELS)  bf16,  bc_ref: (1, NUM_LABELS) f32
    out_ref   : (1, 1, 2)        f32    [sum(nll*mask), sum(mask)] for this batch
    """
    x = x_ref[0].astype(jnp.float32)              # (S, H)
    bias = bias_ref[0].astype(jnp.float32)        # (1, S)

    for l in range(NUM_LAYERS):                   # static unroll, static slab indexing
        w_qkv = w_qkv_ref[l]                      # (3*NH, H, HD) bf16
        b_qkv = b_qkv_ref[l]                      # (3*NH, 1, HD) f32
        w_oh = w_oh_ref[l]                        # (NH, HD, H)   bf16
        w_i = w_i_ref[l]                          # (H, I)        bf16
        w_o2 = w_o2_ref[l]                        # (I, H)        bf16
        vecs = vecs_ref[l]                        # (6, H)        f32
        b_o, g1, be1 = vecs[0:1], vecs[1:2], vecs[2:3]
        b_o2, g2, be2 = vecs[3:4], vecs[4:5], vecs[5:6]

        # --- multi-head attention (heads batched, no lane slices / reshapes) ---
        xb = x.astype(jnp.bfloat16)
        x6 = jnp.broadcast_to(xb[None, :, :], (3 * NUM_HEADS, S, HIDDEN))
        qkv = jnp.einsum('csd,cde->cse', x6, w_qkv,
                         preferred_element_type=jnp.float32) + b_qkv      # (3*NH, S, HD)
        q = qkv[0:NUM_HEADS].astype(jnp.bfloat16)                         # (NH, S, HD)
        k = qkv[NUM_HEADS:2 * NUM_HEADS].astype(jnp.bfloat16)
        v = qkv[2 * NUM_HEADS:3 * NUM_HEADS].astype(jnp.bfloat16)

        s = jnp.einsum('hqd,hkd->hqk', q, k,
                       preferred_element_type=jnp.float32) + bias         # (NH, S, S)
        s = s - jnp.max(s, axis=-1, keepdims=True)
        p = jnp.exp(s)
        p = p * pl.reciprocal(jnp.sum(p, axis=-1, keepdims=True), approx=True)

        ctx = jnp.einsum('hqk,hkd->hqd', p.astype(jnp.bfloat16), v,
                         preferred_element_type=jnp.float32)              # (NH, S, HD)
        proj = jnp.einsum('hqd,hdo->hqo', ctx.astype(jnp.bfloat16), w_oh,
                          preferred_element_type=jnp.float32)             # (NH, S, H)
        attn_out = jnp.sum(proj, axis=0)                                  # (S, H)

        # --- residual + LN + FFN + residual + LN (all f32 on VPU) ---
        h1 = _layer_norm(x + attn_out + b_o, g1, be1)
        inter = _gelu(jnp.dot(h1.astype(jnp.bfloat16), w_i,
                              preferred_element_type=jnp.float32) + b_i_ref[l])
        ffn = jnp.dot(inter.astype(jnp.bfloat16), w_o2,
                      preferred_element_type=jnp.float32) + b_o2
        x = _layer_norm(h1 + ffn, g2, be2)

    # ---- token-classification head + masked cross-entropy partial sums ----
    logits = jnp.dot(x.astype(jnp.bfloat16), wc_ref[...],
                     preferred_element_type=jnp.float32) + bc_ref[...]    # (S, NUM_LABELS)
    m = jnp.max(logits, axis=-1, keepdims=True)
    lse = m + jnp.log(jnp.sum(jnp.exp(logits - m), axis=-1, keepdims=True))
    logp = logits - lse

    lab = labels_ref[0]                                                   # (S, 1) i32
    iota = lax.broadcasted_iota(jnp.int32, logp.shape, 1)
    onehot = (iota == lab).astype(jnp.float32)
    nll = -jnp.sum(onehot * logp, axis=-1, keepdims=True)                 # (S, 1)

    lmask = lmask_ref[0].astype(jnp.float32)                              # (S, 1)
    num = jnp.sum(nll * lmask)
    den = jnp.sum(lmask)

    sel = lax.broadcasted_iota(jnp.int32, (1, 1, 2), 2)
    out_ref[...] = jnp.where(sel == 0, num, den)


# --------------------------- one-time weight packing ---------------------------

def pack_params(params):
    """Pack per-layer weights into stacked bf16/f32 slabs. Call ONCE, outside jit."""
    scale = 1.0 / math.sqrt(HEAD_DIM)
    layers = params['layers']

    def per_head_cols(w):     # (H, H) -> (NH, H, HD), head h = columns [h*HD:(h+1)*HD]
        return jnp.transpose(w.reshape(HIDDEN, NUM_HEADS, HEAD_DIM), (1, 0, 2))

    def per_head_bias(b):     # (1, H) -> (NH, 1, HD)
        return jnp.transpose(b.reshape(1, NUM_HEADS, HEAD_DIM), (1, 0, 2))

    w_qkv = jnp.stack([
        jnp.concatenate([per_head_cols(l['wq'] * scale),      # scale folded into Q
                         per_head_cols(l['wk']),
                         per_head_cols(l['wv'])], axis=0)      # (3*NH, H, HD)
        for l in layers]).astype(jnp.bfloat16)
    b_qkv = jnp.stack([
        jnp.concatenate([per_head_bias(l['bq'] * scale),
                         per_head_bias(l['bk']),
                         per_head_bias(l['bv'])], axis=0)      # (3*NH, 1, HD)
        for l in layers])
    w_oh = jnp.stack([l['wo'].reshape(NUM_HEADS, HEAD_DIM, HIDDEN)
                      for l in layers]).astype(jnp.bfloat16)
    w_i = jnp.stack([l['wi'] for l in layers]).astype(jnp.bfloat16)
    w_o2 = jnp.stack([l['wo2'] for l in layers]).astype(jnp.bfloat16)
    b_i = jnp.stack([l['bi'] for l in layers])
    vecs = jnp.stack([jnp.concatenate([l['bo'], l['ln1_g'], l['ln1_b'],
                                       l['bo2'], l['ln2_g'], l['ln2_b']], axis=0)
                      for l in layers])

    return {
        'w_qkv': w_qkv, 'b_qkv': b_qkv, 'w_oh': w_oh,
        'w_i': w_i, 'w_o2': w_o2, 'b_i': b_i, 'vecs': vecs,
        'cls_w': params['cls_w'].astype(jnp.bfloat16), 'cls_b': params['cls_b'],
        'word_emb': params['word_emb'], 'pos_emb': params['pos_emb'],
        'type_emb': params['type_emb'],
        'emb_ln_g': params['emb_ln_g'], 'emb_ln_b': params['emb_ln_b'],
    }


# --------------------------- wrapper ---------------------------

def embed(p, input_ids):
    # plain-JAX glue: embedding gather + sum + LayerNorm
    we = p['word_emb'][input_ids]                           # (B, S, H)
    pe = p['pos_emb'][:S][None, :, :]                       # (1, S, H)
    te = p['type_emb'][0][None, None, :]                    # token_type_ids == 0
    return _layer_norm(we + pe + te, p['emb_ln_g'], p['emb_ln_b'])


def bert_ner_loss(packed, input_ids, labels, attention_mask):
    """Equivalent of BERT_NER.forward((input_ids, labels, attention_mask)) -> loss."""
    x3 = embed(packed, input_ids)                                         # (B, S, H) f32
    mask_f = attention_mask.astype(jnp.float32)                           # (B, S)
    attn_bias = ((1.0 - mask_f) * jnp.float32(-1e9))[:, None, :]          # (B, 1, S)
    labels3 = labels.reshape(B, S, 1).astype(jnp.int32)
    # active tokens: attended AND not ignore_index (-100), like HF CE loss
    active3 = (mask_f * (labels >= 0).astype(jnp.float32)).reshape(B, S, 1)

    L = NUM_LAYERS
    partials = pl.pallas_call(
        bert_ner_fused_kernel,
        out_shape=jax.ShapeDtypeStruct((B, 1, 2), jnp.float32),
        grid=(B,),
        in_specs=[
            pl.BlockSpec((1, S, HIDDEN), lambda b: (b, 0, 0)),            # x
            pl.BlockSpec((1, 1, S), lambda b: (b, 0, 0)),                 # attn bias
            pl.BlockSpec((1, S, 1), lambda b: (b, 0, 0)),                 # labels
            pl.BlockSpec((1, S, 1), lambda b: (b, 0, 0)),                 # loss mask
            pl.BlockSpec((L, 3 * NUM_HEADS, HIDDEN, HEAD_DIM), lambda b: (0, 0, 0, 0)),
            pl.BlockSpec((L, 3 * NUM_HEADS, 1, HEAD_DIM), lambda b: (0, 0, 0, 0)),
            pl.BlockSpec((L, NUM_HEADS, HEAD_DIM, HIDDEN), lambda b: (0, 0, 0, 0)),
            pl.BlockSpec((L, HIDDEN, INTERMEDIATE), lambda b: (0, 0, 0)),
            pl.BlockSpec((L, INTERMEDIATE, HIDDEN), lambda b: (0, 0, 0)),
            pl.BlockSpec((L, 1, INTERMEDIATE), lambda b: (0, 0, 0)),
            pl.BlockSpec((L, 6, HIDDEN), lambda b: (0, 0, 0)),
            pl.BlockSpec((HIDDEN, NUM_LABELS), lambda b: (0, 0)),
            pl.BlockSpec((1, NUM_LABELS), lambda b: (0, 0)),
        ],
        out_specs=pl.BlockSpec((1, 1, 2), lambda b: (b, 0, 0)),
        compiler_params=pltpu.CompilerParams(dimension_semantics=("parallel",)),
    )(x3, attn_bias, labels3, active3,
      packed['w_qkv'], packed['b_qkv'], packed['w_oh'], packed['w_i'],
      packed['w_o2'], packed['b_i'], packed['vecs'],
      packed['cls_w'], packed['cls_b'])

    num = jnp.sum(partials[:, 0, 0])
    den = jnp.sum(partials[:, 0, 1])
    # dropout before classifier is identity in eval / deterministic mode.
    # Note: max(den, 1) returns 0 when no token is active (HF CE would produce NaN).
    return num / jnp.maximum(den, 1.0)


# --------------------------- pure-JAX reference ---------------------------

def bert_ner_loss_ref(params, input_ids, labels, attention_mask):
    x = embed(params, input_ids).reshape(BS, HIDDEN)
    mask_f = attention_mask.astype(jnp.float32)
    bias = (1.0 - mask_f)[:, None, :] * (-1e9)
    scale = 1.0 / math.sqrt(HEAD_DIM)
    for lyr in params['layers']:
        q = (x @ lyr['wq'] + lyr['bq']).reshape(B, S, HIDDEN)
        k = (x @ lyr['wk'] + lyr['bk']).reshape(B, S, HIDDEN)
        v = (x @ lyr['wv'] + lyr['bv']).reshape(B, S, HIDDEN)
        ctx_proj = jnp.zeros((BS, HIDDEN), jnp.float32)
        for h in range(NUM_HEADS):
            sl = slice(h * HEAD_DIM, (h + 1) * HEAD_DIM)
            s = jnp.einsum('bqd,bkd->bqk', q[:, :, sl], k[:, :, sl]) * scale + bias
            p = jax.nn.softmax(s, axis=-1)
            ctx_h = jnp.einsum('bqk,bkd->bqd', p, v[:, :, sl])
            ctx_proj = ctx_proj + ctx_h.reshape(BS, HEAD_DIM) @ lyr['wo'][sl, :]
        h1 = _layer_norm(x + ctx_proj + lyr['bo'], lyr['ln1_g'], lyr['ln1_b'])
        inter = _gelu(h1 @ lyr['wi'] + lyr['bi'])
        ffn = inter @ lyr['wo2'] + lyr['bo2']
        x = _layer_norm(h1 + ffn, lyr['ln2_g'], lyr['ln2_b'])
    logits = x @ params['cls_w'] + params['cls_b']
    logp = jax.nn.log_softmax(logits, axis=-1)
    onehot = jax.nn.one_hot(labels.reshape(BS), NUM_LABELS, dtype=jnp.float32)
    nll = -jnp.sum(onehot * logp, axis=-1)
    active = (mask_f * (labels >= 0).astype(jnp.float32)).reshape(BS)
    return jnp.sum(nll * active) / jnp.maximum(jnp.sum(active), 1.0)


# --------------------------- deterministic params ---------------------------

def init_params(key):
    std = 0.02
    keys = iter(jax.random.split(key, 64))

    def nrm(shape):
        return jax.random.normal(next(keys), shape, jnp.float32) * std

    params = {
        'word_emb': nrm((VOCAB, HIDDEN)),
        'pos_emb':  nrm((MAX_POS, HIDDEN)),
        'type_emb': nrm((2, HIDDEN)),
        'emb_ln_g': jnp.ones((1, HIDDEN), jnp.float32),
        'emb_ln_b': jnp.zeros((1, HIDDEN), jnp.float32),
        'cls_w':    nrm((HIDDEN, NUM_LABELS)),
        'cls_b':    jnp.zeros((1, NUM_LABELS), jnp.float32),
        'layers':   [],
    }
    for _ in range(NUM_LAYERS):
        params['layers'].append({
            'wq': nrm((HIDDEN, HIDDEN)), 'bq': jnp.zeros((1, HIDDEN), jnp.float32),
            'wk': nrm((HIDDEN, HIDDEN)), 'bk': jnp.zeros((1, HIDDEN), jnp.float32),
            'wv': nrm((HIDDEN, HIDDEN)), 'bv': jnp.zeros((1, HIDDEN), jnp.float32),
            'wo': nrm((HIDDEN, HIDDEN)), 'bo': jnp.zeros((1, HIDDEN), jnp.float32),
            'ln1_g': jnp.ones((1, HIDDEN), jnp.float32),
            'ln1_b': jnp.zeros((1, HIDDEN), jnp.float32),
            'wi':  nrm((HIDDEN, INTERMEDIATE)),
            'bi':  jnp.zeros((1, INTERMEDIATE), jnp.float32),
            'wo2': nrm((INTERMEDIATE, HIDDEN)),
            'bo2': jnp.zeros((1, HIDDEN), jnp.float32),
            'ln2_g': jnp.ones((1, HIDDEN), jnp.float32),
            'ln2_b': jnp.zeros((1, HIDDEN), jnp.float32),
        })
    return params


if __name__ == "__main__":
    root = jax.random.PRNGKey(0)
    k_param, k_ids, k_lab = jax.random.split(root, 3)

    params = init_params(k_param)
    packed = pack_params(params)          # one-time packing + bf16 cast (outside jit)

    input_ids = jax.random.randint(k_ids, (B, S), 0, VOCAB, dtype=jnp.int32)
    labels = jax.random.randint(k_lab, (B, S), 0, NUM_LABELS, dtype=jnp.int32)
    attention_mask = jnp.concatenate(
        [jnp.ones((B, 6), jnp.int32), jnp.zeros((B, 2), jnp.int32)], axis=1)

    loss = jax.jit(bert_ner_loss)(packed, input_ids, labels, attention_mask)
    jax.block_until_ready(loss)

    ref = bert_ner_loss_ref(params, input_ids, labels, attention_mask)
    assert loss.shape == () and jnp.isfinite(loss)
    # bf16 MXU operands + approx reciprocal vs f32 reference -> slightly looser tolerance.
    assert jnp.allclose(loss, ref, rtol=1e-2, atol=1e-2), (float(loss), float(ref))
    print("KERNEL_OK")
</pallas_src>

<mosaic_0001>
module attributes {stable_mosaic.version = 11 : i64} {
  func.func @bert_ner_fused_kernel(%arg0: i32, %arg1: memref<1x8x32xf32, #tpu.memory_space<vmem>>, %arg2: memref<1x1x8xf32, #tpu.memory_space<vmem>>, %arg3: memref<1x8x1xi32, #tpu.memory_space<vmem>>, %arg4: memref<1x8x1xf32, #tpu.memory_space<vmem>>, %arg5: memref<2x6x32x16xbf16, #tpu.memory_space<vmem>>, %arg6: memref<2x6x1x16xf32, #tpu.memory_space<vmem>>, %arg7: memref<2x2x16x32xbf16, #tpu.memory_space<vmem>>, %arg8: memref<2x32x64xbf16, #tpu.memory_space<vmem>>, %arg9: memref<2x64x32xbf16, #tpu.memory_space<vmem>>, %arg10: memref<2x1x64xf32, #tpu.memory_space<vmem>>, %arg11: memref<2x6x32xf32, #tpu.memory_space<vmem>>, %arg12: memref<32x16xbf16, #tpu.memory_space<vmem>>, %arg13: memref<1x16xf32, #tpu.memory_space<vmem>>, %arg14: memref<1x1x2xf32, #tpu.memory_space<vmem>>) attributes {dimension_semantics = [#tpu.dimension_semantics<parallel>], iteration_bounds = array<i64: 2>, scalar_prefetch = 0 : i64, scratch_operands = 0 : i64, tpu.core_type = #tpu.core_type<tc>, window_params = [{transform_indices = @transform_0, window_bounds = array<i64: 1, 8, 32>}, {transform_indices = @transform_1, window_bounds = array<i64: 1, 1, 8>}, {transform_indices = @transform_2, window_bounds = array<i64: 1, 8, 1>}, {transform_indices = @transform_3, window_bounds = array<i64: 1, 8, 1>}, {pipeline_mode = #tpu.pipeline_mode<synchronous>, transform_indices = @transform_4, window_bounds = array<i64: 2, 6, 32, 16>}, {pipeline_mode = #tpu.pipeline_mode<synchronous>, transform_indices = @transform_5, window_bounds = array<i64: 2, 6, 1, 16>}, {pipeline_mode = #tpu.pipeline_mode<synchronous>, transform_indices = @transform_6, window_bounds = array<i64: 2, 2, 16, 32>}, {pipeline_mode = #tpu.pipeline_mode<synchronous>, transform_indices = @transform_7, window_bounds = array<i64: 2, 32, 64>}, {pipeline_mode = #tpu.pipeline_mode<synchronous>, transform_indices = @transform_8, window_bounds = array<i64: 2, 64, 32>}, {pipeline_mode = #tpu.pipeline_mode<synchronous>, transform_indices = @transform_9, window_bounds = array<i64: 2, 1, 64>}, {pipeline_mode = #tpu.pipeline_mode<synchronous>, transform_indices = @transform_10, window_bounds = array<i64: 2, 6, 32>}, {pipeline_mode = #tpu.pipeline_mode<synchronous>, transform_indices = @transform_11, window_bounds = array<i64: 32, 16>}, {pipeline_mode = #tpu.pipeline_mode<synchronous>, transform_indices = @transform_12, window_bounds = array<i64: 1, 16>}, {transform_indices = @transform_13, window_bounds = array<i64: 1, 1, 2>}]} {
    %c0 = arith.constant 0 : index
    %c0_0 = arith.constant 0 : index
    %c0_1 = arith.constant 0 : index
    %0 = vector.load %arg1[%c0, %c0_0, %c0_1] : memref<1x8x32xf32, #tpu.memory_space<vmem>>, vector<1x8x32xf32>
    %1 = vector.shape_cast %0 : vector<1x8x32xf32> to vector<8x32xf32>
    %c0_2 = arith.constant 0 : index
    %c0_3 = arith.constant 0 : index
    %c0_4 = arith.constant 0 : index
    %2 = vector.load %arg2[%c0_2, %c0_3, %c0_4] : memref<1x1x8xf32, #tpu.memory_space<vmem>>, vector<1x1x8xf32>
    %3 = vector.shape_cast %2 : vector<1x1x8xf32> to vector<1x8xf32>
    %c0_5 = arith.constant 0 : index
    %c0_6 = arith.constant 0 : index
    %c0_7 = arith.constant 0 : index
    %c0_8 = arith.constant 0 : index
    %4 = vector.load %arg5[%c0_5, %c0_6, %c0_7, %c0_8] : memref<2x6x32x16xbf16, #tpu.memory_space<vmem>>, vector<1x6x32x16xbf16>
    %5 = vector.shape_cast %4 : vector<1x6x32x16xbf16> to vector<6x32x16xbf16>
    %c0_9 = arith.constant 0 : index
    %c0_10 = arith.constant 0 : index
    %c0_11 = arith.constant 0 : index
    %c0_12 = arith.constant 0 : index
    %6 = vector.load %arg6[%c0_9, %c0_10, %c0_11, %c0_12] : memref<2x6x1x16xf32, #tpu.memory_space<vmem>>, vector<1x6x1x16xf32>
    %7 = vector.shape_cast %6 : vector<1x6x1x16xf32> to vector<6x1x16xf32>
    %c0_13 = arith.constant 0 : index
    %c0_14 = arith.constant 0 : index
    %c0_15 = arith.constant 0 : index
    %c0_16 = arith.constant 0 : index
    %8 = vector.load %arg7[%c0_13, %c0_14, %c0_15, %c0_16] : memref<2x2x16x32xbf16, #tpu.memory_space<vmem>>, vector<1x2x16x32xbf16>
    %9 = vector.shape_cast %8 : vector<1x2x16x32xbf16> to vector<2x16x32xbf16>
    %c0_17 = arith.constant 0 : index
    %c0_18 = arith.constant 0 : index
    %c0_19 = arith.constant 0 : index
    %10 = vector.load %arg8[%c0_17, %c0_18, %c0_19] : memref<2x32x64xbf16, #tpu.memory_space<vmem>>, vector<1x32x64xbf16>
    %11 = vector.shape_cast %10 : vector<1x32x64xbf16> to vector<32x64xbf16>
    %c0_20 = arith.constant 0 : index
    %c0_21 = arith.constant 0 : index
    %c0_22 = arith.constant 0 : index
    %12 = vector.load %arg9[%c0_20, %c0_21, %c0_22] : memref<2x64x32xbf16, #tpu.memory_space<vmem>>, vector<1x64x32xbf16>
    %13 = vector.shape_cast %12 : vector<1x64x32xbf16> to vector<64x32xbf16>
    %c0_23 = arith.constant 0 : index
    %c0_24 = arith.constant 0 : index
    %c0_25 = arith.constant 0 : index
    %14 = vector.load %arg11[%c0_23, %c0_24, %c0_25] : memref<2x6x32xf32, #tpu.memory_space<vmem>>, vector<1x6x32xf32>
    %15 = vector.shape_cast %14 : vector<1x6x32xf32> to vector<6x32xf32>
    %16 = vector.extract_strided_slice %15 {offsets = [0, 0], sizes = [1, 32], strides = [1, 1]} : vector<6x32xf32> to vector<1x32xf32>
    %17 = vector.extract_strided_slice %15 {offsets = [1, 0], sizes = [1, 32], strides = [1, 1]} : vector<6x32xf32> to vector<1x32xf32>
    %18 = vector.extract_strided_slice %15 {offsets = [2, 0], sizes = [1, 32], strides = [1, 1]} : vector<6x32xf32> to vector<1x32xf32>
    %19 = vector.extract_strided_slice %15 {offsets = [3, 0], sizes = [1, 32], strides = [1, 1]} : vector<6x32xf32> to vector<1x32xf32>
    %20 = vector.extract_strided_slice %15 {offsets = [4, 0], sizes = [1, 32], strides = [1, 1]} : vector<6x32xf32> to vector<1x32xf32>
    %21 = vector.extract_strided_slice %15 {offsets = [5, 0], sizes = [1, 32], strides = [1, 1]} : vector<6x32xf32> to vector<1x32xf32>
    %22 = arith.truncf %1 : vector<8x32xf32> to vector<8x32xbf16>
    %23 = vector.shape_cast %22 : vector<8x32xbf16> to vector<1x8x32xbf16>
    %24 = vector.shape_cast %23 : vector<1x8x32xbf16> to vector<1x8x32xbf16>
    %25 = vector.broadcast %24 : vector<1x8x32xbf16> to vector<6x8x32xbf16>
    "tpu.trace_start"() <{level = 10 : i32, message = "csd,cde->cse"}> : () -> ()
    %cst = arith.constant dense<0.000000e+00> : vector<6x8x16xf32>
    %26 = tpu.matmul %25, %5, %cst {dimension_numbers = #tpu.dot_dimension_numbers<[2], [1], [1], [2], [0, 0, 0, 1, 1, 2], [0], [0]>} : vector<6x8x32xbf16>, vector<6x32x16xbf16>, vector<6x8x16xf32> -> vector<6x8x16xf32>
    "tpu.trace_stop"() : () -> ()
    %27 = vector.broadcast %7 : vector<6x1x16xf32> to vector<6x8x16xf32>
    %28 = arith.addf %26, %27 : vector<6x8x16xf32>
    %29 = vector.extract_strided_slice %28 {offsets = [0, 0, 0], sizes = [2, 8, 16], strides = [1, 1, 1]} : vector<6x8x16xf32> to vector<2x8x16xf32>
    %30 = arith.truncf %29 : vector<2x8x16xf32> to vector<2x8x16xbf16>
    %31 = vector.extract_strided_slice %28 {offsets = [2, 0, 0], sizes = [2, 8, 16], strides = [1, 1, 1]} : vector<6x8x16xf32> to vector<2x8x16xf32>
    %32 = arith.truncf %31 : vector<2x8x16xf32> to vector<2x8x16xbf16>
    %33 = vector.extract_strided_slice %28 {offsets = [4, 0, 0], sizes = [2, 8, 16], strides = [1, 1, 1]} : vector<6x8x16xf32> to vector<2x8x16xf32>
    %34 = arith.truncf %33 : vector<2x8x16xf32> to vector<2x8x16xbf16>
    "tpu.trace_start"() <{level = 10 : i32, message = "hqd,hkd->hqk"}> : () -> ()
    %cst_26 = arith.constant dense<0.000000e+00> : vector<2x8x8xf32>
    %35 = tpu.matmul %30, %32, %cst_26 {dimension_numbers = #tpu.dot_dimension_numbers<[2], [2], [1], [1], [0, 0, 0, 1, 1, 1], [0], [0]>} : vector<2x8x16xbf16>, vector<2x8x16xbf16>, vector<2x8x8xf32> -> vector<2x8x8xf32>
    "tpu.trace_stop"() : () -> ()
    %36 = vector.shape_cast %3 : vector<1x8xf32> to vector<1x1x8xf32>
    %37 = vector.broadcast %36 : vector<1x1x8xf32> to vector<2x8x8xf32>
    %38 = arith.addf %35, %37 : vector<2x8x8xf32>
    %cst_27 = arith.constant dense<0xFF800000> : vector<2x8xf32>
    %39 = vector.multi_reduction <maximumf>, %38, %cst_27 [2] : vector<2x8x8xf32> to vector<2x8xf32>
    %40 = vector.shape_cast %39 : vector<2x8xf32> to vector<2x8x1xf32>
    %41 = vector.broadcast %40 : vector<2x8x1xf32> to vector<2x8x8xf32>
    %42 = arith.subf %38, %41 : vector<2x8x8xf32>
    %43 = math.exp %42 : vector<2x8x8xf32>
    %cst_28 = arith.constant dense<0.000000e+00> : vector<2x8xf32>
    %44 = vector.multi_reduction <add>, %43, %cst_28 [2] : vector<2x8x8xf32> to vector<2x8xf32>
    %45 = vector.shape_cast %44 : vector<2x8xf32> to vector<2x8x1xf32>
    %46 = tpu.reciprocal %45 {approx = true} : vector<2x8x1xf32> -> vector<2x8x1xf32>
    %47 = vector.broadcast %46 : vector<2x8x1xf32> to vector<2x8x8xf32>
    %48 = arith.mulf %43, %47 : vector<2x8x8xf32>
    %49 = arith.truncf %48 : vector<2x8x8xf32> to vector<2x8x8xbf16>
    "tpu.trace_start"() <{level = 10 : i32, message = "hqk,hkd->hqd"}> : () -> ()
    %cst_29 = arith.constant dense<0.000000e+00> : vector<2x8x16xf32>
    %50 = tpu.matmul %49, %34, %cst_29 {dimension_numbers = #tpu.dot_dimension_numbers<[2], [1], [1], [2], [0, 0, 0, 1, 1, 2], [0], [0]>} : vector<2x8x8xbf16>, vector<2x8x16xbf16>, vector<2x8x16xf32> -> vector<2x8x16xf32>
    "tpu.trace_stop"() : () -> ()
    %51 = arith.truncf %50 : vector<2x8x16xf32> to vector<2x8x16xbf16>
    "tpu.trace_start"() <{level = 10 : i32, message = "hqd,hdo->hqo"}> : () -> ()
    %cst_30 = arith.constant dense<0.000000e+00> : vector<2x8x32xf32>
    %52 = tpu.matmul %51, %9, %cst_30 {dimension_numbers = #tpu.dot_dimension_numbers<[2], [1], [1], [2], [0, 0, 0, 1, 1, 2], [0], [0]>} : vector<2x8x16xbf16>, vector<2x16x32xbf16>, vector<2x8x32xf32> -> vector<2x8x32xf32>
    "tpu.trace_stop"() : () -> ()
    %cst_31 = arith.constant dense<0.000000e+00> : vector<8x32xf32>
    %53 = vector.multi_reduction <add>, %52, %cst_31 [0] : vector<2x8x32xf32> to vector<8x32xf32>
    %54 = arith.addf %1, %53 : vector<8x32xf32>
    %55 = vector.broadcast %16 : vector<1x32xf32> to vector<8x32xf32>
    %56 = arith.addf %54, %55 : vector<8x32xf32>
    %cst_32 = arith.constant dense<0.000000e+00> : vector<8xf32>
    %57 = vector.multi_reduction <add>, %56, %cst_32 [1] : vector<8x32xf32> to vector<8xf32>
    %58 = vector.shape_cast %57 : vector<8xf32> to vector<8x1xf32>
    %cst_33 = arith.constant 3.200000e+01 : f32
    %59 = vector.broadcast %cst_33 : f32 to vector<8x1xf32>
    %60 = arith.divf %58, %59 : vector<8x1xf32>
    %61 = vector.broadcast %60 : vector<8x1xf32> to vector<8x32xf32>
    %62 = arith.subf %56, %61 : vector<8x32xf32>
    %63 = arith.mulf %62, %62 : vector<8x32xf32>
    %cst_34 = arith.constant dense<0.000000e+00> : vector<8xf32>
    %64 = vector.multi_reduction <add>, %63, %cst_34 [1] : vector<8x32xf32> to vector<8xf32>
    %65 = vector.shape_cast %64 : vector<8xf32> to vector<8x1xf32>
    %cst_35 = arith.constant 3.200000e+01 : f32
    %66 = vector.broadcast %cst_35 : f32 to vector<8x1xf32>
    %67 = arith.divf %65, %66 : vector<8x1xf32>
    %68 = vector.broadcast %60 : vector<8x1xf32> to vector<8x32xf32>
    %69 = arith.subf %56, %68 : vector<8x32xf32>
    %cst_36 = arith.constant 9.99999996E-13 : f32
    %70 = vector.broadcast %cst_36 : f32 to vector<8x1xf32>
    %71 = arith.addf %67, %70 : vector<8x1xf32>
    %72 = math.rsqrt %71 : vector<8x1xf32>
    %73 = vector.broadcast %72 : vector<8x1xf32> to vector<8x32xf32>
    %74 = arith.mulf %69, %73 : vector<8x32xf32>
    %75 = vector.broadcast %17 : vector<1x32xf32> to vector<8x32xf32>
    %76 = arith.mulf %74, %75 : vector<8x32xf32>
    %77 = vector.broadcast %18 : vector<1x32xf32> to vector<8x32xf32>
    %78 = arith.addf %76, %77 : vector<8x32xf32>
    %79 = arith.truncf %78 : vector<8x32xf32> to vector<8x32xbf16>
    %cst_37 = arith.constant dense<0.000000e+00> : vector<8x64xf32>
    %80 = tpu.matmul %79, %11, %cst_37 {dimension_numbers = #tpu.dot_dimension_numbers<[1], [0], [0], [1], [0, 0, 1, 1], [], []>} : vector<8x32xbf16>, vector<32x64xbf16>, vector<8x64xf32> -> vector<8x64xf32>
    %c0_38 = arith.constant 0 : index
    %c0_39 = arith.constant 0 : index
    %c0_40 = arith.constant 0 : index
    %81 = vector.load %arg10[%c0_38, %c0_39, %c0_40] : memref<2x1x64xf32, #tpu.memory_space<vmem>>, vector<1x1x64xf32>
    %82 = vector.shape_cast %81 : vector<1x1x64xf32> to vector<1x64xf32>
    %83 = vector.broadcast %82 : vector<1x64xf32> to vector<8x64xf32>
    %84 = arith.addf %80, %83 : vector<8x64xf32>
    %cst_41 = arith.constant 5.000000e-01 : f32
    %85 = vector.broadcast %cst_41 : f32 to vector<8x64xf32>
    %86 = arith.mulf %85, %84 : vector<8x64xf32>
    %cst_42 = arith.constant 4.471500e-02 : f32
    %87 = vector.broadcast %cst_42 : f32 to vector<8x64xf32>
    %88 = arith.mulf %87, %84 : vector<8x64xf32>
    %89 = arith.mulf %88, %84 : vector<8x64xf32>
    %90 = arith.mulf %89, %84 : vector<8x64xf32>
    %91 = arith.addf %84, %90 : vector<8x64xf32>
    %cst_43 = arith.constant 0.797884583 : f32
    %92 = vector.broadcast %cst_43 : f32 to vector<8x64xf32>
    %93 = arith.mulf %92, %91 : vector<8x64xf32>
    %94 = math.tanh %93 : vector<8x64xf32>
    %cst_44 = arith.constant 1.000000e+00 : f32
    %95 = vector.broadcast %cst_44 : f32 to vector<8x64xf32>
    %96 = arith.addf %95, %94 : vector<8x64xf32>
    %97 = arith.mulf %86, %96 : vector<8x64xf32>
    %98 = arith.truncf %97 : vector<8x64xf32> to vector<8x64xbf16>
    %cst_45 = arith.constant dense<0.000000e+00> : vector<8x32xf32>
    %99 = tpu.matmul %98, %13, %cst_45 {dimension_numbers = #tpu.dot_dimension_numbers<[1], [0], [0], [1], [0, 0, 1, 1], [], []>} : vector<8x64xbf16>, vector<64x32xbf16>, vector<8x32xf32> -> vector<8x32xf32>
    %100 = vector.broadcast %19 : vector<1x32xf32> to vector<8x32xf32>
    %101 = arith.addf %99, %100 : vector<8x32xf32>
    %102 = arith.addf %78, %101 : vector<8x32xf32>
    %cst_46 = arith.constant dense<0.000000e+00> : vector<8xf32>
    %103 = vector.multi_reduction <add>, %102, %cst_46 [1] : vector<8x32xf32> to vector<8xf32>
    %104 = vector.shape_cast %103 : vector<8xf32> to vector<8x1xf32>
    %cst_47 = arith.constant 3.200000e+01 : f32
    %105 = vector.broadcast %cst_47 : f32 to vector<8x1xf32>
    %106 = arith.divf %104, %105 : vector<8x1xf32>
    %107 = vector.broadcast %106 : vector<8x1xf32> to vector<8x32xf32>
    %108 = arith.subf %102, %107 : vector<8x32xf32>
    %109 = arith.mulf %108, %108 : vector<8x32xf32>
    %cst_48 = arith.constant dense<0.000000e+00> : vector<8xf32>
    %110 = vector.multi_reduction <add>, %109, %cst_48 [1] : vector<8x32xf32> to vector<8xf32>
    %111 = vector.shape_cast %110 : vector<8xf32> to vector<8x1xf32>
    %cst_49 = arith.constant 3.200000e+01 : f32
    %112 = vector.broadcast %cst_49 : f32 to vector<8x1xf32>
    %113 = arith.divf %111, %112 : vector<8x1xf32>
    %114 = vector.broadcast %106 : vector<8x1xf32> to vector<8x32xf32>
    %115 = arith.subf %102, %114 : vector<8x32xf32>
    %cst_50 = arith.constant 9.99999996E-13 : f32
    %116 = vector.broadcast %cst_50 : f32 to vector<8x1xf32>
    %117 = arith.addf %113, %116 : vector<8x1xf32>
    %118 = math.rsqrt %117 : vector<8x1xf32>
    %119 = vector.broadcast %118 : vector<8x1xf32> to vector<8x32xf32>
    %120 = arith.mulf %115, %119 : vector<8x32xf32>
    %121 = vector.broadcast %20 : vector<1x32xf32> to vector<8x32xf32>
    %122 = arith.mulf %120, %121 : vector<8x32xf32>
    %123 = vector.broadcast %21 : vector<1x32xf32> to vector<8x32xf32>
    %124 = arith.addf %122, %123 : vector<8x32xf32>
    %c1 = arith.constant 1 : index
    %c0_51 = arith.constant 0 : index
    %c0_52 = arith.constant 0 : index
    %c0_53 = arith.constant 0 : index
    %125 = vector.load %arg5[%c1, %c0_51, %c0_52, %c0_53] : memref<2x6x32x16xbf16, #tpu.memory_space<vmem>>, vector<1x6x32x16xbf16>
    %126 = vector.shape_cast %125 : vector<1x6x32x16xbf16> to vector<6x32x16xbf16>
    %c1_54 = arith.constant 1 : index
    %c0_55 = arith.constant 0 : index
    %c0_56 = arith.constant 0 : index
    %c0_57 = arith.constant 0 : index
    %127 = vector.load %arg6[%c1_54, %c0_55, %c0_56, %c0_57] : memref<2x6x1x16xf32, #tpu.memory_space<vmem>>, vector<1x6x1x16xf32>
    %128 = vector.shape_cast %127 : vector<1x6x1x16xf32> to vector<6x1x16xf32>
    %c1_58 = arith.constant 1 : index
    %c0_59 = arith.constant 0 : index
    %c0_60 = arith.constant 0 : index
    %c0_61 = arith.constant 0 : index
    %129 = vector.load %arg7[%c1_58, %c0_59, %c0_60, %c0_61] : memref<2x2x16x32xbf16, #tpu.memory_space<vmem>>, vector<1x2x16x32xbf16>
    %130 = vector.shape_cast %129 : vector<1x2x16x32xbf16> to vector<2x16x32xbf16>
    %c1_62 = arith.constant 1 : index
    %c0_63 = arith.constant 0 : index
    %c0_64 = arith.constant 0 : index
    %131 = vector.load %arg8[%c1_62, %c0_63, %c0_64] : memref<2x32x64xbf16, #tpu.memory_space<vmem>>, vector<1x32x64xbf16>
    %132 = vector.shape_cast %131 : vector<1x32x64xbf16> to vector<32x64xbf16>
    %c1_65 = arith.constant 1 : index
    %c0_66 = arith.constant 0 : index
    %c0_67 = arith.constant 0 : index
    %133 = vector.load %arg9[%c1_65, %c0_66, %c0_67] : memref<2x64x32xbf16, #tpu.memory_space<vmem>>, vector<1x64x32xbf16>
    %134 = vector.shape_cast %133 : vector<1x64x32xbf16> to vector<64x32xbf16>
    %c1_68 = arith.constant 1 : index
    %c0_69 = arith.constant 0 : index
    %c0_70 = arith.constant 0 : index
    %135 = vector.load %arg11[%c1_68, %c0_69, %c0_70] : memref<2x6x32xf32, #tpu.memory_space<vmem>>, vector<1x6x32xf32>
    %136 = vector.shape_cast %135 : vector<1x6x32xf32> to vector<6x32xf32>
    %137 = vector.extract_strided_slice %136 {offsets = [0, 0], sizes = [1, 32], strides = [1, 1]} : vector<6x32xf32> to vector<1x32xf32>
    %138 = vector.extract_strided_slice %136 {offsets = [1, 0], sizes = [1, 32], strides = [1, 1]} : vector<6x32xf32> to vector<1x32xf32>
    %139 = vector.extract_strided_slice %136 {offsets = [2, 0], sizes = [1, 32], strides = [1, 1]} : vector<6x32xf32> to vector<1x32xf32>
    %140 = vector.extract_strided_slice %136 {offsets = [3, 0], sizes = [1, 32], strides = [1, 1]} : vector<6x32xf32> to vector<1x32xf32>
    %141 = vector.extract_strided_slice %136 {offsets = [4, 0], sizes = [1, 32], strides = [1, 1]} : vector<6x32xf32> to vector<1x32xf32>
    %142 = vector.extract_strided_slice %136 {offsets = [5, 0], sizes = [1, 32], strides = [1, 1]} : vector<6x32xf32> to vector<1x32xf32>
    %143 = arith.truncf %124 : vector<8x32xf32> to vector<8x32xbf16>
    %144 = vector.shape_cast %143 : vector<8x32xbf16> to vector<1x8x32xbf16>
    %145 = vector.shape_cast %144 : vector<1x8x32xbf16> to vector<1x8x32xbf16>
    %146 = vector.broadcast %145 : vector<1x8x32xbf16> to vector<6x8x32xbf16>
    "tpu.trace_start"() <{level = 10 : i32, message = "csd,cde->cse"}> : () -> ()
    %cst_71 = arith.constant dense<0.000000e+00> : vector<6x8x16xf32>
    %147 = tpu.matmul %146, %126, %cst_71 {dimension_numbers = #tpu.dot_dimension_numbers<[2], [1], [1], [2], [0, 0, 0, 1, 1, 2], [0], [0]>} : vector<6x8x32xbf16>, vector<6x32x16xbf16>, vector<6x8x16xf32> -> vector<6x8x16xf32>
    "tpu.trace_stop"() : () -> ()
    %148 = vector.broadcast %128 : vector<6x1x16xf32> to vector<6x8x16xf32>
    %149 = arith.addf %147, %148 : vector<6x8x16xf32>
    %150 = vector.extract_strided_slice %149 {offsets = [0, 0, 0], sizes = [2, 8, 16], strides = [1, 1, 1]} : vector<6x8x16xf32> to vector<2x8x16xf32>
    %151 = arith.truncf %150 : vector<2x8x16xf32> to vector<2x8x16xbf16>
    %152 = vector.extract_strided_slice %149 {offsets = [2, 0, 0], sizes = [2, 8, 16], strides = [1, 1, 1]} : vector<6x8x16xf32> to vector<2x8x16xf32>
    %153 = arith.truncf %152 : vector<2x8x16xf32> to vector<2x8x16xbf16>
    %154 = vector.extract_strided_slice %149 {offsets = [4, 0, 0], sizes = [2, 8, 16], strides = [1, 1, 1]} : vector<6x8x16xf32> to vector<2x8x16xf32>
    %155 = arith.truncf %154 : vector<2x8x16xf32> to vector<2x8x16xbf16>
    "tpu.trace_start"() <{level = 10 : i32, message = "hqd,hkd->hqk"}> : () -> ()
    %cst_72 = arith.constant dense<0.000000e+00> : vector<2x8x8xf32>
    %156 = tpu.matmul %151, %153, %cst_72 {dimension_numbers = #tpu.dot_dimension_numbers<[2], [2], [1], [1], [0, 0, 0, 1, 1, 1], [0], [0]>} : vector<2x8x16xbf16>, vector<2x8x16xbf16>, vector<2x8x8xf32> -> vector<2x8x8xf32>
    "tpu.trace_stop"() : () -> ()
    %157 = vector.shape_cast %3 : vector<1x8xf32> to vector<1x1x8xf32>
    %158 = vector.broadcast %157 : vector<1x1x8xf32> to vector<2x8x8xf32>
    %159 = arith.addf %156, %158 : vector<2x8x8xf32>
    %cst_73 = arith.constant dense<0xFF800000> : vector<2x8xf32>
    %160 = vector.multi_reduction <maximumf>, %159, %cst_73 [2] : vector<2x8x8xf32> to vector<2x8xf32>
    %161 = vector.shape_cast %160 : vector<2x8xf32> to vector<2x8x1xf32>
    %162 = vector.broadcast %161 : vector<2x8x1xf32> to vector<2x8x8xf32>
    %163 = arith.subf %159, %162 : vector<2x8x8xf32>
    %164 = math.exp %163 : vector<2x8x8xf32>
    %cst_74 = arith.constant dense<0.000000e+00> : vector<2x8xf32>
    %165 = vector.multi_reduction <add>, %164, %cst_74 [2] : vector<2x8x8xf32> to vector<2x8xf32>
    %166 = vector.shape_cast %165 : vector<2x8xf32> to vector<2x8x1xf32>
    %167 = tpu.reciprocal %166 {approx = true} : vector<2x8x1xf32> -> vector<2x8x1xf32>
    %168 = vector.broadcast %167 : vector<2x8x1xf32> to vector<2x8x8xf32>
    %169 = arith.mulf %164, %168 : vector<2x8x8xf32>
    %170 = arith.truncf %169 : vector<2x8x8xf32> to vector<2x8x8xbf16>
    "tpu.trace_start"() <{level = 10 : i32, message = "hqk,hkd->hqd"}> : () -> ()
    %cst_75 = arith.constant dense<0.000000e+00> : vector<2x8x16xf32>
    %171 = tpu.matmul %170, %155, %cst_75 {dimension_numbers = #tpu.dot_dimension_numbers<[2], [1], [1], [2], [0, 0, 0, 1, 1, 2], [0], [0]>} : vector<2x8x8xbf16>, vector<2x8x16xbf16>, vector<2x8x16xf32> -> vector<2x8x16xf32>
    "tpu.trace_stop"() : () -> ()
    %172 = arith.truncf %171 : vector<2x8x16xf32> to vector<2x8x16xbf16>
    "tpu.trace_start"() <{level = 10 : i32, message = "hqd,hdo->hqo"}> : () -> ()
    %cst_76 = arith.constant dense<0.000000e+00> : vector<2x8x32xf32>
    %173 = tpu.matmul %172, %130, %cst_76 {dimension_numbers = #tpu.dot_dimension_numbers<[2], [1], [1], [2], [0, 0, 0, 1, 1, 2], [0], [0]>} : vector<2x8x16xbf16>, vector<2x16x32xbf16>, vector<2x8x32xf32> -> vector<2x8x32xf32>
    "tpu.trace_stop"() : () -> ()
    %cst_77 = arith.constant dense<0.000000e+00> : vector<8x32xf32>
    %174 = vector.multi_reduction <add>, %173, %cst_77 [0] : vector<2x8x32xf32> to vector<8x32xf32>
    %175 = arith.addf %124, %174 : vector<8x32xf32>
    %176 = vector.broadcast %137 : vector<1x32xf32> to vector<8x32xf32>
    %177 = arith.addf %175, %176 : vector<8x32xf32>
    %cst_78 = arith.constant dense<0.000000e+00> : vector<8xf32>
    %178 = vector.multi_reduction <add>, %177, %cst_78 [1] : vector<8x32xf32> to vector<8xf32>
    %179 = vector.shape_cast %178 : vector<8xf32> to vector<8x1xf32>
    %cst_79 = arith.constant 3.200000e+01 : f32
    %180 = vector.broadcast %cst_79 : f32 to vector<8x1xf32>
    %181 = arith.divf %179, %180 : vector<8x1xf32>
    %182 = vector.broadcast %181 : vector<8x1xf32> to vector<8x32xf32>
    %183 = arith.subf %177, %182 : vector<8x32xf32>
    %184 = arith.mulf %183, %183 : vector<8x32xf32>
    %cst_80 = arith.constant dense<0.000000e+00> : vector<8xf32>
    %185 = vector.multi_reduction <add>, %184, %cst_80 [1] : vector<8x32xf32> to vector<8xf32>
    %186 = vector.shape_cast %185 : vector<8xf32> to vector<8x1xf32>
    %cst_81 = arith.constant 3.200000e+01 : f32
    %187 = vector.broadcast %cst_81 : f32 to vector<8x1xf32>
    %188 = arith.divf %186, %187 : vector<8x1xf32>
    %189 = vector.broadcast %181 : vector<8x1xf32> to vector<8x32xf32>
    %190 = arith.subf %177, %189 : vector<8x32xf32>
    %cst_82 = arith.constant 9.99999996E-13 : f32
    %191 = vector.broadcast %cst_82 : f32 to vector<8x1xf32>
    %192 = arith.addf %188, %191 : vector<8x1xf32>
    %193 = math.rsqrt %192 : vector<8x1xf32>
    %194 = vector.broadcast %193 : vector<8x1xf32> to vector<8x32xf32>
    %195 = arith.mulf %190, %194 : vector<8x32xf32>
    %196 = vector.broadcast %138 : vector<1x32xf32> to vector<8x32xf32>
    %197 = arith.mulf %195, %196 : vector<8x32xf32>
    %198 = vector.broadcast %139 : vector<1x32xf32> to vector<8x32xf32>
    %199 = arith.addf %197, %198 : vector<8x32xf32>
    %200 = arith.truncf %199 : vector<8x32xf32> to vector<8x32xbf16>
    %cst_83 = arith.constant dense<0.000000e+00> : vector<8x64xf32>
    %201 = tpu.matmul %200, %132, %cst_83 {dimension_numbers = #tpu.dot_dimension_numbers<[1], [0], [0], [1], [0, 0, 1, 1], [], []>} : vector<8x32xbf16>, vector<32x64xbf16>, vector<8x64xf32> -> vector<8x64xf32>
    %c1_84 = arith.constant 1 : index
    %c0_85 = arith.constant 0 : index
    %c0_86 = arith.constant 0 : index
    %202 = vector.load %arg10[%c1_84, %c0_85, %c0_86] : memref<2x1x64xf32, #tpu.memory_space<vmem>>, vector<1x1x64xf32>
    %203 = vector.shape_cast %202 : vector<1x1x64xf32> to vector<1x64xf32>
    %204 = vector.broadcast %203 : vector<1x64xf32> to vector<8x64xf32>
    %205 = arith.addf %201, %204 : vector<8x64xf32>
    %cst_87 = arith.constant 5.000000e-01 : f32
    %206 = vector.broadcast %cst_87 : f32 to vector<8x64xf32>
    %207 = arith.mulf %206, %205 : vector<8x64xf32>
    %cst_88 = arith.constant 4.471500e-02 : f32
    %208 = vector.broadcast %cst_88 : f32 to vector<8x64xf32>
    %209 = arith.mulf %208, %205 : vector<8x64xf32>
    %210 = arith.mulf %209, %205 : vector<8x64xf32>
    %211 = arith.mulf %210, %205 : vector<8x64xf32>
    %212 = arith.addf %205, %211 : vector<8x64xf32>
    %cst_89 = arith.constant 0.797884583 : f32
    %213 = vector.broadcast %cst_89 : f32 to vector<8x64xf32>
    %214 = arith.mulf %213, %212 : vector<8x64xf32>
    %215 = math.tanh %214 : vector<8x64xf32>
    %cst_90 = arith.constant 1.000000e+00 : f32
    %216 = vector.broadcast %cst_90 : f32 to vector<8x64xf32>
    %217 = arith.addf %216, %215 : vector<8x64xf32>
    %218 = arith.mulf %207, %217 : vector<8x64xf32>
    %219 = arith.truncf %218 : vector<8x64xf32> to vector<8x64xbf16>
    %cst_91 = arith.constant dense<0.000000e+00> : vector<8x32xf32>
    %220 = tpu.matmul %219, %134, %cst_91 {dimension_numbers = #tpu.dot_dimension_numbers<[1], [0], [0], [1], [0, 0, 1, 1], [], []>} : vector<8x64xbf16>, vector<64x32xbf16>, vector<8x32xf32> -> vector<8x32xf32>
    %221 = vector.broadcast %140 : vector<1x32xf32> to vector<8x32xf32>
    %222 = arith.addf %220, %221 : vector<8x32xf32>
    %223 = arith.addf %199, %222 : vector<8x32xf32>
    %cst_92 = arith.constant dense<0.000000e+00> : vector<8xf32>
    %224 = vector.multi_reduction <add>, %223, %cst_92 [1] : vector<8x32xf32> to vector<8xf32>
    %225 = vector.shape_cast %224 : vector<8xf32> to vector<8x1xf32>
    %cst_93 = arith.constant 3.200000e+01 : f32
    %226 = vector.broadcast %cst_93 : f32 to vector<8x1xf32>
    %227 = arith.divf %225, %226 : vector<8x1xf32>
    %228 = vector.broadcast %227 : vector<8x1xf32> to vector<8x32xf32>
    %229 = arith.subf %223, %228 : vector<8x32xf32>
    %230 = arith.mulf %229, %229 : vector<8x32xf32>
    %cst_94 = arith.constant dense<0.000000e+00> : vector<8xf32>
    %231 = vector.multi_reduction <add>, %230, %cst_94 [1] : vector<8x32xf32> to vector<8xf32>
    %232 = vector.shape_cast %231 : vector<8xf32> to vector<8x1xf32>
    %cst_95 = arith.constant 3.200000e+01 : f32
    %233 = vector.broadcast %cst_95 : f32 to vector<8x1xf32>
    %234 = arith.divf %232, %233 : vector<8x1xf32>
    %235 = vector.broadcast %227 : vector<8x1xf32> to vector<8x32xf32>
    %236 = arith.subf %223, %235 : vector<8x32xf32>
    %cst_96 = arith.constant 9.99999996E-13 : f32
    %237 = vector.broadcast %cst_96 : f32 to vector<8x1xf32>
    %238 = arith.addf %234, %237 : vector<8x1xf32>
    %239 = math.rsqrt %238 : vector<8x1xf32>
    %240 = vector.broadcast %239 : vector<8x1xf32> to vector<8x32xf32>
    %241 = arith.mulf %236, %240 : vector<8x32xf32>
    %242 = vector.broadcast %141 : vector<1x32xf32> to vector<8x32xf32>
    %243 = arith.mulf %241, %242 : vector<8x32xf32>
    %244 = vector.broadcast %142 : vector<1x32xf32> to vector<8x32xf32>
    %245 = arith.addf %243, %244 : vector<8x32xf32>
    %246 = arith.truncf %245 : vector<8x32xf32> to vector<8x32xbf16>
    %c0_97 = arith.constant 0 : index
    %c0_98 = arith.constant 0 : index
    %247 = vector.load %arg12[%c0_97, %c0_98] : memref<32x16xbf16, #tpu.memory_space<vmem>>, vector<32x16xbf16>
    %cst_99 = arith.constant dense<0.000000e+00> : vector<8x16xf32>
    %248 = tpu.matmul %246, %247, %cst_99 {dimension_numbers = #tpu.dot_dimension_numbers<[1], [0], [0], [1], [0, 0, 1, 1], [], []>} : vector<8x32xbf16>, vector<32x16xbf16>, vector<8x16xf32> -> vector<8x16xf32>
    %c0_100 = arith.constant 0 : index
    %c0_101 = arith.constant 0 : index
    %249 = vector.load %arg13[%c0_100, %c0_101] : memref<1x16xf32, #tpu.memory_space<vmem>>, vector<1x16xf32>
    %250 = vector.broadcast %249 : vector<1x16xf32> to vector<8x16xf32>
    %251 = arith.addf %248, %250 : vector<8x16xf32>
    %cst_102 = arith.constant dense<0xFF800000> : vector<8xf32>
    %252 = vector.multi_reduction <maximumf>, %251, %cst_102 [1] : vector<8x16xf32> to vector<8xf32>
    %253 = vector.shape_cast %252 : vector<8xf32> to vector<8x1xf32>
    %254 = vector.broadcast %253 : vector<8x1xf32> to vector<8x16xf32>
    %255 = arith.subf %251, %254 : vector<8x16xf32>
    %256 = math.exp %255 : vector<8x16xf32>
    %cst_103 = arith.constant dense<0.000000e+00> : vector<8xf32>
    %257 = vector.multi_reduction <add>, %256, %cst_103 [1] : vector<8x16xf32> to vector<8xf32>
    %258 = vector.shape_cast %257 : vector<8xf32> to vector<8x1xf32>
    %259 = math.log %258 : vector<8x1xf32>
    %260 = arith.addf %253, %259 : vector<8x1xf32>
    %261 = vector.broadcast %260 : vector<8x1xf32> to vector<8x16xf32>
    %262 = arith.subf %251, %261 : vector<8x16xf32>
    %c0_104 = arith.constant 0 : index
    %c0_105 = arith.constant 0 : index
    %c0_106 = arith.constant 0 : index
    %263 = vector.load %arg3[%c0_104, %c0_105, %c0_106] : memref<1x8x1xi32, #tpu.memory_space<vmem>>, vector<1x8x1xi32>
    %264 = vector.shape_cast %263 : vector<1x8x1xi32> to vector<8x1xi32>
    %265 = tpu.iota {dimensions = array<i32: 1>} : vector<8x16xi32>
    %266 = vector.broadcast %264 : vector<8x1xi32> to vector<8x16xi32>
    %267 = arith.cmpi eq, %265, %266 : vector<8x16xi32>
    %268 = arith.extui %267 : vector<8x16xi1> to vector<8x16xi32>
    %269 = arith.sitofp %268 : vector<8x16xi32> to vector<8x16xf32>
    %270 = arith.mulf %269, %262 : vector<8x16xf32>
    %cst_107 = arith.constant dense<0.000000e+00> : vector<8xf32>
    %271 = vector.multi_reduction <add>, %270, %cst_107 [1] : vector<8x16xf32> to vector<8xf32>
    %272 = vector.shape_cast %271 : vector<8xf32> to vector<8x1xf32>
    %cst_108 = arith.constant 0.000000e+00 : f32
    %273 = vector.broadcast %cst_108 : f32 to vector<8x1xf32>
    %274 = arith.subf %273, %272 : vector<8x1xf32>
    %c0_109 = arith.constant 0 : index
    %c0_110 = arith.constant 0 : index
    %c0_111 = arith.constant 0 : index
    %275 = vector.load %arg4[%c0_109, %c0_110, %c0_111] : memref<1x8x1xf32, #tpu.memory_space<vmem>>, vector<1x8x1xf32>
    %276 = vector.shape_cast %275 : vector<1x8x1xf32> to vector<8x1xf32>
    %277 = arith.mulf %274, %276 : vector<8x1xf32>
    %278 = vector.shape_cast %277 : vector<8x1xf32> to vector<1x8x1xf32>
    %cst_112 = arith.constant dense<0.000000e+00> : vector<1xf32>
    %279 = vector.multi_reduction <add>, %278, %cst_112 [1, 2] : vector<1x8x1xf32> to vector<1xf32>
    %280 = vector.shape_cast %279 : vector<1xf32> to vector<1x1x1xf32>
    %281 = vector.extract %280[0, 0, 0] : f32 from vector<1x1x1xf32>
    %282 = vector.shape_cast %276 : vector<8x1xf32> to vector<1x8x1xf32>
    %cst_113 = arith.constant dense<0.000000e+00> : vector<1xf32>
    %283 = vector.multi_reduction <add>, %282, %cst_113 [1, 2] : vector<1x8x1xf32> to vector<1xf32>
    %284 = vector.shape_cast %283 : vector<1xf32> to vector<1x1x1xf32>
    %285 = vector.extract %284[0, 0, 0] : f32 from vector<1x1x1xf32>
    %286 = tpu.iota {dimensions = array<i32: 2>} : vector<1x1x2xi32>
    %c0_i32 = arith.constant 0 : i32
    %287 = vector.broadcast %c0_i32 : i32 to vector<1x1x2xi32>
    %288 = arith.cmpi eq, %286, %287 : vector<1x1x2xi32>
    %289 = vector.broadcast %281 : f32 to vector<1x1x2xf32>
    %290 = vector.broadcast %285 : f32 to vector<1x1x2xf32>
    %291 = arith.select %288, %289, %290 : vector<1x1x2xi1>, vector<1x1x2xf32>
    %c0_114 = arith.constant 0 : index
    %c0_115 = arith.constant 0 : index
    %c0_116 = arith.constant 0 : index
    %292 = vector.load %arg14[%c0_114, %c0_115, %c0_116] : memref<1x1x2xf32, #tpu.memory_space<vmem>>, vector<1x1x2xf32>
    tpu.vector_store %arg14[%c0_114, %c0_115, %c0_116], %291 {strides = array<i32>} : memref<1x1x2xf32, #tpu.memory_space<vmem>>, vector<1x1x2xf32>,
    return
  }
  func.func @transform_0(%arg0: i32) -> (i32, i32, i32) {
    %c0_i32 = arith.constant 0 : i32
    %c0_i32_0 = arith.constant 0 : i32
    %c0_i32_1 = arith.constant 0 : i32
    return %arg0, %c0_i32, %c0_i32_0 : i32, i32, i32
  }
  func.func @transform_1(%arg0: i32) -> (i32, i32, i32) {
    %c0_i32 = arith.constant 0 : i32
    %c0_i32_0 = arith.constant 0 : i32
    %c0_i32_1 = arith.constant 0 : i32
    return %arg0, %c0_i32, %c0_i32_0 : i32, i32, i32
  }
  func.func @transform_2(%arg0: i32) -> (i32, i32, i32) {
    %c0_i32 = arith.constant 0 : i32
    %c0_i32_0 = arith.constant 0 : i32
    %c0_i32_1 = arith.constant 0 : i32
    return %arg0, %c0_i32, %c0_i32_0 : i32, i32, i32
  }
  func.func @transform_3(%arg0: i32) -> (i32, i32, i32) {
    %c0_i32 = arith.constant 0 : i32
    %c0_i32_0 = arith.constant 0 : i32
    %c0_i32_1 = arith.constant 0 : i32
    return %arg0, %c0_i32, %c0_i32_0 : i32, i32, i32
  }
  func.func @transform_4(%arg0: i32) -> (i32, i32, i32, i32) {
    %c0_i32 = arith.constant 0 : i32
    %c0_i32_0 = arith.constant 0 : i32
    %c0_i32_1 = arith.constant 0 : i32
    %c0_i32_2 = arith.constant 0 : i32
    %c0_i32_3 = arith.constant 0 : i32
    return %c0_i32, %c0_i32_0, %c0_i32_1, %c0_i32_2 : i32, i32, i32, i32
  }
  func.func @transform_5(%arg0: i32) -> (i32, i32, i32, i32) {
    %c0_i32 = arith.constant 0 : i32
    %c0_i32_0 = arith.constant 0 : i32
    %c0_i32_1 = arith.constant 0 : i32
    %c0_i32_2 = arith.constant 0 : i32
    %c0_i32_3 = arith.constant 0 : i32
    return %c0_i32, %c0_i32_0, %c0_i32_1, %c0_i32_2 : i32, i32, i32, i32
  }
  func.func @transform_6(%arg0: i32) -> (i32, i32, i32, i32) {
    %c0_i32 = arith.constant 0 : i32
    %c0_i32_0 = arith.constant 0 : i32
    %c0_i32_1 = arith.constant 0 : i32
    %c0_i32_2 = arith.constant 0 : i32
    %c0_i32_3 = arith.constant 0 : i32
    return %c0_i32, %c0_i32_0, %c0_i32_1, %c0_i32_2 : i32, i32, i32, i32
  }
  func.func @transform_7(%arg0: i32) -> (i32, i32, i32) {
    %c0_i32 = arith.constant 0 : i32
    %c0_i32_0 = arith.constant 0 : i32
    %c0_i32_1 = arith.constant 0 : i32
    %c0_i32_2 = arith.constant 0 : i32
    return %c0_i32, %c0_i32_0, %c0_i32_1 : i32, i32, i32
  }
  func.func @transform_8(%arg0: i32) -> (i32, i32, i32) {
    %c0_i32 = arith.constant 0 : i32
    %c0_i32_0 = arith.constant 0 : i32
    %c0_i32_1 = arith.constant 0 : i32
    %c0_i32_2 = arith.constant 0 : i32
    return %c0_i32, %c0_i32_0, %c0_i32_1 : i32, i32, i32
  }
  func.func @transform_9(%arg0: i32) -> (i32, i32, i32) {
    %c0_i32 = arith.constant 0 : i32
    %c0_i32_0 = arith.constant 0 : i32
    %c0_i32_1 = arith.constant 0 : i32
    %c0_i32_2 = arith.constant 0 : i32
    return %c0_i32, %c0_i32_0, %c0_i32_1 : i32, i32, i32
  }
  func.func @transform_10(%arg0: i32) -> (i32, i32, i32) {
    %c0_i32 = arith.constant 0 : i32
    %c0_i32_0 = arith.constant 0 : i32
    %c0_i32_1 = arith.constant 0 : i32
    %c0_i32_2 = arith.constant 0 : i32
    return %c0_i32, %c0_i32_0, %c0_i32_1 : i32, i32, i32
  }
  func.func @transform_11(%arg0: i32) -> (i32, i32) {
    %c0_i32 = arith.constant 0 : i32
    %c0_i32_0 = arith.constant 0 : i32
    %c0_i32_1 = arith.constant 0 : i32
    return %c0_i32, %c0_i32_0 : i32, i32
  }
  func.func @transform_12(%arg0: i32) -> (i32, i32) {
    %c0_i32 = arith.constant 0 : i32
    %c0_i32_0 = arith.constant 0 : i32
    %c0_i32_1 = arith.constant 0 : i32
    return %c0_i32, %c0_i32_0 : i32, i32
  }
  func.func @transform_13(%arg0: i32) -> (i32, i32, i32) {
    %c0_i32 = arith.constant 0 : i32
    %c0_i32_0 = arith.constant 0 : i32
    %c0_i32_1 = arith.constant 0 : i32
    return %arg0, %c0_i32, %c0_i32_0 : i32, i32, i32
  }
}

</mosaic_0001>

<llo_original>
// kernel: bert_ner_loss.1
$region0: #{bert_ner_loss.1}
  #allocation0 [shape = 'u32[]', space=smem, size = 0x4, offset = 0x4, fixed_abs, tag = 'smem constant byte address 0x4 - core index']
  #allocation1 [shape = 'u32[144,128]{1,0:T(1,128)}', space=vmem, size = 0x12000, scoped, tag = 'internal scratch']
  %s0 = inlined_call_operand.vmem [shape: f32[2,8,32], index: 0, kind: input, shape index: {}]
  %s1 = inlined_call_operand.vmem [shape: f32[2,1,8], index: 1, kind: input, shape index: {}]
  %s2 = inlined_call_operand.vmem [shape: s32[2,8,1], index: 2, kind: input, shape index: {}]
  %s3 = inlined_call_operand.vmem [shape: f32[2,8,1], index: 3, kind: input, shape index: {}]
  %s4 = inlined_call_operand.vmem [shape: bf16[2,6,32,16], index: 4, kind: input, shape index: {}]
  %s5 = inlined_call_operand.vmem [shape: f32[2,6,1,16], index: 5, kind: input, shape index: {}]
  %s6 = inlined_call_operand.vmem [shape: bf16[2,2,16,32], index: 6, kind: input, shape index: {}]
  %s7 = inlined_call_operand.vmem [shape: bf16[2,32,64], index: 7, kind: input, shape index: {}]
  %s8 = inlined_call_operand.vmem [shape: bf16[2,64,32], index: 8, kind: input, shape index: {}]
  %s9 = inlined_call_operand.vmem [shape: f32[2,1,64], index: 9, kind: input, shape index: {}]
  %s10 = inlined_call_operand.vmem [shape: f32[2,6,32], index: 10, kind: input, shape index: {}]
  %s11 = inlined_call_operand.vmem [shape: bf16[32,16], index: 11, kind: input, shape index: {}]
  %s12 = inlined_call_operand.vmem [shape: f32[1,16], index: 12, kind: input, shape index: {}]
  %s13 = inlined_call_operand.vmem [shape: f32[2,1,2], index: 13, kind: output, shape index: {}]
  %s14 = sld [smem:[#allocation0]]
  $region85: #{bert_ner_loss.1} parent=0
    _
  %s16 = ssub.s32 1, %s14
  %s17 = scalar_select 0, %s16, %s14
  loop: start=0, step=1, limit=4
  $region2: #{bert_ner_loss.1} parent=0 // loop_pre_header
    _
  $region3: #{bert_ner_loss.1} parent=0 // loop_header
    %s19 = sphi 0, %s23
    %p20 = scmp.ge.s32.totalorder %s19, 4
    %s29 = sphi 0, %s31
    %s32 = sphi 0, %s29
    %s33 = sphi 0, %s32
    %s49 = sphi 0, %s33
    %s55 = sphi 0, %s57
    %s58 = sphi 0, %s55
    %s59 = sphi 0, %s58
    %s75 = sphi 0, %s59
    %s81 = sphi 0, %s83
    %s84 = sphi 0, %s81
    %s85 = sphi 0, %s84
    %s101 = sphi 0, %s85
    %s107 = sphi 0, %s109
    %s110 = sphi 0, %s107
    %s111 = sphi 0, %s110
    %s127 = sphi 0, %s111
    %s131 = sphi 0, %s131
    %s133 = sphi 0, %s131
    %s134 = sphi 0, %s133
    %s148 = sphi 0, %s134
    %s152 = sphi 0, %s152
    %s154 = sphi 0, %s152
    %s155 = sphi 0, %s154
    %s169 = sphi 0, %s155
    %s173 = sphi 0, %s173
    %s175 = sphi 0, %s173
    %s176 = sphi 0, %s175
    %s190 = sphi 0, %s176
    %s194 = sphi 0, %s194
    %s196 = sphi 0, %s194
    %s197 = sphi 0, %s196
    %s211 = sphi 0, %s197
    %s215 = sphi 0, %s215
    %s217 = sphi 0, %s215
    %s218 = sphi 0, %s217
    %s232 = sphi 0, %s218
    %s236 = sphi 0, %s236
    %s238 = sphi 0, %s236
    %s239 = sphi 0, %s238
    %s253 = sphi 0, %s239
    %s257 = sphi 0, %s257
    %s259 = sphi 0, %s257
    %s260 = sphi 0, %s259
    %s274 = sphi 0, %s260
    %s278 = sphi 0, %s278
    %s280 = sphi 0, %s278
    %s281 = sphi 0, %s280
    %s295 = sphi 0, %s281
    %s299 = sphi 0, %s299
    %s301 = sphi 0, %s299
    %s302 = sphi 0, %s301
    %s316 = sphi 0, %s302
    %s322 = sphi 0, %s324
    %s325 = sphi 0, %s322
    %s326 = sphi 0, %s325
    %s342 = sphi 0, %s326
  $region4: #{bert_ner_loss.1} parent=0 // loop_header_branch
    %22 = sbr.rel (%p20) target = $region8
  $region5: #{bert_ner_loss.1} parent=0 // loop_body
    %s24 = ssub.s32 %s19, 1
    %s25 = ssub.s32 %s19, 2
    %s26 = sadd.s32 %s19, 1
    %s27 = ssub.s32 %s19, %s26
    %p28 = scmp.eq.s32.totalorder %s27, 0
    %s30 = sadd.s32 %s29, 1
    %s31 = scalar_select %p28, %s29, %s30
    %p34 = pneg %p28
    %p35 = scmp.eq.s32.totalorder %s19, 1
    %p36 = por %p34, %p35
    %p37 = scmp.ne.s32.totalorder %s29, %s32
    %p38 = scmp.eq.s32.totalorder %s19, 0
    %p39 = por %p37, %p38
    %p40 = scmp.ne.s32.totalorder %s29, %s32
    %p41 = scmp.eq.s32.totalorder %s24, 1
    %p42 = por %p40, %p41
    %p43 = scmp.ne.s32.totalorder %s32, %s33
    %p44 = scmp.eq.s32.totalorder %s24, 0
    %p45 = por %p43, %p44
    %p46 = scmp.ne.s32.totalorder %s32, %s33
    %p47 = scmp.eq.s32.totalorder %s25, 1
    %p48 = por %p46, %p47
    %p50 = scmp.ne.s32.totalorder %s33, %s49
    %p51 = scmp.eq.s32.totalorder %s25, 0
    %p52 = por %p50, %p51
    %s53 = ssub.s32 %s19, %s26
    %p54 = scmp.eq.s32.totalorder %s53, 0
    %s56 = sadd.s32 %s55, 1
    %s57 = scalar_select %p54, %s55, %s56
    %p60 = pneg %p54
    %p61 = scmp.eq.s32.totalorder %s19, 1
    %p62 = por %p60, %p61
    %p63 = scmp.ne.s32.totalorder %s55, %s58
    %p64 = scmp.eq.s32.totalorder %s19, 0
    %p65 = por %p63, %p64
    %p66 = scmp.ne.s32.totalorder %s55, %s58
    %p67 = scmp.eq.s32.totalorder %s24, 1
    %p68 = por %p66, %p67
    %p69 = scmp.ne.s32.totalorder %s58, %s59
    %p70 = scmp.eq.s32.totalorder %s24, 0
    %p71 = por %p69, %p70
    %p72 = scmp.ne.s32.totalorder %s58, %s59
    %p73 = scmp.eq.s32.totalorder %s25, 1
    %p74 = por %p72, %p73
    %p76 = scmp.ne.s32.totalorder %s59, %s75
    %p77 = scmp.eq.s32.totalorder %s25, 0
    %p78 = por %p76, %p77
    %s79 = ssub.s32 %s19, %s26
    %p80 = scmp.eq.s32.totalorder %s79, 0
    %s82 = sadd.s32 %s81, 1
    %s83 = scalar_select %p80, %s81, %s82
    %p86 = pneg %p80
    %p87 = scmp.eq.s32.totalorder %s19, 1
    %p88 = por %p86, %p87
    %p89 = scmp.ne.s32.totalorder %s81, %s84
    %p90 = scmp.eq.s32.totalorder %s19, 0
    %p91 = por %p89, %p90
    %p92 = scmp.ne.s32.totalorder %s81, %s84
    %p93 = scmp.eq.s32.totalorder %s24, 1
    %p94 = por %p92, %p93
    %p95 = scmp.ne.s32.totalorder %s84, %s85
    %p96 = scmp.eq.s32.totalorder %s24, 0
    %p97 = por %p95, %p96
    %p98 = scmp.ne.s32.totalorder %s84, %s85
    %p99 = scmp.eq.s32.totalorder %s25, 1
    %p100 = por %p98, %p99
    %p102 = scmp.ne.s32.totalorder %s85, %s101
    %p103 = scmp.eq.s32.totalorder %s25, 0
    %p104 = por %p102, %p103
    %s105 = ssub.s32 %s19, %s26
    %p106 = scmp.eq.s32.totalorder %s105, 0
    %s108 = sadd.s32 %s107, 1
    %s109 = scalar_select %p106, %s107, %s108
    %p112 = pneg %p106
    %p113 = scmp.eq.s32.totalorder %s19, 1
    %p114 = por %p112, %p113
    %p115 = scmp.ne.s32.totalorder %s107, %s110
    %p116 = scmp.eq.s32.totalorder %s19, 0
    %p117 = por %p115, %p116
    %p118 = scmp.ne.s32.totalorder %s107, %s110
    %p119 = scmp.eq.s32.totalorder %s24, 1
    %p120 = por %p118, %p119
    %p121 = scmp.ne.s32.totalorder %s110, %s111
    %p122 = scmp.eq.s32.totalorder %s24, 0
    %p123 = por %p121, %p122
    %p124 = scmp.ne.s32.totalorder %s110, %s111
    %p125 = scmp.eq.s32.totalorder %s25, 1
    %p126 = por %p124, %p125
    %p128 = scmp.ne.s32.totalorder %s111, %s127
    %p129 = scmp.eq.s32.totalorder %s25, 0
    %p130 = por %p128, %p129
    %s132 = sadd.s32 %s131, 1
    %p135 = scmp.eq.s32.totalorder %s19, 1
    %p136 = scmp.ne.s32.totalorder %s131, %s133
    %p137 = scmp.eq.s32.totalorder %s19, 0
    %p138 = por %p136, %p137
    %p139 = scmp.ne.s32.totalorder %s131, %s133
    %p140 = scmp.eq.s32.totalorder %s24, 1
    %p141 = por %p139, %p140
    %p142 = scmp.ne.s32.totalorder %s133, %s134
    %p143 = scmp.eq.s32.totalorder %s24, 0
    %p144 = por %p142, %p143
    %p145 = scmp.ne.s32.totalorder %s133, %s134
    %p146 = scmp.eq.s32.totalorder %s25, 1
    %p147 = por %p145, %p146
    %p149 = scmp.ne.s32.totalorder %s134, %s148
    %p150 = scmp.eq.s32.totalorder %s25, 0
    %p151 = por %p149, %p150
    %s153 = sadd.s32 %s152, 1
    %p156 = scmp.eq.s32.totalorder %s19, 1
    %p157 = scmp.ne.s32.totalorder %s152, %s154
    %p158 = scmp.eq.s32.totalorder %s19, 0
    %p159 = por %p157, %p158
    %p160 = scmp.ne.s32.totalorder %s152, %s154
    %p161 = scmp.eq.s32.totalorder %s24, 1
    %p162 = por %p160, %p161
    %p163 = scmp.ne.s32.totalorder %s154, %s155
    %p164 = scmp.eq.s32.totalorder %s24, 0
    %p165 = por %p163, %p164
    %p166 = scmp.ne.s32.totalorder %s154, %s155
    %p167 = scmp.eq.s32.totalorder %s25, 1
    %p168 = por %p166, %p167
    %p170 = scmp.ne.s32.totalorder %s155, %s169
    %p171 = scmp.eq.s32.totalorder %s25, 0
    %p172 = por %p170, %p171
    %s174 = sadd.s32 %s173, 1
    %p177 = scmp.eq.s32.totalorder %s19, 1
    %p178 = scmp.ne.s32.totalorder %s173, %s175
    %p179 = scmp.eq.s32.totalorder %s19, 0
    %p180 = por %p178, %p179
    %p181 = scmp.ne.s32.totalorder %s173, %s175
    %p182 = scmp.eq.s32.totalorder %s24, 1
    %p183 = por %p181, %p182
    %p184 = scmp.ne.s32.totalorder %s175, %s176
    %p185 = scmp.eq.s32.totalorder %s24, 0
    %p186 = por %p184, %p185
    %p187 = scmp.ne.s32.totalorder %s175, %s176
    %p188 = scmp.eq.s32.totalorder %s25, 1
    %p189 = por %p187, %p188
    %p191 = scmp.ne.s32.totalorder %s176, %s190
    %p192 = scmp.eq.s32.totalorder %s25, 0
    %p193 = por %p191, %p192
    %s195 = sadd.s32 %s194, 1
    %p198 = scmp.eq.s32.totalorder %s19, 1
    %p199 = scmp.ne.s32.totalorder %s194, %s196
    %p200 = scmp.eq.s32.totalorder %s19, 0
    %p201 = por %p199, %p200
    %p202 = scmp.ne.s32.totalorder %s194, %s196
    %p203 = scmp.eq.s32.totalorder %s24, 1
    %p204 = por %p202, %p203
    %p205 = scmp.ne.s32.totalorder %s196, %s197
    %p206 = scmp.eq.s32.totalorder %s24, 0
    %p207 = por %p205, %p206
    %p208 = scmp.ne.s32.totalorder %s196, %s197
    %p209 = scmp.eq.s32.totalorder %s25, 1
    %p210 = por %p208, %p209
    %p212 = scmp.ne.s32.totalorder %s197, %s211
    %p213 = scmp.eq.s32.totalorder %s25, 0
    %p214 = por %p212, %p213
    %s216 = sadd.s32 %s215, 1
    %p219 = scmp.eq.s32.totalorder %s19, 1
    %p220 = scmp.ne.s32.totalorder %s215, %s217
    %p221 = scmp.eq.s32.totalorder %s19, 0
    %p222 = por %p220, %p221
    %p223 = scmp.ne.s32.totalorder %s215, %s217
    %p224 = scmp.eq.s32.totalorder %s24, 1
    %p225 = por %p223, %p224
    %p226 = scmp.ne.s32.totalorder %s217, %s218
    %p227 = scmp.eq.s32.totalorder %s24, 0
    %p228 = por %p226, %p227
    %p229 = scmp.ne.s32.totalorder %s217, %s218
    %p230 = scmp.eq.s32.totalorder %s25, 1
    %p231 = por %p229, %p230
    %p233 = scmp.ne.s32.totalorder %s218, %s232
    %p234 = scmp.eq.s32.totalorder %s25, 0
    %p235 = por %p233, %p234
    %s237 = sadd.s32 %s236, 1
    %p240 = scmp.eq.s32.totalorder %s19, 1
    %p241 = scmp.ne.s32.totalorder %s236, %s238
    %p242 = scmp.eq.s32.totalorder %s19, 0
    %p243 = por %p241, %p242
    %p244 = scmp.ne.s32.totalorder %s236, %s238
    %p245 = scmp.eq.s32.totalorder %s24, 1
    %p246 = por %p244, %p245
    %p247 = scmp.ne.s32.totalorder %s238, %s239
    %p248 = scmp.eq.s32.totalorder %s24, 0
    %p249 = por %p247, %p248
    %p250 = scmp.ne.s32.totalorder %s238, %s239
    %p251 = scmp.eq.s32.totalorder %s25, 1
    %p252 = por %p250, %p251
    %p254 = scmp.ne.s32.totalorder %s239, %s253
    %p255 = scmp.eq.s32.totalorder %s25, 0
    %p256 = por %p254, %p255
    %s258 = sadd.s32 %s257, 1
    %p261 = scmp.eq.s32.totalorder %s19, 1
    %p262 = scmp.ne.s32.totalorder %s257, %s259
    %p263 = scmp.eq.s32.totalorder %s19, 0
    %p264 = por %p262, %p263
    %p265 = scmp.ne.s32.totalorder %s257, %s259
    %p266 = scmp.eq.s32.totalorder %s24, 1
    %p267 = por %p265, %p266
    %p268 = scmp.ne.s32.totalorder %s259, %s260
    %p269 = scmp.eq.s32.totalorder %s24, 0
    %p270 = por %p268, %p269
    %p271 = scmp.ne.s32.totalorder %s259, %s260
    %p272 = scmp.eq.s32.totalorder %s25, 1
    %p273 = por %p271, %p272
    %p275 = scmp.ne.s32.totalorder %s260, %s274
    %p276 = scmp.eq.s32.totalorder %s25, 0
    %p277 = por %p275, %p276
    %s279 = sadd.s32 %s278, 1
    %p282 = scmp.eq.s32.totalorder %s19, 1
    %p283 = scmp.ne.s32.totalorder %s278, %s280
    %p284 = scmp.eq.s32.totalorder %s19, 0
    %p285 = por %p283, %p284
    %p286 = scmp.ne.s32.totalorder %s278, %s280
    %p287 = scmp.eq.s32.totalorder %s24, 1
    %p288 = por %p286, %p287
    %p289 = scmp.ne.s32.totalorder %s280, %s281
    %p290 = scmp.eq.s32.totalorder %s24, 0
    %p291 = por %p289, %p290
    %p292 = scmp.ne.s32.totalorder %s280, %s281
    %p293 = scmp.eq.s32.totalorder %s25, 1
    %p294 = por %p292, %p293
    %p296 = scmp.ne.s32.totalorder %s281, %s295
    %p297 = scmp.eq.s32.totalorder %s25, 0
    %p298 = por %p296, %p297
    %s300 = sadd.s32 %s299, 1
    %p303 = scmp.eq.s32.totalorder %s19, 1
    %p304 = scmp.ne.s32.totalorder %s299, %s301
    %p305 = scmp.eq.s32.totalorder %s19, 0
    %p306 = por %p304, %p305
    %p307 = scmp.ne.s32.totalorder %s299, %s301
    %p308 = scmp.eq.s32.totalorder %s24, 1
    %p309 = por %p307, %p308
    %p310 = scmp.ne.s32.totalorder %s301, %s302
    %p311 = scmp.eq.s32.totalorder %s24, 0
    %p312 = por %p310, %p311
    %p313 = scmp.ne.s32.totalorder %s301, %s302
    %p314 = scmp.eq.s32.totalorder %s25, 1
    %p315 = por %p313, %p314
    %p317 = scmp.ne.s32.totalorder %s302, %s316
    %p318 = scmp.eq.s32.totalorder %s25, 0
    %p319 = por %p317, %p318
    %s320 = ssub.s32 %s19, %s26
    %p321 = scmp.eq.s32.totalorder %s320, 0
    %s323 = sadd.s32 %s322, 1
    %s324 = scalar_select %p321, %s322, %s323
    %p327 = pneg %p321
    %p328 = scmp.eq.s32.totalorder %s19, 1
    %p329 = por %p327, %p328
    %p330 = scmp.ne.s32.totalorder %s322, %s325
    %p331 = scmp.eq.s32.totalorder %s19, 0
    %p332 = por %p330, %p331
    %p333 = scmp.ne.s32.totalorder %s322, %s325
    %p334 = scmp.eq.s32.totalorder %s24, 1
    %p335 = por %p333, %p334
    %p336 = scmp.ne.s32.totalorder %s325, %s326
    %p337 = scmp.eq.s32.totalorder %s24, 0
    %p338 = por %p336, %p337
    %p339 = scmp.ne.s32.totalorder %s325, %s326
    %p340 = scmp.eq.s32.totalorder %s25, 1
    %p341 = por %p339, %p340
    %p343 = scmp.ne.s32.totalorder %s326, %s342
    %p344 = scmp.eq.s32.totalorder %s25, 0
    %p345 = por %p343, %p344
    %p346 = scmp.le.s32.totalorder 1, %s19
    %p347 = scmp.lt.s32.totalorder %s19, 3
    %p348 = pnand %p346, %p347
    %p349 = pneg %p348
    // Predicated region
    $region9: #{bert_ner_loss.1} parent=5 // pred_check
      _
    $region10: #{bert_ner_loss.1} parent=5 // pred_check_branch
      %351 = sbr.rel (%p348) target = $region12
    $region11: #{bert_ner_loss.1} parent=5 // pred_region
      %s352 = ssub.s32 %s19, 1
      // Predicated region
      $region13: #{bert_ner_loss.1} parent=11 // pred_check
        %p353 = pneg %p144
      $region14: #{bert_ner_loss.1} parent=11 // pred_check_branch
        %355 = sbr.rel (%p353) target = $region16
      $region15: #{bert_ner_loss.1} parent=11 // pred_region
        _
      $region16: #{bert_ner_loss.1} parent=11 // pred_fallthru
        _
      // Predicated region
      $region17: #{bert_ner_loss.1} parent=11 // pred_check
        %p356 = pneg %p165
      $region18: #{bert_ner_loss.1} parent=11 // pred_check_branch
        %358 = sbr.rel (%p356) target = $region20
      $region19: #{bert_ner_loss.1} parent=11 // pred_region
        _
      $region20: #{bert_ner_loss.1} parent=11 // pred_fallthru
        _
      // Predicated region
      $region21: #{bert_ner_loss.1} parent=11 // pred_check
        %p359 = pneg %p186
      $region22: #{bert_ner_loss.1} parent=11 // pred_check_branch
        %361 = sbr.rel (%p359) target = $region24
      $region23: #{bert_ner_loss.1} parent=11 // pred_region
        _
      $region24: #{bert_ner_loss.1} parent=11 // pred_fallthru
        _
      // Predicated region
      $region25: #{bert_ner_loss.1} parent=11 // pred_check
        %p362 = pneg %p207
      $region26: #{bert_ner_loss.1} parent=11 // pred_check_branch
        %364 = sbr.rel (%p362) target = $region28
      $region27: #{bert_ner_loss.1} parent=11 // pred_region
        _
      $region28: #{bert_ner_loss.1} parent=11 // pred_fallthru
        _
      // Predicated region
      $region29: #{bert_ner_loss.1} parent=11 // pred_check
        %p365 = pneg %p228
      $region30: #{bert_ner_loss.1} parent=11 // pred_check_branch
        %367 = sbr.rel (%p365) target = $region32
      $region31: #{bert_ner_loss.1} parent=11 // pred_region
        _
      $region32: #{bert_ner_loss.1} parent=11 // pred_fallthru
        _
      // Predicated region
      $region33: #{bert_ner_loss.1} parent=11 // pred_check
        %p368 = pneg %p249
      $region34: #{bert_ner_loss.1} parent=11 // pred_check_branch
        %370 = sbr.rel (%p368) target = $region36
      $region35: #{bert_ner_loss.1} parent=11 // pred_region
        _
      $region36: #{bert_ner_loss.1} parent=11 // pred_fallthru
        _
      // Predicated region
      $region37: #{bert_ner_loss.1} parent=11 // pred_check
        %p371 = pneg %p270
      $region38: #{bert_ner_loss.1} parent=11 // pred_check_branch
        %373 = sbr.rel (%p371) target = $region40
      $region39: #{bert_ner_loss.1} parent=11 // pred_region
        _
      $region40: #{bert_ner_loss.1} parent=11 // pred_fallthru
        _
      // Predicated region
      $region41: #{bert_ner_loss.1} parent=11 // pred_check
        %p374 = pneg %p291
      $region42: #{bert_ner_loss.1} parent=11 // pred_check_branch
        %376 = sbr.rel (%p374) target = $region44
      $region43: #{bert_ner_loss.1} parent=11 // pred_region
        _
      $region44: #{bert_ner_loss.1} parent=11 // pred_fallthru
        _
      // Predicated region
      $region45: #{bert_ner_loss.1} parent=11 // pred_check
        %p377 = pneg %p312
      $region46: #{bert_ner_loss.1} parent=11 // pred_check_branch
        %379 = sbr.rel (%p377) target = $region48
      $region47: #{bert_ner_loss.1} parent=11 // pred_region
        _
      $region48: #{bert_ner_loss.1} parent=11 // pred_fallthru
        _
    $region12: #{bert_ner_loss.1} parent=5 // pred_fallthru
      _
    %p380 = scmp.lt.s32.totalorder %s19, 2
    // Predicated region
    $region49: #{bert_ner_loss.1} parent=5 // pred_check
      %p381 = pneg %p380
    $region50: #{bert_ner_loss.1} parent=5 // pred_check_branch
      %383 = sbr.rel (%p381) target = $region52
    $region51: #{bert_ner_loss.1} parent=5 // pred_region
      // Predicated region
      $region53: #{bert_ner_loss.1} parent=51 // pred_check
        %p384 = pneg %p39
      $region54: #{bert_ner_loss.1} parent=51 // pred_check_branch
        %386 = sbr.rel (%p384) target = $region56
      $region55: #{bert_ner_loss.1} parent=51 // pred_region
        %p387 = scmp.lt.s32.totalorder %s19, 1
        %s388 = scalar_select %p387, %s19, 1
        %s389 = smul.addr %s388, 8
        %s390 = scalar_lea.vmem %s0, %s389
      $region56: #{bert_ner_loss.1} parent=51 // pred_fallthru
        _
      // Predicated region
      $region57: #{bert_ner_loss.1} parent=51 // pred_check
        %p391 = pneg %p65
      $region58: #{bert_ner_loss.1} parent=51 // pred_check_branch
        %393 = sbr.rel (%p391) target = $region60
      $region59: #{bert_ner_loss.1} parent=51 // pred_region
        %p394 = scmp.lt.s32.totalorder %s19, 1
        %s395 = scalar_select %p394, %s19, 1
        %s396 = scalar_lea.vmem %s1, %s395
      $region60: #{bert_ner_loss.1} parent=51 // pred_fallthru
        _
      // Predicated region
      $region61: #{bert_ner_loss.1} parent=51 // pred_check
        %p397 = pneg %p91
      $region62: #{bert_ner_loss.1} parent=51 // pred_check_branch
        %399 = sbr.rel (%p397) target = $region64
      $region63: #{bert_ner_loss.1} parent=51 // pred_region
        %p400 = scmp.lt.s32.totalorder %s19, 1
        %s401 = scalar_select %p400, %s19, 1
        %s402 = smul.addr %s401, 8
        %s403 = scalar_lea.vmem %s2, %s402
      $region64: #{bert_ner_loss.1} parent=51 // pred_fallthru
        _
      // Predicated region
      $region65: #{bert_ner_loss.1} parent=51 // pred_check
        %p404 = pneg %p117
      $region66: #{bert_ner_loss.1} parent=51 // pred_check_branch
        %406 = sbr.rel (%p404) target = $region68
      $region67: #{bert_ner_loss.1} parent=51 // pred_region
        %p407 = scmp.lt.s32.totalorder %s19, 1
        %s408 = scalar_select %p407, %s19, 1
        %s409 = smul.addr %s408, 8
        %s410 = scalar_lea.vmem %s3, %s409
      $region68: #{bert_ner_loss.1} parent=51 // pred_fallthru
        _
    $region52: #{bert_ner_loss.1} parent=5 // pred_fallthru
      _
    %p411 = scmp.le.s32.totalorder 1, %s19
    %p412 = scmp.lt.s32.totalorder %s19, 3
    %p413 = pnand %p411, %p412
    %p414 = pneg %p413
    // Predicated region
    $region69: #{bert_ner_loss.1} parent=5 // pred_check
      _
    $region70: #{bert_ner_loss.1} parent=5 // pred_check_branch
      %416 = sbr.rel (%p413) target = $region72
    $region71: #{bert_ner_loss.1} parent=5 // pred_region
      %s417 = ssub.s32 %s19, 1
      %p418 = scmp.lt.s32.totalorder %s24, 1
      %s419 = scalar_select %p418, %s24, 1
      %s420 = smul.addr %s419, 8
      %s421 = scalar_lea.vmem %s0, %s420
      %p422 = pneg %p45
      %p423 = pneg %p42
      %p424 = scmp.lt.s32.totalorder %s24, 1
      %s425 = scalar_select %p424, %s24, 1
      %s426 = scalar_lea.vmem %s1, %s425
      %p427 = pneg %p71
      %p428 = pneg %p68
      %p429 = scmp.lt.s32.totalorder %s24, 1
      %s430 = scalar_select %p429, %s24, 1
      %s431 = smul.addr %s430, 8
      %s432 = scalar_lea.vmem %s2, %s431
      %p433 = pneg %p97
      %p434 = pneg %p94
      %p435 = scmp.lt.s32.totalorder %s24, 1
      %s436 = scalar_select %p435, %s24, 1
      %s437 = smul.addr %s436, 8
      %s438 = scalar_lea.vmem %s3, %s437
      %p439 = pneg %p123
      %p440 = pneg %p120
      %p441 = pneg %p144
      %p442 = pneg %p141
      %p443 = pneg %p165
      %p444 = pneg %p162
      %p445 = pneg %p186
      %p446 = pneg %p183
      %p447 = pneg %p207
      %p448 = pneg %p204
      %p449 = pneg %p228
      %p450 = pneg %p225
      %p451 = pneg %p249
      %p452 = pneg %p246
      %p453 = pneg %p270
      %p454 = pneg %p267
      %p455 = pneg %p291
      %p456 = pneg %p288
      %p457 = pneg %p312
      %p458 = pneg %p309
      %p459 = pneg %p338
      %p460 = pneg %p335
      %p461 = scmp.lt.s32.totalorder %s24, 1
      %s462 = scalar_select %p461, %s24, 1
      %s463 = scalar_lea.vmem %s13, %s462
      %p464 = scmp.lt.s32.totalorder %s24, 1
      %s465 = scalar_select %p464, %s24, 1
      %s466 = smul.addr %s465, 8
      %s467 = scalar_lea.vmem %s0, %s466
      %p468 = scmp.lt.s32.totalorder %s24, 1
      %s469 = scalar_select %p468, %s24, 1
      %s470 = scalar_lea.vmem %s1, %s469
      %p471 = scmp.lt.s32.totalorder %s24, 1
      %s472 = scalar_select %p471, %s24, 1
      %s473 = smul.addr %s472, 8
      %s474 = scalar_lea.vmem %s2, %s473
      %p475 = scmp.lt.s32.totalorder %s24, 1
      %s476 = scalar_select %p475, %s24, 1
      %s477 = smul.addr %s476, 8
      %s478 = scalar_lea.vmem %s3, %s477
      %p479 = scmp.lt.s32.totalorder %s24, 1
      %s480 = scalar_select %p479, %s24, 1
      %s481 = scalar_lea.vmem %s13, %s480
      %v483 = vld [vmem:[%s467] sm:$0xff]
      %v484 = vld [vmem:[%s470] sm:$0x1]
      %v485 = vld [vmem:[%s4] sm:$0xf]
      %v486 = vld [vmem:[%s4 + $0x4] sm:$0xf]
      %v487 = vld [vmem:[%s4 + $0x8] sm:$0xf]
      %v488 = vld [vmem:[%s4 + $0xc] sm:$0xf]
      %v489 = vld [vmem:[%s4 + $0x10] sm:$0xf]
      %v490 = vld [vmem:[%s4 + $0x14] sm:$0xf]
      %v491 = vld [vmem:[%s4 + $0x18] sm:$0xf]
      %v492 = vld [vmem:[%s4 + $0x1c] sm:$0xf]
      %v493 = vld [vmem:[%s4 + $0x20] sm:$0xf]
      %v494 = vld [vmem:[%s4 + $0x24] sm:$0xf]
      %v495 = vld [vmem:[%s4 + $0x28] sm:$0xf]
      %v496 = vld [vmem:[%s4 + $0x2c] sm:$0xf]
      %v497 = vld [vmem:[%s4 + $0x30] sm:$0xf]
      %v498 = vld [vmem:[%s4 + $0x34] sm:$0xf]
      %v499 = vld [vmem:[%s4 + $0x38] sm:$0xf]
      %v500 = vld [vmem:[%s4 + $0x3c] sm:$0xf]
      %v501 = vld [vmem:[%s4 + $0x40] sm:$0xf]
      %v502 = vld [vmem:[%s4 + $0x44] sm:$0xf]
      %v503 = vld [vmem:[%s4 + $0x48] sm:$0xf]
      %v504 = vld [vmem:[%s4 + $0x4c] sm:$0xf]
      %v505 = vld [vmem:[%s4 + $0x50] sm:$0xf]
      %v506 = vld [vmem:[%s4 + $0x54] sm:$0xf]
      %v507 = vld [vmem:[%s4 + $0x58] sm:$0xf]
      %v508 = vld [vmem:[%s4 + $0x5c] sm:$0xf]
      %v509 = vld [vmem:[%s5] sm:$0x1]
      %v510 = vld [vmem:[%s5 + $0x1] sm:$0x1]
      %v511 = vld [vmem:[%s5 + $0x2] sm:$0x1]
      %v512 = vld [vmem:[%s5 + $0x3] sm:$0x1]
      %v513 = vld [vmem:[%s5 + $0x4] sm:$0x1]
      %v514 = vld [vmem:[%s5 + $0x5] sm:$0x1]
      %v515 = vld [vmem:[%s6] sm:$0xf]
      %v516 = vld [vmem:[%s6 + $0x4] sm:$0xf]
      %v517 = vld [vmem:[%s6 + $0x8] sm:$0xf]
      %v518 = vld [vmem:[%s6 + $0xc] sm:$0xf]
      %v519 = vld [vmem:[%s7] sm:$0xf]
      %v520 = vld [vmem:[%s7 + $0x4] sm:$0xf]
      %v521 = vld [vmem:[%s7 + $0x8] sm:$0xf]
      %v522 = vld [vmem:[%s7 + $0xc] sm:$0xf]
      %v523 = vld [vmem:[%s8] sm:$0xf]
      %v524 = vld [vmem:[%s8 + $0x4] sm:$0xf]
      %v525 = vld [vmem:[%s8 + $0x8] sm:$0xf]
      %v526 = vld [vmem:[%s8 + $0xc] sm:$0xf]
      %v527 = vld [vmem:[%s8 + $0x10] sm:$0xf]
      %v528 = vld [vmem:[%s8 + $0x14] sm:$0xf]
      %v529 = vld [vmem:[%s8 + $0x18] sm:$0xf]
      %v530 = vld [vmem:[%s8 + $0x1c] sm:$0xf]
      %v531 = vld [vmem:[%s10] sm:$0x3f]
      %v532 = vpack.c.bf16 %v483, %v483
      %v539 = vlaneseq
      %v540 = vshrl.u32 %v539, 7
      %v541 = vsub.s32 0, %v540
      %v542 = vrot.slane %v509, %v541
      %v543 = vlaneseq
      %v544 = vshrl.u32 %v543, 7
      %v545 = vsub.s32 0, %v544
      %v546 = vrot.slane %v510, %v545
      %v547 = vlaneseq
      %v548 = vshrl.u32 %v547, 7
      %v549 = vsub.s32 0, %v548
      %v550 = vrot.slane %v511, %v549
      %v551 = vlaneseq
      %v552 = vshrl.u32 %v551, 7
      %v553 = vsub.s32 0, %v552
      %v554 = vrot.slane %v512, %v553
      %v555 = vlaneseq
      %v556 = vshrl.u32 %v555, 7
      %v557 = vsub.s32 0, %v556
      %v558 = vrot.slane %v513, %v557
      %v559 = vlaneseq
      %v560 = vshrl.u32 %v559, 7
      %v561 = vsub.s32 0, %v560
      %v562 = vrot.slane %v514, %v561
      %v573 = vunpack.c.l.b16 %v485
      %v574 = vunpack.c.l.b16 %v486
      %v575 = vunpack.c.l.b16 %v487
      %v576 = vunpack.c.l.b16 %v488
      %v577 = vpack.c.b16 %v574, %v573
      %v578 = vpack.c.b16 %v576, %v575
      %vm581 = vcmask 261120
      %v583 = vsel %vm581, %v532, 0
      %585 = vmatprep.subr.bf16.mxu0 0
      %586 = vmatpush1.bf16.msra.mxu0 %v577
      %587 = vmatprep.subr.bf16.mxu0 0
      %588 = vmatpush1.bf16.msra.mxu0 %v578
      %589 = vmatprep.subr.bf16.mxu0 0
      %590 = vmatpush1.bf16.msra.mxu0 0
      %591 = vmatprep.subr.bf16.mxu0 0
      %592 = vmatpush1.bf16.msra.mxu0 0
      %593 = vmatprep.subr.bf16.mxu0 0
      %594 = vmatpush1.bf16.msra.mxu0 0
      %595 = vmatprep.subr.bf16.mxu0 0
      %596 = vmatpush1.bf16.msra.mxu0 0
      %597 = vmatprep.subr.bf16.mxu0 0
      %598 = vmatpush1.bf16.msra.mxu0 0
      %599 = vmatprep.subr.bf16.mxu0 0
      %600 = vmatpush1.bf16.msra.mxu0 0
      %601 = vmatprep.subr.bf16.mxu0 0
      %602 = vmatpush1.bf16.msra.mxu0 0
      %603 = vmatprep.subr.bf16.mxu0 0
      %604 = vmatpush1.bf16.msra.mxu0 0
      %605 = vmatprep.subr.bf16.mxu0 0
      %606 = vmatpush1.bf16.msra.mxu0 0
      %607 = vmatprep.subr.bf16.mxu0 0
      %608 = vmatpush1.bf16.msra.mxu0 0
      %609 = vmatprep.subr.bf16.mxu0 0
      %610 = vmatpush1.bf16.msra.mxu0 0
      %611 = vmatprep.subr.bf16.mxu0 0
      %612 = vmatpush1.bf16.msra.mxu0 0
      %613 = vmatprep.subr.bf16.mxu0 0
      %614 = vmatpush1.bf16.msra.mxu0 0
      %615 = vmatprep.subr.bf16.mxu0 0
      %616 = vmatpush1.bf16.msra.mxu0 0
      %617 = vmatprep.mubr.bf16.mxu0 0
      %618 = vmatmul.mubr.bf16.gmra.mrb[0].mxu0 %v583
      %v619 = vpop.f32.mrb[0].mxu0
      %v620 = vadd.f32 %v542, %v619
      %v621 = vpop.f32.mrb[0].mxu0
      %v622 = vpop.f32.mrb[0].mxu0
      %v623 = vpop.f32.mrb[0].mxu0
      %624 = vdwg.mxu0
      %v629 = vunpack.c.l.b16 %v489
      %v630 = vunpack.c.l.b16 %v490
      %v631 = vunpack.c.l.b16 %v491
      %v632 = vunpack.c.l.b16 %v492
      %v633 = vpack.c.b16 %v630, %v629
      %v634 = vpack.c.b16 %v632, %v631
      %637 = vmatprep.subr.bf16.mxu0 0
      %638 = vmatpush1.bf16.msra.mxu0 %v633
      %639 = vmatprep.subr.bf16.mxu0 0
      %640 = vmatpush1.bf16.msra.mxu0 %v634
      %641 = vmatprep.subr.bf16.mxu0 0
      %642 = vmatpush1.bf16.msra.mxu0 0
      %643 = vmatprep.subr.bf16.mxu0 0
      %644 = vmatpush1.bf16.msra.mxu0 0
      %645 = vmatprep.subr.bf16.mxu0 0
      %646 = vmatpush1.bf16.msra.mxu0 0
      %647 = vmatprep.subr.bf16.mxu0 0
      %648 = vmatpush1.bf16.msra.mxu0 0
      %649 = vmatprep.subr.bf16.mxu0 0
      %650 = vmatpush1.bf16.msra.mxu0 0
      %651 = vmatprep.subr.bf16.mxu0 0
      %652 = vmatpush1.bf16.msra.mxu0 0
      %653 = vmatprep.subr.bf16.mxu0 0
      %654 = vmatpush1.bf16.msra.mxu0 0
      %655 = vmatprep.subr.bf16.mxu0 0
      %656 = vmatpush1.bf16.msra.mxu0 0
      %657 = vmatprep.subr.bf16.mxu0 0
      %658 = vmatpush1.bf16.msra.mxu0 0
      %659 = vmatprep.subr.bf16.mxu0 0
      %660 = vmatpush1.bf16.msra.mxu0 0
      %661 = vmatprep.subr.bf16.mxu0 0
      %662 = vmatpush1.bf16.msra.mxu0 0
      %663 = vmatprep.subr.bf16.mxu0 0
      %664 = vmatpush1.bf16.msra.mxu0 0
      %665 = vmatprep.subr.bf16.mxu0 0
      %666 = vmatpush1.bf16.msra.mxu0 0
      %667 = vmatprep.subr.bf16.mxu0 0
      %668 = vmatpush1.bf16.msra.mxu0 0
      %669 = vmatprep.mubr.bf16.mxu0 0
      %670 = vmatmul.mubr.bf16.gmra.mrb[0].mxu0 %v583
      %v671 = vpop.f32.mrb[0].mxu0
      %v672 = vadd.f32 %v546, %v671
      %v673 = vpop.f32.mrb[0].mxu0
      %v674 = vpop.f32.mrb[0].mxu0
      %v675 = vpop.f32.mrb[0].mxu0
      %676 = vdwg.mxu0
      %v681 = vunpack.c.l.b16 %v493
      %v682 = vunpack.c.l.b16 %v494
      %v683 = vunpack.c.l.b16 %v495
      %v684 = vunpack.c.l.b16 %v496
      %v685 = vpack.c.b16 %v682, %v681
      %v686 = vpack.c.b16 %v684, %v683
      %689 = vmatprep.subr.bf16.mxu0 0
      %690 = vmatpush1.bf16.msra.mxu0 %v685
      %691 = vmatprep.subr.bf16.mxu0 0
      %692 = vmatpush1.bf16.msra.mxu0 %v686
      %693 = vmatprep.subr.bf16.mxu0 0
      %694 = vmatpush1.bf16.msra.mxu0 0
      %695 = vmatprep.subr.bf16.mxu0 0
      %696 = vmatpush1.bf16.msra.mxu0 0
      %697 = vmatprep.subr.bf16.mxu0 0
      %698 = vmatpush1.bf16.msra.mxu0 0
      %699 = vmatprep.subr.bf16.mxu0 0
      %700 = vmatpush1.bf16.msra.mxu0 0
      %701 = vmatprep.subr.bf16.mxu0 0
      %702 = vmatpush1.bf16.msra.mxu0 0
      %703 = vmatprep.subr.bf16.mxu0 0
      %704 = vmatpush1.bf16.msra.mxu0 0
      %705 = vmatprep.subr.bf16.mxu0 0
      %706 = vmatpush1.bf16.msra.mxu0 0
      %707 = vmatprep.subr.bf16.mxu0 0
      %708 = vmatpush1.bf16.msra.mxu0 0
      %709 = vmatprep.subr.bf16.mxu0 0
      %710 = vmatpush1.bf16.msra.mxu0 0
      %711 = vmatprep.subr.bf16.mxu0 0
      %712 = vmatpush1.bf16.msra.mxu0 0
      %713 = vmatprep.subr.bf16.mxu0 0
      %714 = vmatpush1.bf16.msra.mxu0 0
      %715 = vmatprep.subr.bf16.mxu0 0
      %716 = vmatpush1.bf16.msra.mxu0 0
      %717 = vmatprep.subr.bf16.mxu0 0
      %718 = vmatpush1.bf16.msra.mxu0 0
      %719 = vmatprep.subr.bf16.mxu0 0
      %720 = vmatpush1.bf16.msra.mxu0 0
      %721 = vmatprep.mubr.bf16.mxu0 0
      %722 = vmatmul.mubr.bf16.gmra.mrb[0].mxu0 %v583
      %v723 = vpop.f32.mrb[0].mxu0
      %v724 = vadd.f32 %v550, %v723
      %v725 = vpop.f32.mrb[0].mxu0
      %v726 = vpop.f32.mrb[0].mxu0
      %v727 = vpop.f32.mrb[0].mxu0
      %728 = vdwg.mxu0
      %v733 = vunpack.c.l.b16 %v497
      %v734 = vunpack.c.l.b16 %v498
      %v735 = vunpack.c.l.b16 %v499
      %v736 = vunpack.c.l.b16 %v500
      %v737 = vpack.c.b16 %v734, %v733
      %v738 = vpack.c.b16 %v736, %v735
      %741 = vmatprep.subr.bf16.mxu0 0
      %742 = vmatpush1.bf16.msra.mxu0 %v737
      %743 = vmatprep.subr.bf16.mxu0 0
      %744 = vmatpush1.bf16.msra.mxu0 %v738
      %745 = vmatprep.subr.bf16.mxu0 0
      %746 = vmatpush1.bf16.msra.mxu0 0
      %747 = vmatprep.subr.bf16.mxu0 0
      %748 = vmatpush1.bf16.msra.mxu0 0
      %749 = vmatprep.subr.bf16.mxu0 0
      %750 = vmatpush1.bf16.msra.mxu0 0
      %751 = vmatprep.subr.bf16.mxu0 0
      %752 = vmatpush1.bf16.msra.mxu0 0
      %753 = vmatprep.subr.bf16.mxu0 0
      %754 = vmatpush1.bf16.msra.mxu0 0
      %755 = vmatprep.subr.bf16.mxu0 0
      %756 = vmatpush1.bf16.msra.mxu0 0
      %757 = vmatprep.subr.bf16.mxu0 0
      %758 = vmatpush1.bf16.msra.mxu0 0
      %759 = vmatprep.subr.bf16.mxu0 0
      %760 = vmatpush1.bf16.msra.mxu0 0
      %761 = vmatprep.subr.bf16.mxu0 0
      %762 = vmatpush1.bf16.msra.mxu0 0
      %763 = vmatprep.subr.bf16.mxu0 0
      %764 = vmatpush1.bf16.msra.mxu0 0
      %765 = vmatprep.subr.bf16.mxu0 0
      %766 = vmatpush1.bf16.msra.mxu0 0
      %767 = vmatprep.subr.bf16.mxu0 0
      %768 = vmatpush1.bf16.msra.mxu0 0
      %769 = vmatprep.subr.bf16.mxu0 0
      %770 = vmatpush1.bf16.msra.mxu0 0
      %771 = vmatprep.subr.bf16.mxu0 0
      %772 = vmatpush1.bf16.msra.mxu0 0
      %773 = vmatprep.mubr.bf16.mxu0 0
      %774 = vmatmul.mubr.bf16.gmra.mrb[0].mxu0 %v583
      %v775 = vpop.f32.mrb[0].mxu0
      %v776 = vadd.f32 %v554, %v775
      %v777 = vpop.f32.mrb[0].mxu0
      %v778 = vpop.f32.mrb[0].mxu0
      %v779 = vpop.f32.mrb[0].mxu0
      %780 = vdwg.mxu0
      %v785 = vunpack.c.l.b16 %v501
      %v786 = vunpack.c.l.b16 %v502
      %v787 = vunpack.c.l.b16 %v503
      %v788 = vunpack.c.l.b16 %v504
      %v789 = vpack.c.b16 %v786, %v785
      %v790 = vpack.c.b16 %v788, %v787
      %793 = vmatprep.subr.bf16.mxu0 0
      %794 = vmatpush1.bf16.msra.mxu0 %v789
      %795 = vmatprep.subr.bf16.mxu0 0
      %796 = vmatpush1.bf16.msra.mxu0 %v790
      %797 = vmatprep.subr.bf16.mxu0 0
      %798 = vmatpush1.bf16.msra.mxu0 0
      %799 = vmatprep.subr.bf16.mxu0 0
      %800 = vmatpush1.bf16.msra.mxu0 0
      %801 = vmatprep.subr.bf16.mxu0 0
      %802 = vmatpush1.bf16.msra.mxu0 0
      %803 = vmatprep.subr.bf16.mxu0 0
      %804 = vmatpush1.bf16.msra.mxu0 0
      %805 = vmatprep.subr.bf16.mxu0 0
      %806 = vmatpush1.bf16.msra.mxu0 0
      %807 = vmatprep.subr.bf16.mxu0 0
      %808 = vmatpush1.bf16.msra.mxu0 0
      %809 = vmatprep.subr.bf16.mxu0 0
      %810 = vmatpush1.bf16.msra.mxu0 0
      %811 = vmatprep.subr.bf16.mxu0 0
      %812 = vmatpush1.bf16.msra.mxu0 0
      %813 = vmatprep.subr.bf16.mxu0 0
      %814 = vmatpush1.bf16.msra.mxu0 0
      %815 = vmatprep.subr.bf16.mxu0 0
      %816 = vmatpush1.bf16.msra.mxu0 0
      %817 = vmatprep.subr.bf16.mxu0 0
      %818 = vmatpush1.bf16.msra.mxu0 0
      %819 = vmatprep.subr.bf16.mxu0 0
      %820 = vmatpush1.bf16.msra.mxu0 0
      %821 = vmatprep.subr.bf16.mxu0 0
      %822 = vmatpush1.bf16.msra.mxu0 0
      %823 = vmatprep.subr.bf16.mxu0 0
      %824 = vmatpush1.bf16.msra.mxu0 0
      %825 = vmatprep.mubr.bf16.mxu0 0
      %826 = vmatmul.mubr.bf16.gmra.mrb[0].mxu0 %v583
      %v827 = vpop.f32.mrb[0].mxu0
      %v828 = vadd.f32 %v558, %v827
      %v829 = vpop.f32.mrb[0].mxu0
      %v830 = vpop.f32.mrb[0].mxu0
      %v831 = vpop.f32.mrb[0].mxu0
      %832 = vdwg.mxu0
      %v837 = vunpack.c.l.b16 %v505
      %v838 = vunpack.c.l.b16 %v506
      %v839 = vunpack.c.l.b16 %v507
      %v840 = vunpack.c.l.b16 %v508
      %v841 = vpack.c.b16 %v838, %v837
      %v842 = vpack.c.b16 %v840, %v839
      %845 = vmatprep.subr.bf16.mxu0 0
      %846 = vmatpush1.bf16.msra.mxu0 %v841
      %847 = vmatprep.subr.bf16.mxu0 0
      %848 = vmatpush1.bf16.msra.mxu0 %v842
      %849 = vmatprep.subr.bf16.mxu0 0
      %850 = vmatpush1.bf16.msra.mxu0 0
      %851 = vmatprep.subr.bf16.mxu0 0
      %852 = vmatpush1.bf16.msra.mxu0 0
      %853 = vmatprep.subr.bf16.mxu0 0
      %854 = vmatpush1.bf16.msra.mxu0 0
      %855 = vmatprep.subr.bf16.mxu0 0
      %856 = vmatpush1.bf16.msra.mxu0 0
      %857 = vmatprep.subr.bf16.mxu0 0
      %858 = vmatpush1.bf16.msra.mxu0 0
      %859 = vmatprep.subr.bf16.mxu0 0
      %860 = vmatpush1.bf16.msra.mxu0 0
      %861 = vmatprep.subr.bf16.mxu0 0
      %862 = vmatpush1.bf16.msra.mxu0 0
      %863 = vmatprep.subr.bf16.mxu0 0
      %864 = vmatpush1.bf16.msra.mxu0 0
      %865 = vmatprep.subr.bf16.mxu0 0
      %866 = vmatpush1.bf16.msra.mxu0 0
      %867 = vmatprep.subr.bf16.mxu0 0
      %868 = vmatpush1.bf16.msra.mxu0 0
      %869 = vmatprep.subr.bf16.mxu0 0
      %870 = vmatpush1.bf16.msra.mxu0 0
      %871 = vmatprep.subr.bf16.mxu0 0
      %872 = vmatpush1.bf16.msra.mxu0 0
      %873 = vmatprep.subr.bf16.mxu0 0
      %874 = vmatpush1.bf16.msra.mxu0 0
      %875 = vmatprep.subr.bf16.mxu0 0
      %876 = vmatpush1.bf16.msra.mxu0 0
      %877 = vmatprep.mubr.bf16.mxu0 0
      %878 = vmatmul.mubr.bf16.gmra.mrb[0].mxu0 %v583
      %v879 = vpop.f32.mrb[0].mxu0
      %v880 = vadd.f32 %v562, %v879
      %v881 = vpop.f32.mrb[0].mxu0
      %v882 = vpop.f32.mrb[0].mxu0
      %v883 = vpop.f32.mrb[0].mxu0
      %884 = vdwg.mxu0
      %v885 = vpack.c.bf16 %v620, %v620
      %v886 = vpack.c.bf16 %v672, %v672
      %v887 = vpack.c.bf16 %v724, %v724
      %v888 = vpack.c.bf16 %v776, %v776
      %v889 = vpack.c.bf16 %v828, %v828
      %v890 = vpack.c.bf16 %v880, %v880
      %v892 = vlaneseq
      %v893 = vshrl.u32 %v892, 7
      %v894 = vsub.s32 0, %v893
      %v895 = vrot.slane %v484, %v894
      %vm897 = vcmask 130048
      %v899 = vsel %vm897, %v885, 0
      %v902 = vsel %vm897, %v887, 0
      %904 = vmatprep.subr.bf16.mxu0 0
      %905 = vmatpush1.bf16.xpose.msra.mxu0 %v902
      %906 = vmatprep.subr.bf16.mxu0 0
      %907 = vmatpush1.bf16.xpose.msra.mxu0 0
      %908 = vmatprep.subr.bf16.mxu0 0
      %909 = vmatpush1.bf16.xpose.msra.mxu0 0
      %910 = vmatprep.subr.bf16.mxu0 0
      %911 = vmatpush1.bf16.xpose.msra.mxu0 0
      %912 = vmatprep.subr.bf16.mxu0 0
      %913 = vmatpush1.bf16.xpose.msra.mxu0 0
      %914 = vmatprep.subr.bf16.mxu0 0
      %915 = vmatpush1.bf16.xpose.msra.mxu0 0
      %916 = vmatprep.subr.bf16.mxu0 0
      %917 = vmatpush1.bf16.xpose.msra.mxu0 0
      %918 = vmatprep.subr.bf16.mxu0 0
      %919 = vmatpush1.bf16.xpose.msra.mxu0 0
      %920 = vmatprep.subr.bf16.mxu0 0
      %921 = vmatpush1.bf16.xpose.msra.mxu0 0
      %922 = vmatprep.subr.bf16.mxu0 0
      %923 = vmatpush1.bf16.xpose.msra.mxu0 0
      %924 = vmatprep.subr.bf16.mxu0 0
      %925 = vmatpush1.bf16.xpose.msra.mxu0 0
      %926 = vmatprep.subr.bf16.mxu0 0
      %927 = vmatpush1.bf16.xpose.msra.mxu0 0
      %928 = vmatprep.subr.bf16.mxu0 0
      %929 = vmatpush1.bf16.xpose.msra.mxu0 0
      %930 = vmatprep.subr.bf16.mxu0 0
      %931 = vmatpush1.bf16.xpose.msra.mxu0 0
      %932 = vmatprep.subr.bf16.mxu0 0
      %933 = vmatpush1.bf16.xpose.msra.mxu0 0
      %934 = vmatprep.subr.bf16.mxu0 0
      %935 = vmatpush1.bf16.xpose.msra.mxu0 0
      %936 = vmatprep.mubr.bf16.mxu0 0
      %937 = vmatmul.mubr.bf16.gmra.mrb[0].mxu0 %v899
      %v938 = vpop.f32.mrb[0].mxu0
      %v939 = vadd.f32 %v895, %v938
      %v940 = vpop.f32.mrb[0].mxu0
      %v941 = vpop.f32.mrb[0].mxu0
      %v942 = vpop.f32.mrb[0].mxu0
      %943 = vdwg.mxu0
      %v945 = vsel %vm897, %v886, 0
      %v948 = vsel %vm897, %v888, 0
      %950 = vmatprep.subr.bf16.mxu0 0
      %951 = vmatpush1.bf16.xpose.msra.mxu0 %v948
      %952 = vmatprep.subr.bf16.mxu0 0
      %953 = vmatpush1.bf16.xpose.msra.mxu0 0
      %954 = vmatprep.subr.bf16.mxu0 0
      %955 = vmatpush1.bf16.xpose.msra.mxu0 0
      %956 = vmatprep.subr.bf16.mxu0 0
      %957 = vmatpush1.bf16.xpose.msra.mxu0 0
      %958 = vmatprep.subr.bf16.mxu0 0
      %959 = vmatpush1.bf16.xpose.msra.mxu0 0
      %960 = vmatprep.subr.bf16.mxu0 0
      %961 = vmatpush1.bf16.xpose.msra.mxu0 0
      %962 = vmatprep.subr.bf16.mxu0 0
      %963 = vmatpush1.bf16.xpose.msra.mxu0 0
      %964 = vmatprep.subr.bf16.mxu0 0
      %965 = vmatpush1.bf16.xpose.msra.mxu0 0
      %966 = vmatprep.subr.bf16.mxu0 0
      %967 = vmatpush1.bf16.xpose.msra.mxu0 0
      %968 = vmatprep.subr.bf16.mxu0 0
      %969 = vmatpush1.bf16.xpose.msra.mxu0 0
      %970 = vmatprep.subr.bf16.mxu0 0
      %971 = vmatpush1.bf16.xpose.msra.mxu0 0
      %972 = vmatprep.subr.bf16.mxu0 0
      %973 = vmatpush1.bf16.xpose.msra.mxu0 0
      %974 = vmatprep.subr.bf16.mxu0 0
      %975 = vmatpush1.bf16.xpose.msra.mxu0 0
      %976 = vmatprep.subr.bf16.mxu0 0
      %977 = vmatpush1.bf16.xpose.msra.mxu0 0
      %978 = vmatprep.subr.bf16.mxu0 0
      %979 = vmatpush1.bf16.xpose.msra.mxu0 0
      %980 = vmatprep.subr.bf16.mxu0 0
      %981 = vmatpush1.bf16.xpose.msra.mxu0 0
      %982 = vmatprep.mubr.bf16.mxu0 0
      %983 = vmatmul.mubr.bf16.gmra.mrb[0].mxu0 %v945
      %v984 = vpop.f32.mrb[0].mxu0
      %v985 = vadd.f32 %v895, %v984
      %v986 = vpop.f32.mrb[0].mxu0
      %v987 = vpop.f32.mrb[0].mxu0
      %v988 = vpop.f32.mrb[0].mxu0
      %989 = vdwg.mxu0
      %vm990 = vcmask 64512
      %v991 = vsel %vm990, %v939, -inf
      %992 = vmax.xlane.f32.xlu0 %v991
      %v993 = vpop.xlane.xlu0 %992
      %v994 = vsel %vm990, %v985, -inf
      %995 = vmax.xlane.f32.xlu0 %v994
      %v996 = vpop.xlane.xlu0 %995
      %v997 = vsub.f32 %v939, %v993
      %v998 = vsub.f32 %v985, %v996
      %v999 = vmul.f32 %v997, 1.442695
      %v1000 = vpow.pop %v999
      %v1001 = vmul.f32 %v998, 1.442695
      %v1002 = vpow.pop %v1001
      %v1003 = vsel %vm990, %v1000, 0.0
      %1004 = vadd.xlane.f32.xlu0 %v1003
      %v1005 = vpop.xlane.xlu0 %1004
      %v1006 = vsel %vm990, %v1002, 0.0
      %1007 = vadd.xlane.f32.xlu0 %v1006
      %v1008 = vpop.xlane.xlu0 %1007
      %v1009 = vrcp.pop %v1005
      %v1010 = vrcp.pop %v1008
      %v1011 = vmul.f32 %v1000, %v1009
      %v1012 = vmul.f32 %v1002, %v1010
      %v1013 = vpack.c.bf16 %v1011, %v1011
      %v1014 = vpack.c.bf16 %v1012, %v1012
      %v1016 = vsel %vm990, %v1013, 0
      %vm1018 = vcmask 1043456
      %v1020 = vsel %vm1018, %v889, 0
      %1022 = vmatprep.subr.bf16.mxu0 0
      %1023 = vmatpush1.bf16.msra.mxu0 %v1020
      %1024 = vmatprep.subr.bf16.mxu0 0
      %1025 = vmatpush1.bf16.msra.mxu0 0
      %1026 = vmatprep.subr.bf16.mxu0 0
      %1027 = vmatpush1.bf16.msra.mxu0 0
      %1028 = vmatprep.subr.bf16.mxu0 0
      %1029 = vmatpush1.bf16.msra.mxu0 0
      %1030 = vmatprep.subr.bf16.mxu0 0
      %1031 = vmatpush1.bf16.msra.mxu0 0
      %1032 = vmatprep.subr.bf16.mxu0 0
      %1033 = vmatpush1.bf16.msra.mxu0 0
      %1034 = vmatprep.subr.bf16.mxu0 0
      %1035 = vmatpush1.bf16.msra.mxu0 0
      %1036 = vmatprep.subr.bf16.mxu0 0
      %1037 = vmatpush1.bf16.msra.mxu0 0
      %1038 = vmatprep.subr.bf16.mxu0 0
      %1039 = vmatpush1.bf16.msra.mxu0 0
      %1040 = vmatprep.subr.bf16.mxu0 0
      %1041 = vmatpush1.bf16.msra.mxu0 0
      %1042 = vmatprep.subr.bf16.mxu0 0
      %1043 = vmatpush1.bf16.msra.mxu0 0
      %1044 = vmatprep.subr.bf16.mxu0 0
      %1045 = vmatpush1.bf16.msra.mxu0 0
      %1046 = vmatprep.subr.bf16.mxu0 0
      %1047 = vmatpush1.bf16.msra.mxu0 0
      %1048 = vmatprep.subr.bf16.mxu0 0
      %1049 = vmatpush1.bf16.msra.mxu0 0
      %1050 = vmatprep.subr.bf16.mxu0 0
      %1051 = vmatpush1.bf16.msra.mxu0 0
      %1052 = vmatprep.subr.bf16.mxu0 0
      %1053 = vmatpush1.bf16.msra.mxu0 0
      %1054 = vmatprep.mubr.bf16.mxu0 0
      %1055 = vmatmul.mubr.bf16.gmra.mrb[0].mxu0 %v1016
      %v1056 = vpop.f32.mrb[0].mxu0
      %v1057 = vadd.f32 0.0, %v1056
      %v1058 = vpop.f32.mrb[0].mxu0
      %v1059 = vpop.f32.mrb[0].mxu0
      %v1060 = vpop.f32.mrb[0].mxu0
      %1061 = vdwg.mxu0
      %v1063 = vsel %vm990, %v1014, 0
      %v1066 = vsel %vm1018, %v890, 0
      %1068 = vmatprep.subr.bf16.mxu0 0
      %1069 = vmatpush1.bf16.msra.mxu0 %v1066
      %1070 = vmatprep.subr.bf16.mxu0 0
      %1071 = vmatpush1.bf16.msra.mxu0 0
      %1072 = vmatprep.subr.bf16.mxu0 0
      %1073 = vmatpush1.bf16.msra.mxu0 0
      %1074 = vmatprep.subr.bf16.mxu0 0
      %1075 = vmatpush1.bf16.msra.mxu0 0
      %1076 = vmatprep.subr.bf16.mxu0 0
      %1077 = vmatpush1.bf16.msra.mxu0 0
      %1078 = vmatprep.subr.bf16.mxu0 0
      %1079 = vmatpush1.bf16.msra.mxu0 0
      %1080 = vmatprep.subr.bf16.mxu0 0
      %1081 = vmatpush1.bf16.msra.mxu0 0
      %1082 = vmatprep.subr.bf16.mxu0 0
      %1083 = vmatpush1.bf16.msra.mxu0 0
      %1084 = vmatprep.subr.bf16.mxu0 0
      %1085 = vmatpush1.bf16.msra.mxu0 0
      %1086 = vmatprep.subr.bf16.mxu0 0
      %1087 = vmatpush1.bf16.msra.mxu0 0
      %1088 = vmatprep.subr.bf16.mxu0 0
      %1089 = vmatpush1.bf16.msra.mxu0 0
      %1090 = vmatprep.subr.bf16.mxu0 0
      %1091 = vmatpush1.bf16.msra.mxu0 0
      %1092 = vmatprep.subr.bf16.mxu0 0
      %1093 = vmatpush1.bf16.msra.mxu0 0
      %1094 = vmatprep.subr.bf16.mxu0 0
      %1095 = vmatpush1.bf16.msra.mxu0 0
      %1096 = vmatprep.subr.bf16.mxu0 0
      %1097 = vmatpush1.bf16.msra.mxu0 0
      %1098 = vmatprep.subr.bf16.mxu0 0
      %1099 = vmatpush1.bf16.msra.mxu0 0
      %1100 = vmatprep.mubr.bf16.mxu0 0
      %1101 = vmatmul.mubr.bf16.gmra.mrb[0].mxu0 %v1063
      %v1102 = vpop.f32.mrb[0].mxu0
      %v1103 = vadd.f32 0.0, %v1102
      %v1104 = vpop.f32.mrb[0].mxu0
      %v1105 = vpop.f32.mrb[0].mxu0
      %v1106 = vpop.f32.mrb[0].mxu0
      %1107 = vdwg.mxu0
      %v1108 = vpack.c.bf16 %v1057, %v1057
      %v1109 = vpack.c.bf16 %v1103, %v1103
      %v1112 = vunpack.c.l.b16 %v515
      %v1113 = vunpack.c.l.b16 %v516
      %v1114 = vpack.c.b16 %v1113, %v1112
      %v1117 = vsel %vm897, %v1108, 0
      %1119 = vmatprep.subr.bf16.mxu0 0
      %1120 = vmatpush1.bf16.msra.mxu0 %v1114
      %1121 = vmatprep.subr.bf16.mxu0 0
      %1122 = vmatpush1.bf16.msra.mxu0 0
      %1123 = vmatprep.subr.bf16.mxu0 0
      %1124 = vmatpush1.bf16.msra.mxu0 0
      %1125 = vmatprep.subr.bf16.mxu0 0
      %1126 = vmatpush1.bf16.msra.mxu0 0
      %1127 = vmatprep.subr.bf16.mxu0 0
      %1128 = vmatpush1.bf16.msra.mxu0 0
      %1129 = vmatprep.subr.bf16.mxu0 0
      %1130 = vmatpush1.bf16.msra.mxu0 0
      %1131 = vmatprep.subr.bf16.mxu0 0
      %1132 = vmatpush1.bf16.msra.mxu0 0
      %1133 = vmatprep.subr.bf16.mxu0 0
      %1134 = vmatpush1.bf16.msra.mxu0 0
      %1135 = vmatprep.subr.bf16.mxu0 0
      %1136 = vmatpush1.bf16.msra.mxu0 0
      %1137 = vmatprep.subr.bf16.mxu0 0
      %1138 = vmatpush1.bf16.msra.mxu0 0
      %1139 = vmatprep.subr.bf16.mxu0 0
      %1140 = vmatpush1.bf16.msra.mxu0 0
      %1141 = vmatprep.subr.bf16.mxu0 0
      %1142 = vmatpush1.bf16.msra.mxu0 0
      %1143 = vmatprep.subr.bf16.mxu0 0
      %1144 = vmatpush1.bf16.msra.mxu0 0
      %1145 = vmatprep.subr.bf16.mxu0 0
      %1146 = vmatpush1.bf16.msra.mxu0 0
      %1147 = vmatprep.subr.bf16.mxu0 0
      %1148 = vmatpush1.bf16.msra.mxu0 0
      %1149 = vmatprep.subr.bf16.mxu0 0
      %1150 = vmatpush1.bf16.msra.mxu0 0
      %1151 = vmatprep.mubr.bf16.mxu0 0
      %1152 = vmatmul.mubr.bf16.gmra.mrb[0].mxu0 %v1117
      %v1153 = vpop.f32.mrb[0].mxu0
      %v1154 = vadd.f32 0.0, %v1153
      %v1155 = vpop.f32.mrb[0].mxu0
      %v1156 = vpop.f32.mrb[0].mxu0
      %v1157 = vpop.f32.mrb[0].mxu0
      %1158 = vdwg.mxu0
      %v1161 = vunpack.c.l.b16 %v517
      %v1162 = vunpack.c.l.b16 %v518
      %v1163 = vpack.c.b16 %v1162, %v1161
      %v1166 = vsel %vm897, %v1109, 0
      %1168 = vmatprep.subr.bf16.mxu0 0
      %1169 = vmatpush1.bf16.msra.mxu0 %v1163
      %1170 = vmatprep.subr.bf16.mxu0 0
      %1171 = vmatpush1.bf16.msra.mxu0 0
      %1172 = vmatprep.subr.bf16.mxu0 0
      %1173 = vmatpush1.bf16.msra.mxu0 0
      %1174 = vmatprep.subr.bf16.mxu0 0
      %1175 = vmatpush1.bf16.msra.mxu0 0
      %1176 = vmatprep.subr.bf16.mxu0 0
      %1177 = vmatpush1.bf16.msra.mxu0 0
      %1178 = vmatprep.subr.bf16.mxu0 0
      %1179 = vmatpush1.bf16.msra.mxu0 0
      %1180 = vmatprep.subr.bf16.mxu0 0
      %1181 = vmatpush1.bf16.msra.mxu0 0
      %1182 = vmatprep.subr.bf16.mxu0 0
      %1183 = vmatpush1.bf16.msra.mxu0 0
      %1184 = vmatprep.subr.bf16.mxu0 0
      %1185 = vmatpush1.bf16.msra.mxu0 0
      %1186 = vmatprep.subr.bf16.mxu0 0
      %1187 = vmatpush1.bf16.msra.mxu0 0
      %1188 = vmatprep.subr.bf16.mxu0 0
      %1189 = vmatpush1.bf16.msra.mxu0 0
      %1190 = vmatprep.subr.bf16.mxu0 0
      %1191 = vmatpush1.bf16.msra.mxu0 0
      %1192 = vmatprep.subr.bf16.mxu0 0
      %1193 = vmatpush1.bf16.msra.mxu0 0
      %1194 = vmatprep.subr.bf16.mxu0 0
      %1195 = vmatpush1.bf16.msra.mxu0 0
      %1196 = vmatprep.subr.bf16.mxu0 0
      %1197 = vmatpush1.bf16.msra.mxu0 0
      %1198 = vmatprep.subr.bf16.mxu0 0
      %1199 = vmatpush1.bf16.msra.mxu0 0
      %1200 = vmatprep.mubr.bf16.mxu0 0
      %1201 = vmatmul.mubr.bf16.gmra.mrb[0].mxu0 %v1166
      %v1202 = vpop.f32.mrb[0].mxu0
      %v1203 = vadd.f32 0.0, %v1202
      %v1204 = vpop.f32.mrb[0].mxu0
      %v1205 = vpop.f32.mrb[0].mxu0
      %v1206 = vpop.f32.mrb[0].mxu0
      %1207 = vdwg.mxu0
      %v1208 = vsel %vm581, %v1154, 0.0
      %v1209 = vsel %vm581, %v1203, 0.0
      %v1210 = vadd.f32 %v1208, %v1209
      %v1211 = vadd.f32 %v483, %v1210
      %v1212 = vlaneseq
      %v1213 = vshrl.u32 %v1212, 7
      %v1214 = vsub.s32 0, %v1213
      %v1215 = vrot.slane %v531, %v1214
      %v1216 = vadd.f32 %v1211, %v1215
      %v1217 = vsel %vm581, %v1216, 0.0
      %1218 = vadd.xlane.f32.xlu0 %v1217
      %v1219 = vpop.xlane.xlu0 %1218
      %v1220 = vrcp.pop 32.0
      %v1221 = vmul.f32 %v1219, %v1220
      %v1222 = vsub.f32 %v1216, %v1221
      %v1223 = vmul.f32 %v1222, %v1222
      %v1224 = vsel %vm581, %v1223, 0.0
      %1225 = vadd.xlane.f32.xlu0 %v1224
      %v1226 = vpop.xlane.xlu0 %1225
      %v1227 = vmul.f32 %v1226, %v1220
      %v1228 = vadd.f32 %v1227, 1e-12
      %v1229 = vrsqrt.pop %v1228
      %v1230 = vmul.f32 %v1222, %v1229
      %v1231 = vlaneseq
      %v1232 = vshrl.u32 %v1231, 7
      %v1233 = vsub.s32 1, %v1232
      %v1234 = vrot.slane %v531, %v1233
      %v1235 = vmul.f32 %v1230, %v1234
      %v1236 = vlaneseq
      %v1237 = vshrl.u32 %v1236, 7
      %v1238 = vsub.s32 2, %v1237
      %v1239 = vrot.slane %v531, %v1238
      %v1240 = vadd.f32 %v1235, %v1239
      %v1241 = vpack.c.bf16 %v1240, %v1240
      %v1242 = vld [vmem:[%s9] sm:$0x1]
      %v1244 = vlaneseq
      %v1245 = vshrl.u32 %v1244, 7
      %v1246 = vsub.s32 0, %v1245
      %v1247 = vrot.slane %v1242, %v1246
      %v1253 = vunpack.c.l.b16 %v519
      %v1254 = vunpack.c.l.b16 %v520
      %v1255 = vunpack.c.l.b16 %v521
      %v1256 = vunpack.c.l.b16 %v522
      %v1257 = vpack.c.b16 %v1254, %v1253
      %v1258 = vpack.c.b16 %v1256, %v1255
      %v1262 = vsel %vm581, %v1241, 0
      %1264 = vmatprep.subr.bf16.mxu0 0
      %1265 = vmatpush1.bf16.msra.mxu0 %v1257
      %1266 = vmatprep.subr.bf16.mxu0 0
      %1267 = vmatpush1.bf16.msra.mxu0 %v1258
      %1268 = vmatprep.subr.bf16.mxu0 0
      %1269 = vmatpush1.bf16.msra.mxu0 0
      %1270 = vmatprep.subr.bf16.mxu0 0
      %1271 = vmatpush1.bf16.msra.mxu0 0
      %1272 = vmatprep.subr.bf16.mxu0 0
      %1273 = vmatpush1.bf16.msra.mxu0 0
      %1274 = vmatprep.subr.bf16.mxu0 0
      %1275 = vmatpush1.bf16.msra.mxu0 0
      %1276 = vmatprep.subr.bf16.mxu0 0
      %1277 = vmatpush1.bf16.msra.mxu0 0
      %1278 = vmatprep.subr.bf16.mxu0 0
      %1279 = vmatpush1.bf16.msra.mxu0 0
      %1280 = vmatprep.subr.bf16.mxu0 0
      %1281 = vmatpush1.bf16.msra.mxu0 0
      %1282 = vmatprep.subr.bf16.mxu0 0
      %1283 = vmatpush1.bf16.msra.mxu0 0
      %1284 = vmatprep.subr.bf16.mxu0 0
      %1285 = vmatpush1.bf16.msra.mxu0 0
      %1286 = vmatprep.subr.bf16.mxu0 0
      %1287 = vmatpush1.bf16.msra.mxu0 0
      %1288 = vmatprep.subr.bf16.mxu0 0
      %1289 = vmatpush1.bf16.msra.mxu0 0
      %1290 = vmatprep.subr.bf16.mxu0 0
      %1291 = vmatpush1.bf16.msra.mxu0 0
      %1292 = vmatprep.subr.bf16.mxu0 0
      %1293 = vmatpush1.bf16.msra.mxu0 0
      %1294 = vmatprep.subr.bf16.mxu0 0
      %1295 = vmatpush1.bf16.msra.mxu0 0
      %1296 = vmatprep.mubr.bf16.mxu0 0
      %1297 = vmatmul.mubr.bf16.gmra.mrb[0].mxu0 %v1262
      %v1298 = vpop.f32.mrb[0].mxu0
      %v1299 = vadd.f32 %v1247, %v1298
      %v1300 = vpop.f32.mrb[0].mxu0
      %v1301 = vpop.f32.mrb[0].mxu0
      %v1302 = vpop.f32.mrb[0].mxu0
      %1303 = vdwg.mxu0
      %v1304 = vmul.f32 %v1299, 0.5
      %v1305 = vmul.f32 %v1299, 0.044715
      %v1306 = vmul.f32 %v1305, %v1299
      %v1307 = vmul.f32 %v1306, %v1299
      %v1308 = vadd.f32 %v1299, %v1307
      %v1309 = vmul.f32 %v1308, 0.7978846
      %v1310 = vtanh.pop %v1309
      %v1311 = vadd.f32 %v1310, 1.0
      %v1312 = vmul.f32 %v1304, %v1311
      %v1313 = vpack.c.bf16 %v1312, %v1312
      %v1314 = vlaneseq
      %v1315 = vshrl.u32 %v1314, 7
      %v1316 = vsub.s32 3, %v1315
      %v1317 = vrot.slane %v531, %v1316
      %v1326 = vunpack.c.l.b16 %v523
      %v1327 = vunpack.c.l.b16 %v524
      %v1328 = vunpack.c.l.b16 %v525
      %v1329 = vunpack.c.l.b16 %v526
      %v1330 = vunpack.c.l.b16 %v527
      %v1331 = vunpack.c.l.b16 %v528
      %v1332 = vunpack.c.l.b16 %v529
      %v1333 = vunpack.c.l.b16 %v530
      %v1334 = vpack.c.b16 %v1327, %v1326
      %v1335 = vpack.c.b16 %v1329, %v1328
      %v1336 = vpack.c.b16 %v1331, %v1330
      %v1337 = vpack.c.b16 %v1333, %v1332
      %vm1342 = vcmask 523264
      %v1344 = vsel %vm1342, %v1313, 0
      %1346 = vmatprep.subr.bf16.mxu0 0
      %1347 = vmatpush1.bf16.msra.mxu0 %v1334
      %1348 = vmatprep.subr.bf16.mxu0 0
      %1349 = vmatpush1.bf16.msra.mxu0 %v1335
      %1350 = vmatprep.subr.bf16.mxu0 0
      %1351 = vmatpush1.bf16.msra.mxu0 %v1336
      %1352 = vmatprep.subr.bf16.mxu0 0
      %1353 = vmatpush1.bf16.msra.mxu0 %v1337
      %1354 = vmatprep.subr.bf16.mxu0 0
      %1355 = vmatpush1.bf16.msra.mxu0 0
      %1356 = vmatprep.subr.bf16.mxu0 0
      %1357 = vmatpush1.bf16.msra.mxu0 0
      %1358 = vmatprep.subr.bf16.mxu0 0
      %1359 = vmatpush1.bf16.msra.mxu0 0
      %1360 = vmatprep.subr.bf16.mxu0 0
      %1361 = vmatpush1.bf16.msra.mxu0 0
      %1362 = vmatprep.subr.bf16.mxu0 0
      %1363 = vmatpush1.bf16.msra.mxu0 0
      %1364 = vmatprep.subr.bf16.mxu0 0
      %1365 = vmatpush1.bf16.msra.mxu0 0
      %1366 = vmatprep.subr.bf16.mxu0 0
      %1367 = vmatpush1.bf16.msra.mxu0 0
      %1368 = vmatprep.subr.bf16.mxu0 0
      %1369 = vmatpush1.bf16.msra.mxu0 0
      %1370 = vmatprep.subr.bf16.mxu0 0
      %1371 = vmatpush1.bf16.msra.mxu0 0
      %1372 = vmatprep.subr.bf16.mxu0 0
      %1373 = vmatpush1.bf16.msra.mxu0 0
      %1374 = vmatprep.subr.bf16.mxu0 0
      %1375 = vmatpush1.bf16.msra.mxu0 0
      %1376 = vmatprep.subr.bf16.mxu0 0
      %1377 = vmatpush1.bf16.msra.mxu0 0
      %1378 = vmatprep.mubr.bf16.mxu0 0
      %1379 = vmatmul.mubr.bf16.gmra.mrb[0].mxu0 %v1344
      %v1380 = vpop.f32.mrb[0].mxu0
      %v1381 = vadd.f32 %v1317, %v1380
      %v1382 = vpop.f32.mrb[0].mxu0
      %v1383 = vpop.f32.mrb[0].mxu0
      %v1384 = vpop.f32.mrb[0].mxu0
      %1385 = vdwg.mxu0
      %v1386 = vadd.f32 %v1240, %v1381
      %v1387 = vsel %vm581, %v1386, 0.0
      %1388 = vadd.xlane.f32.xlu0 %v1387
      %v1389 = vpop.xlane.xlu0 %1388
      %v1390 = vmul.f32 %v1389, %v1220
      %v1391 = vsub.f32 %v1386, %v1390
      %v1392 = vmul.f32 %v1391, %v1391
      %v1393 = vsel %vm581, %v1392, 0.0
      %1394 = vadd.xlane.f32.xlu0 %v1393
      %v1395 = vpop.xlane.xlu0 %1394
      %v1396 = vmul.f32 %v1395, %v1220
      %v1397 = vadd.f32 %v1396, 1e-12
      %v1398 = vrsqrt.pop %v1397
      %v1399 = vmul.f32 %v1391, %v1398
      %v1400 = vlaneseq
      %v1401 = vshrl.u32 %v1400, 7
      %v1402 = vsub.s32 4, %v1401
      %v1403 = vrot.slane %v531, %v1402
      %v1404 = vmul.f32 %v1399, %v1403
      %v1405 = vlaneseq
      %v1406 = vshrl.u32 %v1405, 7
      %v1407 = vsub.s32 5, %v1406
      %v1408 = vrot.slane %v531, %v1407
      %v1409 = vadd.f32 %v1404, %v1408
      %s1410 = scalar_lea.vmem %s4, 96
      %v1411 = vld [vmem:[%s1410] sm:$0xf]
      %v1412 = vld [vmem:[%s1410 + $0x4] sm:$0xf]
      %v1413 = vld [vmem:[%s1410 + $0x8] sm:$0xf]
      %v1414 = vld [vmem:[%s1410 + $0xc] sm:$0xf]
      %v1415 = vld [vmem:[%s1410 + $0x10] sm:$0xf]
      %v1416 = vld [vmem:[%s1410 + $0x14] sm:$0xf]
      %v1417 = vld [vmem:[%s1410 + $0x18] sm:$0xf]
      %v1418 = vld [vmem:[%s1410 + $0x1c] sm:$0xf]
      %v1419 = vld [vmem:[%s1410 + $0x20] sm:$0xf]
      %v1420 = vld [vmem:[%s1410 + $0x24] sm:$0xf]
      %v1421 = vld [vmem:[%s1410 + $0x28] sm:$0xf]
      %v1422 = vld [vmem:[%s1410 + $0x2c] sm:$0xf]
      %v1423 = vld [vmem:[%s1410 + $0x30] sm:$0xf]
      %v1424 = vld [vmem:[%s1410 + $0x34] sm:$0xf]
      %v1425 = vld [vmem:[%s1410 + $0x38] sm:$0xf]
      %v1426 = vld [vmem:[%s1410 + $0x3c] sm:$0xf]
      %v1427 = vld [vmem:[%s1410 + $0x40] sm:$0xf]
      %v1428 = vld [vmem:[%s1410 + $0x44] sm:$0xf]
      %v1429 = vld [vmem:[%s1410 + $0x48] sm:$0xf]
      %v1430 = vld [vmem:[%s1410 + $0x4c] sm:$0xf]
      %v1431 = vld [vmem:[%s1410 + $0x50] sm:$0xf]
      %v1432 = vld [vmem:[%s1410 + $0x54] sm:$0xf]
      %v1433 = vld [vmem:[%s1410 + $0x58] sm:$0xf]
      %v1434 = vld [vmem:[%s1410 + $0x5c] sm:$0xf]
      %s1435 = scalar_lea.vmem %s5, 6
      %v1436 = vld [vmem:[%s1435] sm:$0x1]
      %v1437 = vld [vmem:[%s1435 + $0x1] sm:$0x1]
      %v1438 = vld [vmem:[%s1435 + $0x2] sm:$0x1]
      %v1439 = vld [vmem:[%s1435 + $0x3] sm:$0x1]
      %v1440 = vld [vmem:[%s1435 + $0x4] sm:$0x1]
      %v1441 = vld [vmem:[%s1435 + $0x5] sm:$0x1]
      %s1442 = scalar_lea.vmem %s6, 16
      %v1443 = vld [vmem:[%s1442] sm:$0xf]
      %v1444 = vld [vmem:[%s1442 + $0x4] sm:$0xf]
      %v1445 = vld [vmem:[%s1442 + $0x8] sm:$0xf]
      %v1446 = vld [vmem:[%s1442 + $0xc] sm:$0xf]
      %s1447 = scalar_lea.vmem %s7, 16
      %v1448 = vld [vmem:[%s1447] sm:$0xf]
      %v1449 = vld [vmem:[%s1447 + $0x4] sm:$0xf]
      %v1450 = vld [vmem:[%s1447 + $0x8] sm:$0xf]
      %v1451 = vld [vmem:[%s1447 + $0xc] sm:$0xf]
      %s1452 = scalar_lea.vmem %s8, 32
      %v1453 = vld [vmem:[%s1452] sm:$0xf]
      %v1454 = vld [vmem:[%s1452 + $0x4] sm:$0xf]
      %v1455 = vld [vmem:[%s1452 + $0x8] sm:$0xf]
      %v1456 = vld [vmem:[%s1452 + $0xc] sm:$0xf]
      %v1457 = vld [vmem:[%s1452 + $0x10] sm:$0xf]
      %v1458 = vld [vmem:[%s1452 + $0x14] sm:$0xf]
      %v1459 = vld [vmem:[%s1452 + $0x18] sm:$0xf]
      %v1460 = vld [vmem:[%s1452 + $0x1c] sm:$0xf]
      %s1461 = scalar_lea.vmem %s10, 8
      %v1462 = vld [vmem:[%s1461] sm:$0x3f]
      %v1463 = vpack.c.bf16 %v1409, %v1409
      %v1470 = vlaneseq
      %v1471 = vshrl.u32 %v1470, 7
      %v1472 = vsub.s32 0, %v1471
      %v1473 = vrot.slane %v1436, %v1472
      %v1474 = vlaneseq
      %v1475 = vshrl.u32 %v1474, 7
      %v1476 = vsub.s32 0, %v1475
      %v1477 = vrot.slane %v1437, %v1476
      %v1478 = vlaneseq
      %v1479 = vshrl.u32 %v1478, 7
      %v1480 = vsub.s32 0, %v1479
      %v1481 = vrot.slane %v1438, %v1480
      %v1482 = vlaneseq
      %v1483 = vshrl.u32 %v1482, 7
      %v1484 = vsub.s32 0, %v1483
      %v1485 = vrot.slane %v1439, %v1484
      %v1486 = vlaneseq
      %v1487 = vshrl.u32 %v1486, 7
      %v1488 = vsub.s32 0, %v1487
      %v1489 = vrot.slane %v1440, %v1488
      %v1490 = vlaneseq
      %v1491 = vshrl.u32 %v1490, 7
      %v1492 = vsub.s32 0, %v1491
      %v1493 = vrot.slane %v1441, %v1492
      %v1504 = vunpack.c.l.b16 %v1411
      %v1505 = vunpack.c.l.b16 %v1412
      %v1506 = vunpack.c.l.b16 %v1413
      %v1507 = vunpack.c.l.b16 %v1414
      %v1508 = vpack.c.b16 %v1505, %v1504
      %v1509 = vpack.c.b16 %v1507, %v1506
      %v1513 = vsel %vm581, %v1463, 0
      %1515 = vmatprep.subr.bf16.mxu0 0
      %1516 = vmatpush1.bf16.msra.mxu0 %v1508
      %1517 = vmatprep.subr.bf16.mxu0 0
      %1518 = vmatpush1.bf16.msra.mxu0 %v1509
      %1519 = vmatprep.subr.bf16.mxu0 0
      %1520 = vmatpush1.bf16.msra.mxu0 0
      %1521 = vmatprep.subr.bf16.mxu0 0
      %1522 = vmatpush1.bf16.msra.mxu0 0
      %1523 = vmatprep.subr.bf16.mxu0 0
      %1524 = vmatpush1.bf16.msra.mxu0 0
      %1525 = vmatprep.subr.bf16.mxu0 0
      %1526 = vmatpush1.bf16.msra.mxu0 0
      %1527 = vmatprep.subr.bf16.mxu0 0
      %1528 = vmatpush1.bf16.msra.mxu0 0
      %1529 = vmatprep.subr.bf16.mxu0 0
      %1530 = vmatpush1.bf16.msra.mxu0 0
      %1531 = vmatprep.subr.bf16.mxu0 0
      %1532 = vmatpush1.bf16.msra.mxu0 0
      %1533 = vmatprep.subr.bf16.mxu0 0
      %1534 = vmatpush1.bf16.msra.mxu0 0
      %1535 = vmatprep.subr.bf16.mxu0 0
      %1536 = vmatpush1.bf16.msra.mxu0 0
      %1537 = vmatprep.subr.bf16.mxu0 0
      %1538 = vmatpush1.bf16.msra.mxu0 0
      %1539 = vmatprep.subr.bf16.mxu0 0
      %1540 = vmatpush1.bf16.msra.mxu0 0
      %1541 = vmatprep.subr.bf16.mxu0 0
      %1542 = vmatpush1.bf16.msra.mxu0 0
      %1543 = vmatprep.subr.bf16.mxu0 0
      %1544 = vmatpush1.bf16.msra.mxu0 0
      %1545 = vmatprep.subr.bf16.mxu0 0
      %1546 = vmatpush1.bf16.msra.mxu0 0
      %1547 = vmatprep.mubr.bf16.mxu0 0
      %1548 = vmatmul.mubr.bf16.gmra.mrb[0].mxu0 %v1513
      %v1549 = vpop.f32.mrb[0].mxu0
      %v1550 = vadd.f32 %v1473, %v1549
      %v1551 = vpop.f32.mrb[0].mxu0
      %v1552 = vpop.f32.mrb[0].mxu0
      %v1553 = vpop.f32.mrb[0].mxu0
      %1554 = vdwg.mxu0
      %v1559 = vunpack.c.l.b16 %v1415
      %v1560 = vunpack.c.l.b16 %v1416
      %v1561 = vunpack.c.l.b16 %v1417
      %v1562 = vunpack.c.l.b16 %v1418
      %v1563 = vpack.c.b16 %v1560, %v1559
      %v1564 = vpack.c.b16 %v1562, %v1561
      %1567 = vmatprep.subr.bf16.mxu0 0
      %1568 = vmatpush1.bf16.msra.mxu0 %v1563
      %1569 = vmatprep.subr.bf16.mxu0 0
      %1570 = vmatpush1.bf16.msra.mxu0 %v1564
      %1571 = vmatprep.subr.bf16.mxu0 0
      %1572 = vmatpush1.bf16.msra.mxu0 0
      %1573 = vmatprep.subr.bf16.mxu0 0
      %1574 = vmatpush1.bf16.msra.mxu0 0
      %1575 = vmatprep.subr.bf16.mxu0 0
      %1576 = vmatpush1.bf16.msra.mxu0 0
      %1577 = vmatprep.subr.bf16.mxu0 0
      %1578 = vmatpush1.bf16.msra.mxu0 0
      %1579 = vmatprep.subr.bf16.mxu0 0
      %1580 = vmatpush1.bf16.msra.mxu0 0
      %1581 = vmatprep.subr.bf16.mxu0 0
      %1582 = vmatpush1.bf16.msra.mxu0 0
      %1583 = vmatprep.subr.bf16.mxu0 0
      %1584 = vmatpush1.bf16.msra.mxu0 0
      %1585 = vmatprep.subr.bf16.mxu0 0
      %1586 = vmatpush1.bf16.msra.mxu0 0
      %1587 = vmatprep.subr.bf16.mxu0 0
      %1588 = vmatpush1.bf16.msra.mxu0 0
      %1589 = vmatprep.subr.bf16.mxu0 0
      %1590 = vmatpush1.bf16.msra.mxu0 0
      %1591 = vmatprep.subr.bf16.mxu0 0
      %1592 = vmatpush1.bf16.msra.mxu0 0
      %1593 = vmatprep.subr.bf16.mxu0 0
      %1594 = vmatpush1.bf16.msra.mxu0 0
      %1595 = vmatprep.subr.bf16.mxu0 0
      %1596 = vmatpush1.bf16.msra.mxu0 0
      %1597 = vmatprep.subr.bf16.mxu0 0
      %1598 = vmatpush1.bf16.msra.mxu0 0
      %1599 = vmatprep.mubr.bf16.mxu0 0
      %1600 = vmatmul.mubr.bf16.gmra.mrb[0].mxu0 %v1513
      %v1601 = vpop.f32.mrb[0].mxu0
      %v1602 = vadd.f32 %v1477, %v1601
      %v1603 = vpop.f32.mrb[0].mxu0
      %v1604 = vpop.f32.mrb[0].mxu0
      %v1605 = vpop.f32.mrb[0].mxu0
      %1606 = vdwg.mxu0
      %v1611 = vunpack.c.l.b16 %v1419
      %v1612 = vunpack.c.l.b16 %v1420
      %v1613 = vunpack.c.l.b16 %v1421
      %v1614 = vunpack.c.l.b16 %v1422
      %v1615 = vpack.c.b16 %v1612, %v1611
      %v1616 = vpack.c.b16 %v1614, %v1613
      %1619 = vmatprep.subr.bf16.mxu0 0
      %1620 = vmatpush1.bf16.msra.mxu0 %v1615
      %1621 = vmatprep.subr.bf16.mxu0 0
      %1622 = vmatpush1.bf16.msra.mxu0 %v1616
      %1623 = vmatprep.subr.bf16.mxu0 0
      %1624 = vmatpush1.bf16.msra.mxu0 0
      %1625 = vmatprep.subr.bf16.mxu0 0
      %1626 = vmatpush1.bf16.msra.mxu0 0
      %1627 = vmatprep.subr.bf16.mxu0 0
      %1628 = vmatpush1.bf16.msra.mxu0 0
      %1629 = vmatprep.subr.bf16.mxu0 0
      %1630 = vmatpush1.bf16.msra.mxu0 0
      %1631 = vmatprep.subr.bf16.mxu0 0
      %1632 = vmatpush1.bf16.msra.mxu0 0
      %1633 = vmatprep.subr.bf16.mxu0 0
      %1634 = vmatpush1.bf16.msra.mxu0 0
      %1635 = vmatprep.subr.bf16.mxu0 0
      %1636 = vmatpush1.bf16.msra.mxu0 0
      %1637 = vmatprep.subr.bf16.mxu0 0
      %1638 = vmatpush1.bf16.msra.mxu0 0
      %1639 = vmatprep.subr.bf16.mxu0 0
      %1640 = vmatpush1.bf16.msra.mxu0 0
      %1641 = vmatprep.subr.bf16.mxu0 0
      %1642 = vmatpush1.bf16.msra.mxu0 0
      %1643 = vmatprep.subr.bf16.mxu0 0
      %1644 = vmatpush1.bf16.msra.mxu0 0
      %1645 = vmatprep.subr.bf16.mxu0 0
      %1646 = vmatpush1.bf16.msra.mxu0 0
      %1647 = vmatprep.subr.bf16.mxu0 0
      %1648 = vmatpush1.bf16.msra.mxu0 0
      %1649 = vmatprep.subr.bf16.mxu0 0
      %1650 = vmatpush1.bf16.msra.mxu0 0
      %1651 = vmatprep.mubr.bf16.mxu0 0
      %1652 = vmatmul.mubr.bf16.gmra.mrb[0].mxu0 %v1513
      %v1653 = vpop.f32.mrb[0].mxu0
      %v1654 = vadd.f32 %v1481, %v1653
      %v1655 = vpop.f32.mrb[0].mxu0
      %v1656 = vpop.f32.mrb[0].mxu0
      %v1657 = vpop.f32.mrb[0].mxu0
      %1658 = vdwg.mxu0
      %v1663 = vunpack.c.l.b16 %v1423
      %v1664 = vunpack.c.l.b16 %v1424
      %v1665 = vunpack.c.l.b16 %v1425
      %v1666 = vunpack.c.l.b16 %v1426
      %v1667 = vpack.c.b16 %v1664, %v1663
      %v1668 = vpack.c.b16 %v1666, %v1665
      %1671 = vmatprep.subr.bf16.mxu0 0
      %1672 = vmatpush1.bf16.msra.mxu0 %v1667
      %1673 = vmatprep.subr.bf16.mxu0 0
      %1674 = vmatpush1.bf16.msra.mxu0 %v1668
      %1675 = vmatprep.subr.bf16.mxu0 0
      %1676 = vmatpush1.bf16.msra.mxu0 0
      %1677 = vmatprep.subr.bf16.mxu0 0
      %1678 = vmatpush1.bf16.msra.mxu0 0
      %1679 = vmatprep.subr.bf16.mxu0 0
      %1680 = vmatpush1.bf16.msra.mxu0 0
      %1681 = vmatprep.subr.bf16.mxu0 0
      %1682 = vmatpush1.bf16.msra.mxu0 0
      %1683 = vmatprep.subr.bf16.mxu0 0
      %1684 = vmatpush1.bf16.msra.mxu0 0
      %1685 = vmatprep.subr.bf16.mxu0 0
      %1686 = vmatpush1.bf16.msra.mxu0 0
      %1687 = vmatprep.subr.bf16.mxu0 0
      %1688 = vmatpush1.bf16.msra.mxu0 0
      %1689 = vmatprep.subr.bf16.mxu0 0
      %1690 = vmatpush1.bf16.msra.mxu0 0
      %1691 = vmatprep.subr.bf16.mxu0 0
      %1692 = vmatpush1.bf16.msra.mxu0 0
      %1693 = vmatprep.subr.bf16.mxu0 0
      %1694 = vmatpush1.bf16.msra.mxu0 0
      %1695 = vmatprep.subr.bf16.mxu0 0
      %1696 = vmatpush1.bf16.msra.mxu0 0
      %1697 = vmatprep.subr.bf16.mxu0 0
      %1698 = vmatpush1.bf16.msra.mxu0 0
      %1699 = vmatprep.subr.bf16.mxu0 0
      %1700 = vmatpush1.bf16.msra.mxu0 0
      %1701 = vmatprep.subr.bf16.mxu0 0
      %1702 = vmatpush1.bf16.msra.mxu0 0
      %1703 = vmatprep.mubr.bf16.mxu0 0
      %1704 = vmatmul.mubr.bf16.gmra.mrb[0].mxu0 %v1513
      %v1705 = vpop.f32.mrb[0].mxu0
      %v1706 = vadd.f32 %v1485, %v1705
      %v1707 = vpop.f32.mrb[0].mxu0
      %v1708 = vpop.f32.mrb[0].mxu0
      %v1709 = vpop.f32.mrb[0].mxu0
      %1710 = vdwg.mxu0
      %v1715 = vunpack.c.l.b16 %v1427
      %v1716 = vunpack.c.l.b16 %v1428
      %v1717 = vunpack.c.l.b16 %v1429
      %v1718 = vunpack.c.l.b16 %v1430
      %v1719 = vpack.c.b16 %v1716, %v1715
      %v1720 = vpack.c.b16 %v1718, %v1717
      %1723 = vmatprep.subr.bf16.mxu0 0
      %1724 = vmatpush1.bf16.msra.mxu0 %v1719
      %1725 = vmatprep.subr.bf16.mxu0 0
      %1726 = vmatpush1.bf16.msra.mxu0 %v1720
      %1727 = vmatprep.subr.bf16.mxu0 0
      %1728 = vmatpush1.bf16.msra.mxu0 0
      %1729 = vmatprep.subr.bf16.mxu0 0
      %1730 = vmatpush1.bf16.msra.mxu0 0
      %1731 = vmatprep.subr.bf16.mxu0 0
      %1732 = vmatpush1.bf16.msra.mxu0 0
      %1733 = vmatprep.subr.bf16.mxu0 0
      %1734 = vmatpush1.bf16.msra.mxu0 0
      %1735 = vmatprep.subr.bf16.mxu0 0
      %1736 = vmatpush1.bf16.msra.mxu0 0
      %1737 = vmatprep.subr.bf16.mxu0 0
      %1738 = vmatpush1.bf16.msra.mxu0 0
      %1739 = vmatprep.subr.bf16.mxu0 0
      %1740 = vmatpush1.bf16.msra.mxu0 0
      %1741 = vmatprep.subr.bf16.mxu0 0
      %1742 = vmatpush1.bf16.msra.mxu0 0
      %1743 = vmatprep.subr.bf16.mxu0 0
      %1744 = vmatpush1.bf16.msra.mxu0 0
      %1745 = vmatprep.subr.bf16.mxu0 0
      %1746 = vmatpush1.bf16.msra.mxu0 0
      %1747 = vmatprep.subr.bf16.mxu0 0
      %1748 = vmatpush1.bf16.msra.mxu0 0
      %1749 = vmatprep.subr.bf16.mxu0 0
      %1750 = vmatpush1.bf16.msra.mxu0 0
      %1751 = vmatprep.subr.bf16.mxu0 0
      %1752 = vmatpush1.bf16.msra.mxu0 0
      %1753 = vmatprep.subr.bf16.mxu0 0
      %1754 = vmatpush1.bf16.msra.mxu0 0
      %1755 = vmatprep.mubr.bf16.mxu0 0
      %1756 = vmatmul.mubr.bf16.gmra.mrb[0].mxu0 %v1513
      %v1757 = vpop.f32.mrb[0].mxu0
      %v1758 = vadd.f32 %v1489, %v1757
      %v1759 = vpop.f32.mrb[0].mxu0
      %v1760 = vpop.f32.mrb[0].mxu0
      %v1761 = vpop.f32.mrb[0].mxu0
      %1762 = vdwg.mxu0
      %v1767 = vunpack.c.l.b16 %v1431
      %v1768 = vunpack.c.l.b16 %v1432
      %v1769 = vunpack.c.l.b16 %v1433
      %v1770 = vunpack.c.l.b16 %v1434
      %v1771 = vpack.c.b16 %v1768, %v1767
      %v1772 = vpack.c.b16 %v1770, %v1769
      %1775 = vmatprep.subr.bf16.mxu0 0
      %1776 = vmatpush1.bf16.msra.mxu0 %v1771
      %1777 = vmatprep.subr.bf16.mxu0 0
      %1778 = vmatpush1.bf16.msra.mxu0 %v1772
      %1779 = vmatprep.subr.bf16.mxu0 0
      %1780 = vmatpush1.bf16.msra.mxu0 0
      %1781 = vmatprep.subr.bf16.mxu0 0
      %1782 = vmatpush1.bf16.msra.mxu0 0
      %1783 = vmatprep.subr.bf16.mxu0 0
      %1784 = vmatpush1.bf16.msra.mxu0 0
      %1785 = vmatprep.subr.bf16.mxu0 0
      %1786 = vmatpush1.bf16.msra.mxu0 0
      %1787 = vmatprep.subr.bf16.mxu0 0
      %1788 = vmatpush1.bf16.msra.mxu0 0
      %1789 = vmatprep.subr.bf16.mxu0 0
      %1790 = vmatpush1.bf16.msra.mxu0 0
      %1791 = vmatprep.subr.bf16.mxu0 0
      %1792 = vmatpush1.bf16.msra.mxu0 0
      %1793 = vmatprep.subr.bf16.mxu0 0
      %1794 = vmatpush1.bf16.msra.mxu0 0
      %1795 = vmatprep.subr.bf16.mxu0 0
      %1796 = vmatpush1.bf16.msra.mxu0 0
      %1797 = vmatprep.subr.bf16.mxu0 0
      %1798 = vmatpush1.bf16.msra.mxu0 0
      %1799 = vmatprep.subr.bf16.mxu0 0
      %1800 = vmatpush1.bf16.msra.mxu0 0
      %1801 = vmatprep.subr.bf16.mxu0 0
      %1802 = vmatpush1.bf16.msra.mxu0 0
      %1803 = vmatprep.subr.bf16.mxu0 0
      %1804 = vmatpush1.bf16.msra.mxu0 0
      %1805 = vmatprep.subr.bf16.mxu0 0
      %1806 = vmatpush1.bf16.msra.mxu0 0
      %1807 = vmatprep.mubr.bf16.mxu0 0
      %1808 = vmatmul.mubr.bf16.gmra.mrb[0].mxu0 %v1513
      %v1809 = vpop.f32.mrb[0].mxu0
      %v1810 = vadd.f32 %v1493, %v1809
      %v1811 = vpop.f32.mrb[0].mxu0
      %v1812 = vpop.f32.mrb[0].mxu0
      %v1813 = vpop.f32.mrb[0].mxu0
      %1814 = vdwg.mxu0
      %v1815 = vpack.c.bf16 %v1550, %v1550
      %v1816 = vpack.c.bf16 %v1602, %v1602
      %v1817 = vpack.c.bf16 %v1654, %v1654
      %v1818 = vpack.c.bf16 %v1706, %v1706
      %v1819 = vpack.c.bf16 %v1758, %v1758
      %v1820 = vpack.c.bf16 %v1810, %v1810
      %v1822 = vsel %vm897, %v1815, 0
      %v1825 = vsel %vm897, %v1817, 0
      %1827 = vmatprep.subr.bf16.mxu0 0
      %1828 = vmatpush1.bf16.xpose.msra.mxu0 %v1825
      %1829 = vmatprep.subr.bf16.mxu0 0
      %1830 = vmatpush1.bf16.xpose.msra.mxu0 0
      %1831 = vmatprep.subr.bf16.mxu0 0
      %1832 = vmatpush1.bf16.xpose.msra.mxu0 0
      %1833 = vmatprep.subr.bf16.mxu0 0
      %1834 = vmatpush1.bf16.xpose.msra.mxu0 0
      %1835 = vmatprep.subr.bf16.mxu0 0
      %1836 = vmatpush1.bf16.xpose.msra.mxu0 0
      %1837 = vmatprep.subr.bf16.mxu0 0
      %1838 = vmatpush1.bf16.xpose.msra.mxu0 0
      %1839 = vmatprep.subr.bf16.mxu0 0
      %1840 = vmatpush1.bf16.xpose.msra.mxu0 0
      %1841 = vmatprep.subr.bf16.mxu0 0
      %1842 = vmatpush1.bf16.xpose.msra.mxu0 0
      %1843 = vmatprep.subr.bf16.mxu0 0
      %1844 = vmatpush1.bf16.xpose.msra.mxu0 0
      %1845 = vmatprep.subr.bf16.mxu0 0
      %1846 = vmatpush1.bf16.xpose.msra.mxu0 0
      %1847 = vmatprep.subr.bf16.mxu0 0
      %1848 = vmatpush1.bf16.xpose.msra.mxu0 0
      %1849 = vmatprep.subr.bf16.mxu0 0
      %1850 = vmatpush1.bf16.xpose.msra.mxu0 0
      %1851 = vmatprep.subr.bf16.mxu0 0
      %1852 = vmatpush1.bf16.xpose.msra.mxu0 0
      %1853 = vmatprep.subr.bf16.mxu0 0
      %1854 = vmatpush1.bf16.xpose.msra.mxu0 0
      %1855 = vmatprep.subr.bf16.mxu0 0
      %1856 = vmatpush1.bf16.xpose.msra.mxu0 0
      %1857 = vmatprep.subr.bf16.mxu0 0
      %1858 = vmatpush1.bf16.xpose.msra.mxu0 0
      %1859 = vmatprep.mubr.bf16.mxu0 0
      %1860 = vmatmul.mubr.bf16.gmra.mrb[0].mxu0 %v1822
      %v1861 = vpop.f32.mrb[0].mxu0
      %v1862 = vadd.f32 %v895, %v1861
      %v1863 = vpop.f32.mrb[0].mxu0
      %v1864 = vpop.f32.mrb[0].mxu0
      %v1865 = vpop.f32.mrb[0].mxu0
      %1866 = vdwg.mxu0
      %v1868 = vsel %vm897, %v1816, 0
      %v1871 = vsel %vm897, %v1818, 0
      %1873 = vmatprep.subr.bf16.mxu0 0
      %1874 = vmatpush1.bf16.xpose.msra.mxu0 %v1871
      %1875 = vmatprep.subr.bf16.mxu0 0
      %1876 = vmatpush1.bf16.xpose.msra.mxu0 0
      %1877 = vmatprep.subr.bf16.mxu0 0
      %1878 = vmatpush1.bf16.xpose.msra.mxu0 0
      %1879 = vmatprep.subr.bf16.mxu0 0
      %1880 = vmatpush1.bf16.xpose.msra.mxu0 0
      %1881 = vmatprep.subr.bf16.mxu0 0
      %1882 = vmatpush1.bf16.xpose.msra.mxu0 0
      %1883 = vmatprep.subr.bf16.mxu0 0
      %1884 = vmatpush1.bf16.xpose.msra.mxu0 0
      %1885 = vmatprep.subr.bf16.mxu0 0
      %1886 = vmatpush1.bf16.xpose.msra.mxu0 0
      %1887 = vmatprep.subr.bf16.mxu0 0
      %1888 = vmatpush1.bf16.xpose.msra.mxu0 0
      %1889 = vmatprep.subr.bf16.mxu0 0
      %1890 = vmatpush1.bf16.xpose.msra.mxu0 0
      %1891 = vmatprep.subr.bf16.mxu0 0
      %1892 = vmatpush1.bf16.xpose.msra.mxu0 0
      %1893 = vmatprep.subr.bf16.mxu0 0
      %1894 = vmatpush1.bf16.xpose.msra.mxu0 0
      %1895 = vmatprep.subr.bf16.mxu0 0
      %1896 = vmatpush1.bf16.xpose.msra.mxu0 0
      %1897 = vmatprep.subr.bf16.mxu0 0
      %1898 = vmatpush1.bf16.xpose.msra.mxu0 0
      %1899 = vmatprep.subr.bf16.mxu0 0
      %1900 = vmatpush1.bf16.xpose.msra.mxu0 0
      %1901 = vmatprep.subr.bf16.mxu0 0
      %1902 = vmatpush1.bf16.xpose.msra.mxu0 0
      %1903 = vmatprep.subr.bf16.mxu0 0
      %1904 = vmatpush1.bf16.xpose.msra.mxu0 0
      %1905 = vmatprep.mubr.bf16.mxu0 0
      %1906 = vmatmul.mubr.bf16.gmra.mrb[0].mxu0 %v1868
      %v1907 = vpop.f32.mrb[0].mxu0
      %v1908 = vadd.f32 %v895, %v1907
      %v1909 = vpop.f32.mrb[0].mxu0
      %v1910 = vpop.f32.mrb[0].mxu0
      %v1911 = vpop.f32.mrb[0].mxu0
      %1912 = vdwg.mxu0
      %v1913 = vsel %vm990, %v1862, -inf
      %1914 = vmax.xlane.f32.xlu0 %v1913
      %v1915 = vpop.xlane.xlu0 %1914
      %v1916 = vsel %vm990, %v1908, -inf
      %1917 = vmax.xlane.f32.xlu0 %v1916
      %v1918 = vpop.xlane.xlu0 %1917
      %v1919 = vsub.f32 %v1862, %v1915
      %v1920 = vsub.f32 %v1908, %v1918
      %v1921 = vmul.f32 %v1919, 1.442695
      %v1922 = vpow.pop %v1921
      %v1923 = vmul.f32 %v1920, 1.442695
      %v1924 = vpow.pop %v1923
      %v1925 = vsel %vm990, %v1922, 0.0
      %1926 = vadd.xlane.f32.xlu0 %v1925
      %v1927 = vpop.xlane.xlu0 %1926
      %v1928 = vsel %vm990, %v1924, 0.0
      %1929 = vadd.xlane.f32.xlu0 %v1928
      %v1930 = vpop.xlane.xlu0 %1929
      %v1931 = vrcp.pop %v1927
      %v1932 = vrcp.pop %v1930
      %v1933 = vmul.f32 %v1922, %v1931
      %v1934 = vmul.f32 %v1924, %v1932
      %v1935 = vpack.c.bf16 %v1933, %v1933
      %v1936 = vpack.c.bf16 %v1934, %v1934
      %v1938 = vsel %vm990, %v1935, 0
      %v1941 = vsel %vm1018, %v1819, 0
      %1943 = vmatprep.subr.bf16.mxu0 0
      %1944 = vmatpush1.bf16.msra.mxu0 %v1941
      %1945 = vmatprep.subr.bf16.mxu0 0
      %1946 = vmatpush1.bf16.msra.mxu0 0
      %1947 = vmatprep.subr.bf16.mxu0 0
      %1948 = vmatpush1.bf16.msra.mxu0 0
      %1949 = vmatprep.subr.bf16.mxu0 0
      %1950 = vmatpush1.bf16.msra.mxu0 0
      %1951 = vmatprep.subr.bf16.mxu0 0
      %1952 = vmatpush1.bf16.msra.mxu0 0
      %1953 = vmatprep.subr.bf16.mxu0 0
      %1954 = vmatpush1.bf16.msra.mxu0 0
      %1955 = vmatprep.subr.bf16.mxu0 0
      %1956 = vmatpush1.bf16.msra.mxu0 0
      %1957 = vmatprep.subr.bf16.mxu0 0
      %1958 = vmatpush1.bf16.msra.mxu0 0
      %1959 = vmatprep.subr.bf16.mxu0 0
      %1960 = vmatpush1.bf16.msra.mxu0 0
      %1961 = vmatprep.subr.bf16.mxu0 0
      %1962 = vmatpush1.bf16.msra.mxu0 0
      %1963 = vmatprep.subr.bf16.mxu0 0
      %1964 = vmatpush1.bf16.msra.mxu0 0
      %1965 = vmatprep.subr.bf16.mxu0 0
      %1966 = vmatpush1.bf16.msra.mxu0 0
      %1967 = vmatprep.subr.bf16.mxu0 0
      %1968 = vmatpush1.bf16.msra.mxu0 0
      %1969 = vmatprep.subr.bf16.mxu0 0
      %1970 = vmatpush1.bf16.msra.mxu0 0
      %1971 = vmatprep.subr.bf16.mxu0 0
      %1972 = vmatpush1.bf16.msra.mxu0 0
      %1973 = vmatprep.subr.bf16.mxu0 0
      %1974 = vmatpush1.bf16.msra.mxu0 0
      %1975 = vmatprep.mubr.bf16.mxu0 0
      %1976 = vmatmul.mubr.bf16.gmra.mrb[0].mxu0 %v1938
      %v1977 = vpop.f32.mrb[0].mxu0
      %v1978 = vadd.f32 0.0, %v1977
      %v1979 = vpop.f32.mrb[0].mxu0
      %v1980 = vpop.f32.mrb[0].mxu0
      %v1981 = vpop.f32.mrb[0].mxu0
      %1982 = vdwg.mxu0
      %v1984 = vsel %vm990, %v1936, 0
      %v1987 = vsel %vm1018, %v1820, 0
      %1989 = vmatprep.subr.bf16.mxu0 0
      %1990 = vmatpush1.bf16.msra.mxu0 %v1987
      %1991 = vmatprep.subr.bf16.mxu0 0
      %1992 = vmatpush1.bf16.msra.mxu0 0
      %1993 = vmatprep.subr.bf16.mxu0 0
      %1994 = vmatpush1.bf16.msra.mxu0 0
      %1995 = vmatprep.subr.bf16.mxu0 0
      %1996 = vmatpush1.bf16.msra.mxu0 0
      %1997 = vmatprep.subr.bf16.mxu0 0
      %1998 = vmatpush1.bf16.msra.mxu0 0
      %1999 = vmatprep.subr.bf16.mxu0 0
      %2000 = vmatpush1.bf16.msra.mxu0 0
      %2001 = vmatprep.subr.bf16.mxu0 0
      %2002 = vmatpush1.bf16.msra.mxu0 0
      %2003 = vmatprep.subr.bf16.mxu0 0
      %2004 = vmatpush1.bf16.msra.mxu0 0
      %2005 = vmatprep.subr.bf16.mxu0 0
      %2006 = vmatpush1.bf16.msra.mxu0 0
      %2007 = vmatprep.subr.bf16.mxu0 0
      %2008 = vmatpush1.bf16.msra.mxu0 0
      %2009 = vmatprep.subr.bf16.mxu0 0
      %2010 = vmatpush1.bf16.msra.mxu0 0
      %2011 = vmatprep.subr.bf16.mxu0 0
      %2012 = vmatpush1.bf16.msra.mxu0 0
      %2013 = vmatprep.subr.bf16.mxu0 0
      %2014 = vmatpush1.bf16.msra.mxu0 0
      %2015 = vmatprep.subr.bf16.mxu0 0
      %2016 = vmatpush1.bf16.msra.mxu0 0
      %2017 = vmatprep.subr.bf16.mxu0 0
      %2018 = vmatpush1.bf16.msra.mxu0 0
      %2019 = vmatprep.subr.bf16.mxu0 0
      %2020 = vmatpush1.bf16.msra.mxu0 0
      %2021 = vmatprep.mubr.bf16.mxu0 0
      %2022 = vmatmul.mubr.bf16.gmra.mrb[0].mxu0 %v1984
      %v2023 = vpop.f32.mrb[0].mxu0
      %v2024 = vadd.f32 0.0, %v2023
      %v2025 = vpop.f32.mrb[0].mxu0
      %v2026 = vpop.f32.mrb[0].mxu0
      %v2027 = vpop.f32.mrb[0].mxu0
      %2028 = vdwg.mxu0
      %v2029 = vpack.c.bf16 %v1978, %v1978
      %v2030 = vpack.c.bf16 %v2024, %v2024
      %v2033 = vunpack.c.l.b16 %v1443
      %v2034 = vunpack.c.l.b16 %v1444
      %v2035 = vpack.c.b16 %v2034, %v2033
      %v2038 = vsel %vm897, %v2029, 0
      %2040 = vmatprep.subr.bf16.mxu0 0
      %2041 = vmatpush1.bf16.msra.mxu0 %v2035
      %2042 = vmatprep.subr.bf16.mxu0 0
      %2043 = vmatpush1.bf16.msra.mxu0 0
      %2044 = vmatprep.subr.bf16.mxu0 0
      %2045 = vmatpush1.bf16.msra.mxu0 0
      %2046 = vmatprep.subr.bf16.mxu0 0
      %2047 = vmatpush1.bf16.msra.mxu0 0
      %2048 = vmatprep.subr.bf16.mxu0 0
      %2049 = vmatpush1.bf16.msra.mxu0 0
      %2050 = vmatprep.subr.bf16.mxu0 0
      %2051 = vmatpush1.bf16.msra.mxu0 0
      %2052 = vmatprep.subr.bf16.mxu0 0
      %2053 = vmatpush1.bf16.msra.mxu0 0
      %2054 = vmatprep.subr.bf16.mxu0 0
      %2055 = vmatpush1.bf16.msra.mxu0 0
      %2056 = vmatprep.subr.bf16.mxu0 0
      %2057 = vmatpush1.bf16.msra.mxu0 0
      %2058 = vmatprep.subr.bf16.mxu0 0
      %2059 = vmatpush1.bf16.msra.mxu0 0
      %2060 = vmatprep.subr.bf16.mxu0 0
      %2061 = vmatpush1.bf16.msra.mxu0 0
      %2062 = vmatprep.subr.bf16.mxu0 0
      %2063 = vmatpush1.bf16.msra.mxu0 0
      %2064 = vmatprep.subr.bf16.mxu0 0
      %2065 = vmatpush1.bf16.msra.mxu0 0
      %2066 = vmatprep.subr.bf16.mxu0 0
      %2067 = vmatpush1.bf16.msra.mxu0 0
      %2068 = vmatprep.subr.bf16.mxu0 0
      %2069 = vmatpush1.bf16.msra.mxu0 0
      %2070 = vmatprep.subr.bf16.mxu0 0
      %2071 = vmatpush1.bf16.msra.mxu0 0
      %2072 = vmatprep.mubr.bf16.mxu0 0
      %2073 = vmatmul.mubr.bf16.gmra.mrb[0].mxu0 %v2038
      %v2074 = vpop.f32.mrb[0].mxu0
      %v2075 = vadd.f32 0.0, %v2074
      %v2076 = vpop.f32.mrb[0].mxu0
      %v2077 = vpop.f32.mrb[0].mxu0
      %v2078 = vpop.f32.mrb[0].mxu0
      %2079 = vdwg.mxu0
      %v2082 = vunpack.c.l.b16 %v1445
      %v2083 = vunpack.c.l.b16 %v1446
      %v2084 = vpack.c.b16 %v2083, %v2082
      %v2087 = vsel %vm897, %v2030, 0
      %2089 = vmatprep.subr.bf16.mxu0 0
      %2090 = vmatpush1.bf16.msra.mxu0 %v2084
      %2091 = vmatprep.subr.bf16.mxu0 0
      %2092 = vmatpush1.bf16.msra.mxu0 0
      %2093 = vmatprep.subr.bf16.mxu0 0
      %2094 = vmatpush1.bf16.msra.mxu0 0
      %2095 = vmatprep.subr.bf16.mxu0 0
      %2096 = vmatpush1.bf16.msra.mxu0 0
      %2097 = vmatprep.subr.bf16.mxu0 0
      %2098 = vmatpush1.bf16.msra.mxu0 0
      %2099 = vmatprep.subr.bf16.mxu0 0
      %2100 = vmatpush1.bf16.msra.mxu0 0
      %2101 = vmatprep.subr.bf16.mxu0 0
      %2102 = vmatpush1.bf16.msra.mxu0 0
      %2103 = vmatprep.subr.bf16.mxu0 0
      %2104 = vmatpush1.bf16.msra.mxu0 0
      %2105 = vmatprep.subr.bf16.mxu0 0
      %2106 = vmatpush1.bf16.msra.mxu0 0
      %2107 = vmatprep.subr.bf16.mxu0 0
      %2108 = vmatpush1.bf16.msra.mxu0 0
      %2109 = vmatprep.subr.bf16.mxu0 0
      %2110 = vmatpush1.bf16.msra.mxu0 0
      %2111 = vmatprep.subr.bf16.mxu0 0
      %2112 = vmatpush1.bf16.msra.mxu0 0
      %2113 = vmatprep.subr.bf16.mxu0 0
      %2114 = vmatpush1.bf16.msra.mxu0 0
      %2115 = vmatprep.subr.bf16.mxu0 0
      %2116 = vmatpush1.bf16.msra.mxu0 0
      %2117 = vmatprep.subr.bf16.mxu0 0
      %2118 = vmatpush1.bf16.msra.mxu0 0
      %2119 = vmatprep.subr.bf16.mxu0 0
      %2120 = vmatpush1.bf16.msra.mxu0 0
      %2121 = vmatprep.mubr.bf16.mxu0 0
      %2122 = vmatmul.mubr.bf16.gmra.mrb[0].mxu0 %v2087
      %v2123 = vpop.f32.mrb[0].mxu0
      %v2124 = vadd.f32 0.0, %v2123
      %v2125 = vpop.f32.mrb[0].mxu0
      %v2126 = vpop.f32.mrb[0].mxu0
      %v2127 = vpop.f32.mrb[0].mxu0
      %2128 = vdwg.mxu0
      %v2129 = vsel %vm581, %v2075, 0.0
      %v2130 = vsel %vm581, %v2124, 0.0
      %v2131 = vadd.f32 %v2129, %v2130
      %v2132 = vadd.f32 %v1409, %v2131
      %v2133 = vlaneseq
      %v2134 = vshrl.u32 %v2133, 7
      %v2135 = vsub.s32 0, %v2134
      %v2136 = vrot.slane %v1462, %v2135
      %v2137 = vadd.f32 %v2132, %v2136
      %v2138 = vsel %vm581, %v2137, 0.0
      %2139 = vadd.xlane.f32.xlu0 %v2138
      %v2140 = vpop.xlane.xlu0 %2139
      %v2141 = vmul.f32 %v2140, %v1220
      %v2142 = vsub.f32 %v2137, %v2141
      %v2143 = vmul.f32 %v2142, %v2142
      %v2144 = vsel %vm581, %v2143, 0.0
      %2145 = vadd.xlane.f32.xlu0 %v2144
      %v2146 = vpop.xlane.xlu0 %2145
      %v2147 = vmul.f32 %v2146, %v1220
      %v2148 = vadd.f32 %v2147, 1e-12
      %v2149 = vrsqrt.pop %v2148
      %v2150 = vmul.f32 %v2142, %v2149
      %v2151 = vlaneseq
      %v2152 = vshrl.u32 %v2151, 7
      %v2153 = vsub.s32 1, %v2152
      %v2154 = vrot.slane %v1462, %v2153
      %v2155 = vmul.f32 %v2150, %v2154
      %v2156 = vlaneseq
      %v2157 = vshrl.u32 %v2156, 7
      %v2158 = vsub.s32 2, %v2157
      %v2159 = vrot.slane %v1462, %v2158
      %v2160 = vadd.f32 %v2155, %v2159
      %v2161 = vpack.c.bf16 %v2160, %v2160
      %s2162 = scalar_lea.vmem %s9, 1
      %v2163 = vld [vmem:[%s2162] sm:$0x1]
      %v2165 = vlaneseq
      %v2166 = vshrl.u32 %v2165, 7
      %v2167 = vsub.s32 0, %v2166
      %v2168 = vrot.slane %v2163, %v2167
      %v2174 = vunpack.c.l.b16 %v1448
      %v2175 = vunpack.c.l.b16 %v1449
      %v2176 = vunpack.c.l.b16 %v1450
      %v2177 = vunpack.c.l.b16 %v1451
      %v2178 = vpack.c.b16 %v2175, %v2174
      %v2179 = vpack.c.b16 %v2177, %v2176
      %v2183 = vsel %vm581, %v2161, 0
      %2185 = vmatprep.subr.bf16.mxu0 0
      %2186 = vmatpush1.bf16.msra.mxu0 %v2178
      %2187 = vmatprep.subr.bf16.mxu0 0
      %2188 = vmatpush1.bf16.msra.mxu0 %v2179
      %2189 = vmatprep.subr.bf16.mxu0 0
      %2190 = vmatpush1.bf16.msra.mxu0 0
      %2191 = vmatprep.subr.bf16.mxu0 0
      %2192 = vmatpush1.bf16.msra.mxu0 0
      %2193 = vmatprep.subr.bf16.mxu0 0
      %2194 = vmatpush1.bf16.msra.mxu0 0
      %2195 = vmatprep.subr.bf16.mxu0 0
      %2196 = vmatpush1.bf16.msra.mxu0 0
      %2197 = vmatprep.subr.bf16.mxu0 0
      %2198 = vmatpush1.bf16.msra.mxu0 0
      %2199 = vmatprep.subr.bf16.mxu0 0
      %2200 = vmatpush1.bf16.msra.mxu0 0
      %2201 = vmatprep.subr.bf16.mxu0 0
      %2202 = vmatpush1.bf16.msra.mxu0 0
      %2203 = vmatprep.subr.bf16.mxu0 0
      %2204 = vmatpush1.bf16.msra.mxu0 0
      %2205 = vmatprep.subr.bf16.mxu0 0
      %2206 = vmatpush1.bf16.msra.mxu0 0
      %2207 = vmatprep.subr.bf16.mxu0 0
      %2208 = vmatpush1.bf16.msra.mxu0 0
      %2209 = vmatprep.subr.bf16.mxu0 0
      %2210 = vmatpush1.bf16.msra.mxu0 0
      %2211 = vmatprep.subr.bf16.mxu0 0
      %2212 = vmatpush1.bf16.msra.mxu0 0
      %2213 = vmatprep.subr.bf16.mxu0 0
      %2214 = vmatpush1.bf16.msra.mxu0 0
      %2215 = vmatprep.subr.bf16.mxu0 0
      %2216 = vmatpush1.bf16.msra.mxu0 0
      %2217 = vmatprep.mubr.bf16.mxu0 0
      %2218 = vmatmul.mubr.bf16.gmra.mrb[0].mxu0 %v2183
      %v2219 = vpop.f32.mrb[0].mxu0
      %v2220 = vadd.f32 %v2168, %v2219
      %v2221 = vpop.f32.mrb[0].mxu0
      %v2222 = vpop.f32.mrb[0].mxu0
      %v2223 = vpop.f32.mrb[0].mxu0
      %2224 = vdwg.mxu0
      %v2225 = vmul.f32 %v2220, 0.5
      %v2226 = vmul.f32 %v2220, 0.044715
      %v2227 = vmul.f32 %v2226, %v2220
      %v2228 = vmul.f32 %v2227, %v2220
      %v2229 = vadd.f32 %v2220, %v2228
      %v2230 = vmul.f32 %v2229, 0.7978846
      %v2231 = vtanh.pop %v2230
      %v2232 = vadd.f32 %v2231, 1.0
      %v2233 = vmul.f32 %v2225, %v2232
      %v2234 = vpack.c.bf16 %v2233, %v2233
      %v2235 = vlaneseq
      %v2236 = vshrl.u32 %v2235, 7
      %v2237 = vsub.s32 3, %v2236
      %v2238 = vrot.slane %v1462, %v2237
      %v2247 = vunpack.c.l.b16 %v1453
      %v2248 = vunpack.c.l.b16 %v1454
      %v2249 = vunpack.c.l.b16 %v1455
      %v2250 = vunpack.c.l.b16 %v1456
      %v2251 = vunpack.c.l.b16 %v1457
      %v2252 = vunpack.c.l.b16 %v1458
      %v2253 = vunpack.c.l.b16 %v1459
      %v2254 = vunpack.c.l.b16 %v1460
      %v2255 = vpack.c.b16 %v2248, %v2247
      %v2256 = vpack.c.b16 %v2250, %v2249
      %v2257 = vpack.c.b16 %v2252, %v2251
      %v2258 = vpack.c.b16 %v2254, %v2253
      %v2264 = vsel %vm1342, %v2234, 0
      %2266 = vmatprep.subr.bf16.mxu0 0
      %2267 = vmatpush1.bf16.msra.mxu0 %v2255
      %2268 = vmatprep.subr.bf16.mxu0 0
      %2269 = vmatpush1.bf16.msra.mxu0 %v2256
      %2270 = vmatprep.subr.bf16.mxu0 0
      %2271 = vmatpush1.bf16.msra.mxu0 %v2257
      %2272 = vmatprep.subr.bf16.mxu0 0
      %2273 = vmatpush1.bf16.msra.mxu0 %v2258
      %2274 = vmatprep.subr.bf16.mxu0 0
      %2275 = vmatpush1.bf16.msra.mxu0 0
      %2276 = vmatprep.subr.bf16.mxu0 0
      %2277 = vmatpush1.bf16.msra.mxu0 0
      %2278 = vmatprep.subr.bf16.mxu0 0
      %2279 = vmatpush1.bf16.msra.mxu0 0
      %2280 = vmatprep.subr.bf16.mxu0 0
      %2281 = vmatpush1.bf16.msra.mxu0 0
      %2282 = vmatprep.subr.bf16.mxu0 0
      %2283 = vmatpush1.bf16.msra.mxu0 0
      %2284 = vmatprep.subr.bf16.mxu0 0
      %2285 = vmatpush1.bf16.msra.mxu0 0
      %2286 = vmatprep.subr.bf16.mxu0 0
      %2287 = vmatpush1.bf16.msra.mxu0 0
      %2288 = vmatprep.subr.bf16.mxu0 0
      %2289 = vmatpush1.bf16.msra.mxu0 0
      %2290 = vmatprep.subr.bf16.mxu0 0
      %2291 = vmatpush1.bf16.msra.mxu0 0
      %2292 = vmatprep.subr.bf16.mxu0 0
      %2293 = vmatpush1.bf16.msra.mxu0 0
      %2294 = vmatprep.subr.bf16.mxu0 0
      %2295 = vmatpush1.bf16.msra.mxu0 0
      %2296 = vmatprep.subr.bf16.mxu0 0
      %2297 = vmatpush1.bf16.msra.mxu0 0
      %2298 = vmatprep.mubr.bf16.mxu0 0
      %2299 = vmatmul.mubr.bf16.gmra.mrb[0].mxu0 %v2264
      %v2300 = vpop.f32.mrb[0].mxu0
      %v2301 = vadd.f32 %v2238, %v2300
      %v2302 = vpop.f32.mrb[0].mxu0
      %v2303 = vpop.f32.mrb[0].mxu0
      %v2304 = vpop.f32.mrb[0].mxu0
      %2305 = vdwg.mxu0
      %v2306 = vadd.f32 %v2160, %v2301
      %v2307 = vsel %vm581, %v2306, 0.0
      %2308 = vadd.xlane.f32.xlu0 %v2307
      %v2309 = vpop.xlane.xlu0 %2308
      %v2310 = vmul.f32 %v2309, %v1220
      %v2311 = vsub.f32 %v2306, %v2310
      %v2312 = vmul.f32 %v2311, %v2311
      %v2313 = vsel %vm581, %v2312, 0.0
      %2314 = vadd.xlane.f32.xlu0 %v2313
      %v2315 = vpop.xlane.xlu0 %2314
      %v2316 = vmul.f32 %v2315, %v1220
      %v2317 = vadd.f32 %v2316, 1e-12
      %v2318 = vrsqrt.pop %v2317
      %v2319 = vmul.f32 %v2311, %v2318
      %v2320 = vlaneseq
      %v2321 = vshrl.u32 %v2320, 7
      %v2322 = vsub.s32 4, %v2321
      %v2323 = vrot.slane %v1462, %v2322
      %v2324 = vmul.f32 %v2319, %v2323
      %v2325 = vlaneseq
      %v2326 = vshrl.u32 %v2325, 7
      %v2327 = vsub.s32 5, %v2326
      %v2328 = vrot.slane %v1462, %v2327
      %v2329 = vadd.f32 %v2324, %v2328
      %v2330 = vpack.c.bf16 %v2329, %v2329
      %v2331 = vld [vmem:[%s11] sm:$0xf]
      %v2332 = vld [vmem:[%s11 + $0x4] sm:$0xf]
      %v2333 = vld [vmem:[%s11 + $0x8] sm:$0xf]
      %v2334 = vld [vmem:[%s11 + $0xc] sm:$0xf]
      %v2335 = vld [vmem:[%s12] sm:$0x1]
      %v2337 = vlaneseq
      %v2338 = vshrl.u32 %v2337, 7
      %v2339 = vsub.s32 0, %v2338
      %v2340 = vrot.slane %v2335, %v2339
      %v2346 = vunpack.c.l.b16 %v2331
      %v2347 = vunpack.c.l.b16 %v2332
      %v2348 = vunpack.c.l.b16 %v2333
      %v2349 = vunpack.c.l.b16 %v2334
      %v2350 = vpack.c.b16 %v2347, %v2346
      %v2351 = vpack.c.b16 %v2349, %v2348
      %v2355 = vsel %vm581, %v2330, 0
      %2357 = vmatprep.subr.bf16.mxu0 0
      %2358 = vmatpush1.bf16.msra.mxu0 %v2350
      %2359 = vmatprep.subr.bf16.mxu0 0
      %2360 = vmatpush1.bf16.msra.mxu0 %v2351
      %2361 = vmatprep.subr.bf16.mxu0 0
      %2362 = vmatpush1.bf16.msra.mxu0 0
      %2363 = vmatprep.subr.bf16.mxu0 0
      %2364 = vmatpush1.bf16.msra.mxu0 0
      %2365 = vmatprep.subr.bf16.mxu0 0
      %2366 = vmatpush1.bf16.msra.mxu0 0
      %2367 = vmatprep.subr.bf16.mxu0 0
      %2368 = vmatpush1.bf16.msra.mxu0 0
      %2369 = vmatprep.subr.bf16.mxu0 0
      %2370 = vmatpush1.bf16.msra.mxu0 0
      %2371 = vmatprep.subr.bf16.mxu0 0
      %2372 = vmatpush1.bf16.msra.mxu0 0
      %2373 = vmatprep.subr.bf16.mxu0 0
      %2374 = vmatpush1.bf16.msra.mxu0 0
      %2375 = vmatprep.subr.bf16.mxu0 0
      %2376 = vmatpush1.bf16.msra.mxu0 0
      %2377 = vmatprep.subr.bf16.mxu0 0
      %2378 = vmatpush1.bf16.msra.mxu0 0
      %2379 = vmatprep.subr.bf16.mxu0 0
      %2380 = vmatpush1.bf16.msra.mxu0 0
      %2381 = vmatprep.subr.bf16.mxu0 0
      %2382 = vmatpush1.bf16.msra.mxu0 0
      %2383 = vmatprep.subr.bf16.mxu0 0
      %2384 = vmatpush1.bf16.msra.mxu0 0
      %2385 = vmatprep.subr.bf16.mxu0 0
      %2386 = vmatpush1.bf16.msra.mxu0 0
      %2387 = vmatprep.subr.bf16.mxu0 0
      %2388 = vmatpush1.bf16.msra.mxu0 0
      %2389 = vmatprep.mubr.bf16.mxu0 0
      %2390 = vmatmul.mubr.bf16.gmra.mrb[0].mxu0 %v2355
      %v2391 = vpop.f32.mrb[0].mxu0
      %v2392 = vadd.f32 %v2340, %v2391
      %v2393 = vpop.f32.mrb[0].mxu0
      %v2394 = vpop.f32.mrb[0].mxu0
      %v2395 = vpop.f32.mrb[0].mxu0
      %2396 = vdwg.mxu0
      %v2397 = vsel %vm897, %v2392, -inf
      %2398 = vmax.xlane.f32.xlu0 %v2397
      %v2399 = vpop.xlane.xlu0 %2398
      %v2400 = vsub.f32 %v2392, %v2399
      %v2401 = vmul.f32 %v2400, 1.442695
      %v2402 = vpow.pop %v2401
      %v2403 = vsel %vm897, %v2402, 0.0
      %2404 = vadd.xlane.f32.xlu0 %v2403
      %v2405 = vpop.xlane.xlu0 %2404
      %v2406 = vlog2.pop %v2405
      %v2407 = vmul.f32 %v2406, 0.6931472
      %v2408 = vadd.f32 %v2399, %v2407
      %v2409 = vsub.f32 %v2392, %v2408
      %v2410 = vld [vmem:[%s474] sm:$0xff]
      %v2411 = vlaneseq
      %v2412 = vand.u32 %v2411, 127
      %2413 = vset.pattern.permute.xlu0 0
      %2414 = vperm.xlu0 %2413, %v2410
      %v2415 = vpop.permute.xlu0 %2414
      %vm2416 = vcmp.eq.s32.totalorder %v2412, %v2415
      %v2417 = vsel %vm2416, 1, 0
      %v2418 = vcvt.s32.f32 %v2417
      %v2419 = vmul.f32 %v2418, %v2409
      %v2420 = vsel %vm897, %v2419, 0.0
      %2421 = vadd.xlane.f32.xlu0 %v2420
      %v2422 = vpop.xlane.xlu0 %2421
      %v2423 = vsub.f32 0.0, %v2422
      %v2424 = vld [vmem:[%s478] sm:$0xff]
      %v2425 = vmul.f32 %v2423, %v2424
      %vm2426 = vcmask 7168
      %v2427 = vsel %vm2426, %v2425, 0.0
      %2428 = vadd.xlane.f32.xlu0 %v2427
      %v2429 = vpop.xlane.xlu0 %2428
      %v2430 = vrot.slane %v2429, 4
      %v2431 = vadd.f32 %v2429, %v2430
      %v2432 = vrot.slane %v2431, 2
      %v2433 = vadd.f32 %v2431, %v2432
      %v2434 = vrot.slane %v2433, 1
      %v2435 = vadd.f32 %v2433, %v2434
      %s2436 = vtos %v2435
      %v2437 = vsel %vm2426, %v2424, 0.0
      %2438 = vadd.xlane.f32.xlu0 %v2437
      %v2439 = vpop.xlane.xlu0 %2438
      %v2440 = vrot.slane %v2439, 4
      %v2441 = vadd.f32 %v2439, %v2440
      %v2442 = vrot.slane %v2441, 2
      %v2443 = vadd.f32 %v2441, %v2442
      %v2444 = vrot.slane %v2443, 1
      %v2445 = vadd.f32 %v2443, %v2444
      %s2446 = vtos %v2445
      %vm2447 = vcmp.eq.s32.totalorder %v2412, 0
      %v2448 = vstv %s2436
      %v2449 = vstv %s2446
      %v2450 = vsel %vm2447, %v2448, %v2449
      %vm2451 = vcmask 8192
      %2452 = vst.msk [vmem:[%s481] sm:$0x1] %vm2451, %v2450
      %p2453 = scmp.lt.s32.totalorder %s24, 1
      %s2454 = scalar_select %p2453, %s24, 1
      %s2455 = scalar_lea.vmem %s13, %s2454
      // Predicated region
      $region73: #{bert_ner_loss.1} parent=71 // pred_check
        %p2456 = pneg %p335
      $region74: #{bert_ner_loss.1} parent=71 // pred_check_branch
        %2458 = sbr.rel (%p2456) target = $region76
      $region75: #{bert_ner_loss.1} parent=71 // pred_region
        _
      $region76: #{bert_ner_loss.1} parent=71 // pred_fallthru
        _
    $region72: #{bert_ner_loss.1} parent=5 // pred_fallthru
      _
    %p2459 = scmp.le.s32.totalorder 2, %s19
    // Predicated region
    $region77: #{bert_ner_loss.1} parent=5 // pred_check
      %p2460 = pneg %p2459
    $region78: #{bert_ner_loss.1} parent=5 // pred_check_branch
      %2462 = sbr.rel (%p2460) target = $region80
    $region79: #{bert_ner_loss.1} parent=5 // pred_region
      %s2463 = ssub.s32 %s19, 2
      // Predicated region
      $region81: #{bert_ner_loss.1} parent=79 // pred_check
        %p2464 = pneg %p341
      $region82: #{bert_ner_loss.1} parent=79 // pred_check_branch
        %2466 = sbr.rel (%p2464) target = $region84
      $region83: #{bert_ner_loss.1} parent=79 // pred_region
        %p2467 = scmp.lt.s32.totalorder %s25, 1
        %s2468 = scalar_select %p2467, %s25, 1
        %s2469 = scalar_lea.vmem %s13, %s2468
      $region84: #{bert_ner_loss.1} parent=79 // pred_fallthru
        _
    $region80: #{bert_ner_loss.1} parent=5 // pred_fallthru
      _
  $region6: #{bert_ner_loss.1} parent=0 // loop_footer
    %s23 = sadd.s32 1, %s19
  $region7: #{bert_ner_loss.1} parent=0 // loop_footer_branch
    %18 = sbr.rel target = $region3
  $region8: #{bert_ner_loss.1} parent=0 // loop_exit
    _

</llo_original>
